<compile_context>
chip_gen: v5e
topology: v5e:2x2
jax: 0.10.0
libtpu: 0.0.40
codegen_flags: <defaults>
</compile_context>

<pallas_src>
import functools

import jax
import jax.numpy as jnp
from jax import lax
from jax.experimental import pallas as pl
from jax.experimental.pallas import tpu as pltpu

EPS = 1e-5                      # PyTorch LayerNorm default
COMPUTE_DTYPE = jnp.bfloat16    # MXU operand dtype (f32 accumulation)


# ------------------------------- helpers -----------------------------------

def _layernorm(x, gamma, beta):
    mu = jnp.mean(x, axis=-1, keepdims=True)
    var = jnp.mean((x - mu) ** 2, axis=-1, keepdims=True)
    return (x - mu) * lax.rsqrt(var + EPS) * gamma + beta


def _mm(a, b):
    return jnp.dot(a.astype(COMPUTE_DTYPE), b.astype(COMPUTE_DTYPE),
                   preferred_element_type=jnp.float32)


def _round_up(v, m):
    return ((v + m - 1) // m) * m


# --------------------------- fused GNN kernel ------------------------------

def _fused_granite_kernel(
    # inputs (VMEM)
    x_ref, ea_ref, src_ref, dst_ref,
    ne_w_ref, ne_b_ref, ee_w_ref, ee_b_ref,
    ew1_ref, eb1_ref, ew2_ref, eb2_ref, eg_ref, ebt_ref,
    nw1_ref, nb1_ref, nw2_ref, nb2_ref, ng_ref, nbt_ref,
    dw1_ref, db1_ref, dg_ref, dbt_ref, dw2_ref, db2_ref, mask_ref,
    # output
    out_ref,
    # scratch (persists across grid steps)
    h_scr, e_scr, oh_src_scr, oh_dst_scr, cat_e_scr, cat_n_scr,
    *, use_ln, emb,
):
    step = pl.program_id(0)
    E_pad, N_pad = oh_src_scr.shape

    # ---- step 0: encoders + one-hot gather/scatter operators -------------
    @pl.when(step == 0)
    def _():
        h_scr[...] = jnp.maximum(
            _mm(x_ref[...], ne_w_ref[...]) + ne_b_ref[...], 0.0)
        e_scr[...] = jnp.maximum(
            _mm(ea_ref[...], ee_b_ref[...] * 0.0 + ee_w_ref[...][0:0]
                if False else ee_w_ref[...]) + ee_b_ref[...], 0.0)
        # one-hot operators, built once and reused every step (padded edges
        # have index -1 -> all-zero rows -> they gather/scatter nothing)
        col = lax.broadcasted_iota(jnp.int32, (E_pad, N_pad), 1)
        oh_src_scr[...] = (col == src_ref[...]).astype(COMPUTE_DTYPE)
        oh_dst_scr[...] = (col == dst_ref[...]).astype(COMPUTE_DTYPE)

    h = h_scr[...]                       # (N_pad, emb) f32 master
    e = e_scr[...]                       # (E_pad, emb) f32 master
    h_b = h.astype(COMPUTE_DTYPE)        # hoisted bf16 copy, reused below
    oh_src = oh_src_scr[...]
    oh_dst = oh_dst_scr[...]

    # ---- edge update: MXU gather + fused K=3*emb MLP ----------------------
    cat_e_scr[:, 0:emb] = e.astype(COMPUTE_DTYPE)
    cat_e_scr[:, emb:2 * emb] = jnp.dot(
        oh_src, h_b, preferred_element_type=jnp.float32).astype(COMPUTE_DTYPE)
    cat_e_scr[:, 2 * emb:3 * emb] = jnp.dot(
        oh_dst, h_b, preferred_element_type=jnp.float32).astype(COMPUTE_DTYPE)

    z = jnp.maximum(
        jnp.dot(cat_e_scr[...], ew1_ref[0],
                preferred_element_type=jnp.float32) + eb1_ref[0], 0.0)
    e_new = e + _mm(z, ew2_ref[0]) + eb2_ref[0]
    if use_ln:
        e_new = _layernorm(e_new, eg_ref[0], ebt_ref[0])
    e_scr[...] = e_new

    # ---- node update: MXU scatter-add + fused K=2*emb MLP ------------------
    # agg[n] = sum_{edges i with dst[i]==n} e_new[i]   (unordered-sum semantics)
    agg = lax.dot_general(
        oh_dst, e_new.astype(COMPUTE_DTYPE),
        dimension_numbers=(((0,), (0,)), ((), ())),
        preferred_element_type=jnp.float32)                  # (N_pad, emb)

    cat_n_scr[:, 0:emb] = h_b
    cat_n_scr[:, emb:2 * emb] = agg.astype(COMPUTE_DTYPE)

    z = jnp.maximum(
        jnp.dot(cat_n_scr[...], nw1_ref[0],
                preferred_element_type=jnp.float32) + nb1_ref[0], 0.0)
    h_new = h + _mm(z, nw2_ref[0]) + nb2_ref[0]
    if use_ln:
        h_new = _layernorm(h_new, ng_ref[0], nbt_ref[0])
    h_scr[...] = h_new

    # ---- last step: fused throughput decoder (masked sum as matmul) -------
    @pl.when(step == pl.num_programs(0) - 1)
    def _():
        zd = jnp.maximum(_mm(h_scr[...], dw1_ref[...]) + db1_ref[...], 0.0)
        if use_ln:
            zd = _layernorm(zd, dg_ref[...], dbt_ref[...])
        mask = mask_ref[...]                                 # (N_pad, 1) in {0,1}
        # sum_i mask_i * (z_i @ w2 + b2) == (mask^T @ z) @ w2 + (sum mask)*b2
        mz = lax.dot_general(
            mask.astype(COMPUTE_DTYPE), zd.astype(COMPUTE_DTYPE),
            dimension_numbers=(((0,), (0,)), ((), ())),
            preferred_element_type=jnp.float32)              # (1, H)
        n_sel = jnp.sum(mask, keepdims=True)                 # (1, 1)
        out_ref[...] = _mm(mz, dw2_ref[...]) + n_sel * db2_ref[...]


# ----------------------------- parameter init ------------------------------

def _dense(key, fin, fout, w_dtype):
    kw, kb = jax.random.split(key)
    bound = 1.0 / jnp.sqrt(jnp.float32(fin))
    w = jax.random.uniform(kw, (fin, fout), jnp.float32, -bound, bound)
    b = jax.random.uniform(kb, (1, fout), jnp.float32, -bound, bound)
    return w.astype(w_dtype), b


def init_params(key, node_feat, edge_feat, emb, hidden, num_steps, num_tasks,
                w_dtype=COMPUTE_DTYPE):
    keys = iter(jax.random.split(key, 2 + 7 * num_steps + 2 * num_tasks))
    p = {}
    p["node_enc_w"], p["node_enc_b"] = _dense(next(keys), node_feat, emb, w_dtype)
    p["edge_enc_w"], p["edge_enc_b"] = _dense(next(keys), edge_feat, emb, w_dtype)

    ew1, eb1, ew2, eb2 = [], [], [], []
    nw1, nb1, nw2, nb2 = [], [], [], []
    for _ in range(num_steps):
        # edge MLP-1 weights fused along K: input is [e | h_src | h_dst]
        w_e, b = _dense(next(keys), emb, hidden, w_dtype)
        w_s, _ = _dense(next(keys), emb, hidden, w_dtype)
        w_d, _ = _dense(next(keys), emb, hidden, w_dtype)
        ew1.append(jnp.concatenate([w_e, w_s, w_d], axis=0))      # (3*emb, H)
        eb1.append(b)
        w, b = _dense(next(keys), hidden, emb, w_dtype)
        ew2.append(w); eb2.append(b)
        # node MLP-1 weights fused along K: input is [h | agg]
        w_h, b = _dense(next(keys), emb, hidden, w_dtype)
        w_a, _ = _dense(next(keys), emb, hidden, w_dtype)
        nw1.append(jnp.concatenate([w_h, w_a], axis=0))           # (2*emb, H)
        nb1.append(b)
        w, b = _dense(next(keys), hidden, emb, w_dtype)
        nw2.append(w); nb2.append(b)

    p["edge_w1"] = jnp.stack(ew1)                                 # (S, 3D, H) bf16
    p["edge_b1"] = jnp.stack(eb1)                                 # (S, 1, H) f32
    p["edge_w2"] = jnp.stack(ew2)                                 # (S, H, D) bf16
    p["edge_b2"] = jnp.stack(eb2)                                 # (S, 1, D) f32
    p["edge_gamma"] = jnp.ones((num_steps, 1, emb), jnp.float32)
    p["edge_beta"] = jnp.zeros((num_steps, 1, emb), jnp.float32)
    p["node_w1"] = jnp.stack(nw1)                                 # (S, 2D, H) bf16
    p["node_b1"] = jnp.stack(nb1)
    p["node_w2"] = jnp.stack(nw2)
    p["node_b2"] = jnp.stack(nb2)
    p["node_gamma"] = jnp.ones((num_steps, 1, emb), jnp.float32)
    p["node_beta"] = jnp.zeros((num_steps, 1, emb), jnp.float32)

    decoders = []
    for _ in range(num_tasks):
        dw1, db1 = _dense(next(keys), emb, hidden, w_dtype)
        dw2, db2 = _dense(next(keys), hidden, 1, w_dtype)
        decoders.append(dict(w1=dw1, b1=db1, w2=dw2, b2=db2,
                             gamma=jnp.ones((1, hidden), jnp.float32),
                             beta=jnp.zeros((1, hidden), jnp.float32)))
    p["decoders"] = decoders
    return p


# ------------------------------ forward pass -------------------------------

def riscv_granite_forward(params, x, edge_index, edge_attr, instruction_mask,
                          task_id=0, use_layer_norm=True):
    N0, E0 = x.shape[0], edge_attr.shape[0]

    # Pad rows to sublane multiples.  Padded edges get index -1 so their
    # one-hot rows are all-zero (gather zeros, scatter nothing); padded nodes
    # are excluded from the decoder sum via the mask.
    N_pad = _round_up(max(N0, 8), 8)
    E_pad = _round_up(max(E0, 8), 8)

    def pad_rows(a, n):
        r = n - a.shape[0]
        if r == 0:
            return a
        return jnp.concatenate(
            [a, jnp.zeros((r,) + a.shape[1:], a.dtype)], axis=0)

    x_p = pad_rows(x.astype(jnp.float32), N_pad)
    ea_p = pad_rows(edge_attr.astype(jnp.float32), E_pad)
    mask_p = pad_rows(instruction_mask.astype(jnp.float32)[:, None], N_pad)

    src = edge_index[0].astype(jnp.int32)[:, None]
    dst = edge_index[1].astype(jnp.int32)[:, None]
    if E_pad > E0:
        fill = jnp.full((E_pad - E0, 1), -1, jnp.int32)   # matches no node
        src = jnp.concatenate([src, fill], axis=0)
        dst = jnp.concatenate([dst, fill], axis=0)

    num_steps = params["edge_w1"].shape[0]
    emb = params["node_enc_w"].shape[1]
    dec = params["decoders"][task_id]

    def const(a):
        shp = tuple(a.shape)
        return pl.BlockSpec(shp, lambda s, _n=len(shp): (0,) * _n)

    def per_step(a):
        shp = tuple(a.shape)
        return pl.BlockSpec((1,) + shp[1:],
                            lambda s, _n=len(shp): (s,) + (0,) * (_n - 1))

    const_args = (x_p, ea_p, src, dst,
                  params["node_enc_w"], params["node_enc_b"],
                  params["edge_enc_w"], params["edge_enc_b"])
    step_names = ("edge_w1", "edge_b1", "edge_w2", "edge_b2",
                  "edge_gamma", "edge_beta",
                  "node_w1", "node_b1", "node_w2", "node_b2",
                  "node_gamma", "node_beta")
    step_args = tuple(params[n] for n in step_names)
    dec_args = (dec["w1"], dec["b1"], dec["gamma"], dec["beta"],
                dec["w2"], dec["b2"], mask_p)

    in_specs = ([const(a) for a in const_args]
                + [per_step(a) for a in step_args]
                + [const(a) for a in dec_args])

    grid_spec = pltpu.PrefetchScalarGridSpec(
        num_scalar_prefetch=0,
        grid=(num_steps,),
        in_specs=in_specs,
        out_specs=pl.BlockSpec((1, 1), lambda s: (0, 0)),
        scratch_shapes=[
            pltpu.VMEM((N_pad, emb), jnp.float32),        # h (f32 master)
            pltpu.VMEM((E_pad, emb), jnp.float32),        # e (f32 master)
            pltpu.VMEM((E_pad, N_pad), COMPUTE_DTYPE),    # one-hot(src)
            pltpu.VMEM((E_pad, N_pad), COMPUTE_DTYPE),    # one-hot(dst)
            pltpu.VMEM((E_pad, 3 * emb), COMPUTE_DTYPE),  # [e | h_src | h_dst]
            pltpu.VMEM((N_pad, 2 * emb), COMPUTE_DTYPE),  # [h | agg]
        ],
    )

    out = pl.pallas_call(
        functools.partial(_fused_granite_kernel,
                          use_ln=use_layer_norm, emb=emb),
        out_shape=jax.ShapeDtypeStruct((1, 1), jnp.float32),
        grid_spec=grid_spec,
        compiler_params=pltpu.CompilerParams(
            dimension_semantics=("arbitrary",),   # steps are sequential
            vmem_limit_bytes=16 * 1024 * 1024,
        ),
    )(*const_args, *step_args, *dec_args)

    return out[0, 0]


# ---------------------------------- main -----------------------------------

if __name__ == "__main__":
    # small synthetic graph (RISC-V basic block): N nodes, E edges
    N, E = 16, 32
    NODE_FEAT, EDGE_FEAT = 32, 16
    EMB = HIDDEN = 128          # scaled-down node/edge/hidden dims (default 256)
    NUM_STEPS = 2               # scaled-down message-passing steps (default 8)
    NUM_TASKS = 1

    root = jax.random.PRNGKey(0)
    k_param, k_x, k_ea, k_ei, k_m = jax.random.split(root, 5)

    params = init_params(k_param, NODE_FEAT, EDGE_FEAT, EMB, HIDDEN,
                         NUM_STEPS, NUM_TASKS)

    x = jax.random.normal(k_x, (N, NODE_FEAT), jnp.float32)
    edge_attr = jax.random.normal(k_ea, (E, EDGE_FEAT), jnp.float32)
    edge_index = jax.random.randint(k_ei, (2, E), 0, N, dtype=jnp.int32)
    instruction_mask = jax.random.bernoulli(k_m, 0.5, (N,))

    throughput = riscv_granite_forward(params, x, edge_index, edge_attr,
                                       instruction_mask, task_id=0)
    jax.block_until_ready(throughput)
    print("KERNEL_OK")
</pallas_src>

<mosaic_0001>
module attributes {stable_mosaic.version = 11 : i64} {
  func.func @_fused_granite_kernel(%arg0: i32, %arg1: memref<16x32xf32, #tpu.memory_space<vmem>>, %arg2: memref<32x16xf32, #tpu.memory_space<vmem>>, %arg3: memref<32x1xi32, #tpu.memory_space<vmem>>, %arg4: memref<32x1xi32, #tpu.memory_space<vmem>>, %arg5: memref<32x128xbf16, #tpu.memory_space<vmem>>, %arg6: memref<1x128xf32, #tpu.memory_space<vmem>>, %arg7: memref<16x128xbf16, #tpu.memory_space<vmem>>, %arg8: memref<1x128xf32, #tpu.memory_space<vmem>>, %arg9: memref<1x384x128xbf16, #tpu.memory_space<vmem>>, %arg10: memref<1x1x128xf32, #tpu.memory_space<vmem>>, %arg11: memref<1x128x128xbf16, #tpu.memory_space<vmem>>, %arg12: memref<1x1x128xf32, #tpu.memory_space<vmem>>, %arg13: memref<1x1x128xf32, #tpu.memory_space<vmem>>, %arg14: memref<1x1x128xf32, #tpu.memory_space<vmem>>, %arg15: memref<1x256x128xbf16, #tpu.memory_space<vmem>>, %arg16: memref<1x1x128xf32, #tpu.memory_space<vmem>>, %arg17: memref<1x128x128xbf16, #tpu.memory_space<vmem>>, %arg18: memref<1x1x128xf32, #tpu.memory_space<vmem>>, %arg19: memref<1x1x128xf32, #tpu.memory_space<vmem>>, %arg20: memref<1x1x128xf32, #tpu.memory_space<vmem>>, %arg21: memref<128x128xbf16, #tpu.memory_space<vmem>>, %arg22: memref<1x128xf32, #tpu.memory_space<vmem>>, %arg23: memref<1x128xf32, #tpu.memory_space<vmem>>, %arg24: memref<1x128xf32, #tpu.memory_space<vmem>>, %arg25: memref<128x1xbf16, #tpu.memory_space<vmem>>, %arg26: memref<1x1xf32, #tpu.memory_space<vmem>>, %arg27: memref<16x1xf32, #tpu.memory_space<vmem>>, %arg28: memref<1x1xf32, #tpu.memory_space<vmem>>, %arg29: memref<16x128xf32, #tpu.memory_space<vmem>>, %arg30: memref<32x128xf32, #tpu.memory_space<vmem>>, %arg31: memref<32x16xbf16, #tpu.memory_space<vmem>>, %arg32: memref<32x16xbf16, #tpu.memory_space<vmem>>, %arg33: memref<32x384xbf16, #tpu.memory_space<vmem>>, %arg34: memref<16x256xbf16, #tpu.memory_space<vmem>>) attributes {dimension_semantics = [#tpu.dimension_semantics<arbitrary>], iteration_bounds = array<i64: 2>, scalar_prefetch = 0 : i64, scratch_operands = 6 : i64, tpu.core_type = #tpu.core_type<tc>, window_params = [{pipeline_mode = #tpu.pipeline_mode<synchronous>, transform_indices = @transform_0, window_bounds = array<i64: 16, 32>}, {pipeline_mode = #tpu.pipeline_mode<synchronous>, transform_indices = @transform_1, window_bounds = array<i64: 32, 16>}, {pipeline_mode = #tpu.pipeline_mode<synchronous>, transform_indices = @transform_2, window_bounds = array<i64: 32, 1>}, {pipeline_mode = #tpu.pipeline_mode<synchronous>, transform_indices = @transform_3, window_bounds = array<i64: 32, 1>}, {pipeline_mode = #tpu.pipeline_mode<synchronous>, transform_indices = @transform_4, window_bounds = array<i64: 32, 128>}, {pipeline_mode = #tpu.pipeline_mode<synchronous>, transform_indices = @transform_5, window_bounds = array<i64: 1, 128>}, {pipeline_mode = #tpu.pipeline_mode<synchronous>, transform_indices = @transform_6, window_bounds = array<i64: 16, 128>}, {pipeline_mode = #tpu.pipeline_mode<synchronous>, transform_indices = @transform_7, window_bounds = array<i64: 1, 128>}, {transform_indices = @transform_8, window_bounds = array<i64: 1, 384, 128>}, {transform_indices = @transform_9, window_bounds = array<i64: 1, 1, 128>}, {transform_indices = @transform_10, window_bounds = array<i64: 1, 128, 128>}, {transform_indices = @transform_11, window_bounds = array<i64: 1, 1, 128>}, {transform_indices = @transform_12, window_bounds = array<i64: 1, 1, 128>}, {transform_indices = @transform_13, window_bounds = array<i64: 1, 1, 128>}, {transform_indices = @transform_14, window_bounds = array<i64: 1, 256, 128>}, {transform_indices = @transform_15, window_bounds = array<i64: 1, 1, 128>}, {transform_indices = @transform_16, window_bounds = array<i64: 1, 128, 128>}, {transform_indices = @transform_17, window_bounds = array<i64: 1, 1, 128>}, {transform_indices = @transform_18, window_bounds = array<i64: 1, 1, 128>}, {transform_indices = @transform_19, window_bounds = array<i64: 1, 1, 128>}, {pipeline_mode = #tpu.pipeline_mode<synchronous>, transform_indices = @transform_20, window_bounds = array<i64: 128, 128>}, {pipeline_mode = #tpu.pipeline_mode<synchronous>, transform_indices = @transform_21, window_bounds = array<i64: 1, 128>}, {pipeline_mode = #tpu.pipeline_mode<synchronous>, transform_indices = @transform_22, window_bounds = array<i64: 1, 128>}, {pipeline_mode = #tpu.pipeline_mode<synchronous>, transform_indices = @transform_23, window_bounds = array<i64: 1, 128>}, {pipeline_mode = #tpu.pipeline_mode<synchronous>, transform_indices = @transform_24, window_bounds = array<i64: 128, 1>}, {pipeline_mode = #tpu.pipeline_mode<synchronous>, transform_indices = @transform_25, window_bounds = array<i64: 1, 1>}, {pipeline_mode = #tpu.pipeline_mode<synchronous>, transform_indices = @transform_26, window_bounds = array<i64: 16, 1>}, {pipeline_mode = #tpu.pipeline_mode<synchronous>, transform_indices = @transform_27, window_bounds = array<i64: 1, 1>}]} {
    %c0_i32 = arith.constant 0 : i32
    %0 = arith.cmpi eq, %arg0, %c0_i32 : i32
    %1 = arith.extui %0 : i1 to i32
    %c0_i32_0 = arith.constant 0 : i32
    %2 = arith.cmpi ne, %1, %c0_i32_0 : i32
    scf.if %2 {
      %c0_79 = arith.constant 0 : index
      %c0_80 = arith.constant 0 : index
      %116 = vector.load %arg1[%c0_79, %c0_80] : memref<16x32xf32, #tpu.memory_space<vmem>>, vector<16x32xf32>
      %c0_81 = arith.constant 0 : index
      %c0_82 = arith.constant 0 : index
      %117 = vector.load %arg5[%c0_81, %c0_82] : memref<32x128xbf16, #tpu.memory_space<vmem>>, vector<32x128xbf16>
      %118 = arith.truncf %116 : vector<16x32xf32> to vector<16x32xbf16>
      %cst_83 = arith.constant dense<0.000000e+00> : vector<16x128xf32>
      %119 = tpu.matmul %118, %117, %cst_83 {dimension_numbers = #tpu.dot_dimension_numbers<[1], [0], [0], [1], [0, 0, 1, 1], [], []>} : vector<16x32xbf16>, vector<32x128xbf16>, vector<16x128xf32> -> vector<16x128xf32>
      %c0_84 = arith.constant 0 : index
      %c0_85 = arith.constant 0 : index
      %120 = vector.load %arg6[%c0_84, %c0_85] : memref<1x128xf32, #tpu.memory_space<vmem>>, vector<1x128xf32>
      %121 = vector.broadcast %120 : vector<1x128xf32> to vector<16x128xf32>
      %122 = arith.addf %119, %121 : vector<16x128xf32>
      %cst_86 = arith.constant 0.000000e+00 : f32
      %123 = vector.broadcast %cst_86 : f32 to vector<16x128xf32>
      %124 = arith.maximumf %122, %123 : vector<16x128xf32>
      %c0_87 = arith.constant 0 : index
      %c0_88 = arith.constant 0 : index
      %125 = vector.load %arg29[%c0_87, %c0_88] : memref<16x128xf32, #tpu.memory_space<vmem>>, vector<16x128xf32>
      tpu.vector_store %arg29[%c0_87, %c0_88], %124 {strides = array<i32>} : memref<16x128xf32, #tpu.memory_space<vmem>>, vector<16x128xf32>,
      %c0_89 = arith.constant 0 : index
      %c0_90 = arith.constant 0 : index
      %126 = vector.load %arg2[%c0_89, %c0_90] : memref<32x16xf32, #tpu.memory_space<vmem>>, vector<32x16xf32>
      %c0_91 = arith.constant 0 : index
      %c0_92 = arith.constant 0 : index
      %127 = vector.load %arg7[%c0_91, %c0_92] : memref<16x128xbf16, #tpu.memory_space<vmem>>, vector<16x128xbf16>
      %128 = arith.truncf %126 : vector<32x16xf32> to vector<32x16xbf16>
      %cst_93 = arith.constant dense<0.000000e+00> : vector<32x128xf32>
      %129 = tpu.matmul %128, %127, %cst_93 {dimension_numbers = #tpu.dot_dimension_numbers<[1], [0], [0], [1], [0, 0, 1, 1], [], []>} : vector<32x16xbf16>, vector<16x128xbf16>, vector<32x128xf32> -> vector<32x128xf32>
      %c0_94 = arith.constant 0 : index
      %c0_95 = arith.constant 0 : index
      %130 = vector.load %arg8[%c0_94, %c0_95] : memref<1x128xf32, #tpu.memory_space<vmem>>, vector<1x128xf32>
      %131 = vector.broadcast %130 : vector<1x128xf32> to vector<32x128xf32>
      %132 = arith.addf %129, %131 : vector<32x128xf32>
      %cst_96 = arith.constant 0.000000e+00 : f32
      %133 = vector.broadcast %cst_96 : f32 to vector<32x128xf32>
      %134 = arith.maximumf %132, %133 : vector<32x128xf32>
      %c0_97 = arith.constant 0 : index
      %c0_98 = arith.constant 0 : index
      %135 = vector.load %arg30[%c0_97, %c0_98] : memref<32x128xf32, #tpu.memory_space<vmem>>, vector<32x128xf32>
      tpu.vector_store %arg30[%c0_97, %c0_98], %134 {strides = array<i32>} : memref<32x128xf32, #tpu.memory_space<vmem>>, vector<32x128xf32>,
      %136 = tpu.iota {dimensions = array<i32: 1>} : vector<32x16xi32>
      %c0_99 = arith.constant 0 : index
      %c0_100 = arith.constant 0 : index
      %137 = vector.load %arg3[%c0_99, %c0_100] : memref<32x1xi32, #tpu.memory_space<vmem>>, vector<32x1xi32>
      %138 = vector.broadcast %137 : vector<32x1xi32> to vector<32x16xi32>
      %139 = arith.cmpi eq, %136, %138 : vector<32x16xi32>
      %140 = arith.extui %139 : vector<32x16xi1> to vector<32x16xi32>
      %141 = arith.sitofp %140 : vector<32x16xi32> to vector<32x16xf32>
      %142 = arith.truncf %141 : vector<32x16xf32> to vector<32x16xbf16>
      %c0_101 = arith.constant 0 : index
      %c0_102 = arith.constant 0 : index
      %143 = vector.load %arg31[%c0_101, %c0_102] : memref<32x16xbf16, #tpu.memory_space<vmem>>, vector<32x16xbf16>
      tpu.vector_store %arg31[%c0_101, %c0_102], %142 {strides = array<i32>} : memref<32x16xbf16, #tpu.memory_space<vmem>>, vector<32x16xbf16>,
      %c0_103 = arith.constant 0 : index
      %c0_104 = arith.constant 0 : index
      %144 = vector.load %arg4[%c0_103, %c0_104] : memref<32x1xi32, #tpu.memory_space<vmem>>, vector<32x1xi32>
      %145 = vector.broadcast %144 : vector<32x1xi32> to vector<32x16xi32>
      %146 = arith.cmpi eq, %136, %145 : vector<32x16xi32>
      %147 = arith.extui %146 : vector<32x16xi1> to vector<32x16xi32>
      %148 = arith.sitofp %147 : vector<32x16xi32> to vector<32x16xf32>
      %149 = arith.truncf %148 : vector<32x16xf32> to vector<32x16xbf16>
      %c0_105 = arith.constant 0 : index
      %c0_106 = arith.constant 0 : index
      %150 = vector.load %arg32[%c0_105, %c0_106] : memref<32x16xbf16, #tpu.memory_space<vmem>>, vector<32x16xbf16>
      tpu.vector_store %arg32[%c0_105, %c0_106], %149 {strides = array<i32>} : memref<32x16xbf16, #tpu.memory_space<vmem>>, vector<32x16xbf16>,
    } else {
    }
    %c0 = arith.constant 0 : index
    %c0_1 = arith.constant 0 : index
    %3 = vector.load %arg29[%c0, %c0_1] : memref<16x128xf32, #tpu.memory_space<vmem>>, vector<16x128xf32>
    %c0_2 = arith.constant 0 : index
    %c0_3 = arith.constant 0 : index
    %4 = vector.load %arg30[%c0_2, %c0_3] : memref<32x128xf32, #tpu.memory_space<vmem>>, vector<32x128xf32>
    %5 = arith.truncf %3 : vector<16x128xf32> to vector<16x128xbf16>
    %c0_4 = arith.constant 0 : index
    %c0_5 = arith.constant 0 : index
    %6 = vector.load %arg31[%c0_4, %c0_5] : memref<32x16xbf16, #tpu.memory_space<vmem>>, vector<32x16xbf16>
    %c0_6 = arith.constant 0 : index
    %c0_7 = arith.constant 0 : index
    %7 = vector.load %arg32[%c0_6, %c0_7] : memref<32x16xbf16, #tpu.memory_space<vmem>>, vector<32x16xbf16>
    %8 = arith.truncf %4 : vector<32x128xf32> to vector<32x128xbf16>
    %c0_8 = arith.constant 0 : index
    %c0_9 = arith.constant 0 : index
    %9 = vector.load %arg33[%c0_8, %c0_9] : memref<32x384xbf16, #tpu.memory_space<vmem>>, vector<32x128xbf16>
    tpu.vector_store %arg33[%c0_8, %c0_9], %8 {strides = array<i32>} : memref<32x384xbf16, #tpu.memory_space<vmem>>, vector<32x128xbf16>,
    %cst = arith.constant dense<0.000000e+00> : vector<32x128xf32>
    %10 = tpu.matmul %6, %5, %cst {dimension_numbers = #tpu.dot_dimension_numbers<[1], [0], [0], [1], [0, 0, 1, 1], [], []>} : vector<32x16xbf16>, vector<16x128xbf16>, vector<32x128xf32> -> vector<32x128xf32>
    %11 = arith.truncf %10 : vector<32x128xf32> to vector<32x128xbf16>
    %c0_10 = arith.constant 0 : index
    %c128 = arith.constant 128 : index
    %12 = vector.load %arg33[%c0_10, %c128] : memref<32x384xbf16, #tpu.memory_space<vmem>>, vector<32x128xbf16>
    tpu.vector_store %arg33[%c0_10, %c128], %11 {strides = array<i32>} : memref<32x384xbf16, #tpu.memory_space<vmem>>, vector<32x128xbf16>,
    %cst_11 = arith.constant dense<0.000000e+00> : vector<32x128xf32>
    %13 = tpu.matmul %7, %5, %cst_11 {dimension_numbers = #tpu.dot_dimension_numbers<[1], [0], [0], [1], [0, 0, 1, 1], [], []>} : vector<32x16xbf16>, vector<16x128xbf16>, vector<32x128xf32> -> vector<32x128xf32>
    %14 = arith.truncf %13 : vector<32x128xf32> to vector<32x128xbf16>
    %c0_12 = arith.constant 0 : index
    %c256 = arith.constant 256 : index
    %15 = vector.load %arg33[%c0_12, %c256] : memref<32x384xbf16, #tpu.memory_space<vmem>>, vector<32x128xbf16>
    tpu.vector_store %arg33[%c0_12, %c256], %14 {strides = array<i32>} : memref<32x384xbf16, #tpu.memory_space<vmem>>, vector<32x128xbf16>,
    %c0_13 = arith.constant 0 : index
    %c0_14 = arith.constant 0 : index
    %16 = vector.load %arg33[%c0_13, %c0_14] : memref<32x384xbf16, #tpu.memory_space<vmem>>, vector<32x384xbf16>
    %c0_15 = arith.constant 0 : index
    %c0_16 = arith.constant 0 : index
    %c0_17 = arith.constant 0 : index
    %17 = vector.load %arg9[%c0_15, %c0_16, %c0_17] : memref<1x384x128xbf16, #tpu.memory_space<vmem>>, vector<1x384x128xbf16>
    %18 = vector.shape_cast %17 : vector<1x384x128xbf16> to vector<384x128xbf16>
    %cst_18 = arith.constant dense<0.000000e+00> : vector<32x128xf32>
    %19 = tpu.matmul %16, %18, %cst_18 {dimension_numbers = #tpu.dot_dimension_numbers<[1], [0], [0], [1], [0, 0, 1, 1], [], []>} : vector<32x384xbf16>, vector<384x128xbf16>, vector<32x128xf32> -> vector<32x128xf32>
    %c0_19 = arith.constant 0 : index
    %c0_20 = arith.constant 0 : index
    %c0_21 = arith.constant 0 : index
    %20 = vector.load %arg10[%c0_19, %c0_20, %c0_21] : memref<1x1x128xf32, #tpu.memory_space<vmem>>, vector<1x1x128xf32>
    %21 = vector.shape_cast %20 : vector<1x1x128xf32> to vector<1x128xf32>
    %22 = vector.broadcast %21 : vector<1x128xf32> to vector<32x128xf32>
    %23 = arith.addf %19, %22 : vector<32x128xf32>
    %cst_22 = arith.constant 0.000000e+00 : f32
    %24 = vector.broadcast %cst_22 : f32 to vector<32x128xf32>
    %25 = arith.maximumf %23, %24 : vector<32x128xf32>
    %c0_23 = arith.constant 0 : index
    %c0_24 = arith.constant 0 : index
    %c0_25 = arith.constant 0 : index
    %26 = vector.load %arg11[%c0_23, %c0_24, %c0_25] : memref<1x128x128xbf16, #tpu.memory_space<vmem>>, vector<1x128x128xbf16>
    %27 = vector.shape_cast %26 : vector<1x128x128xbf16> to vector<128x128xbf16>
    %28 = arith.truncf %25 : vector<32x128xf32> to vector<32x128xbf16>
    %cst_26 = arith.constant dense<0.000000e+00> : vector<32x128xf32>
    %29 = tpu.matmul %28, %27, %cst_26 {dimension_numbers = #tpu.dot_dimension_numbers<[1], [0], [0], [1], [0, 0, 1, 1], [], []>} : vector<32x128xbf16>, vector<128x128xbf16>, vector<32x128xf32> -> vector<32x128xf32>
    %30 = arith.addf %4, %29 : vector<32x128xf32>
    %c0_27 = arith.constant 0 : index
    %c0_28 = arith.constant 0 : index
    %c0_29 = arith.constant 0 : index
    %31 = vector.load %arg12[%c0_27, %c0_28, %c0_29] : memref<1x1x128xf32, #tpu.memory_space<vmem>>, vector<1x1x128xf32>
    %32 = vector.shape_cast %31 : vector<1x1x128xf32> to vector<1x128xf32>
    %33 = vector.broadcast %32 : vector<1x128xf32> to vector<32x128xf32>
    %34 = arith.addf %30, %33 : vector<32x128xf32>
    %c0_30 = arith.constant 0 : index
    %c0_31 = arith.constant 0 : index
    %c0_32 = arith.constant 0 : index
    %35 = vector.load %arg13[%c0_30, %c0_31, %c0_32] : memref<1x1x128xf32, #tpu.memory_space<vmem>>, vector<1x1x128xf32>
    %36 = vector.shape_cast %35 : vector<1x1x128xf32> to vector<1x128xf32>
    %c0_33 = arith.constant 0 : index
    %c0_34 = arith.constant 0 : index
    %c0_35 = arith.constant 0 : index
    %37 = vector.load %arg14[%c0_33, %c0_34, %c0_35] : memref<1x1x128xf32, #tpu.memory_space<vmem>>, vector<1x1x128xf32>
    %38 = vector.shape_cast %37 : vector<1x1x128xf32> to vector<1x128xf32>
    %cst_36 = arith.constant dense<0.000000e+00> : vector<32xf32>
    %39 = vector.multi_reduction <add>, %34, %cst_36 [1] : vector<32x128xf32> to vector<32xf32>
    %40 = vector.shape_cast %39 : vector<32xf32> to vector<32x1xf32>
    %cst_37 = arith.constant 1.280000e+02 : f32
    %41 = vector.broadcast %cst_37 : f32 to vector<32x1xf32>
    %42 = arith.divf %40, %41 : vector<32x1xf32>
    %43 = vector.broadcast %42 : vector<32x1xf32> to vector<32x128xf32>
    %44 = arith.subf %34, %43 : vector<32x128xf32>
    %45 = arith.mulf %44, %44 : vector<32x128xf32>
    %cst_38 = arith.constant dense<0.000000e+00> : vector<32xf32>
    %46 = vector.multi_reduction <add>, %45, %cst_38 [1] : vector<32x128xf32> to vector<32xf32>
    %47 = vector.shape_cast %46 : vector<32xf32> to vector<32x1xf32>
    %cst_39 = arith.constant 1.280000e+02 : f32
    %48 = vector.broadcast %cst_39 : f32 to vector<32x1xf32>
    %49 = arith.divf %47, %48 : vector<32x1xf32>
    %50 = vector.broadcast %42 : vector<32x1xf32> to vector<32x128xf32>
    %51 = arith.subf %34, %50 : vector<32x128xf32>
    %cst_40 = arith.constant 9.99999974E-6 : f32
    %52 = vector.broadcast %cst_40 : f32 to vector<32x1xf32>
    %53 = arith.addf %49, %52 : vector<32x1xf32>
    %54 = math.rsqrt %53 : vector<32x1xf32>
    %55 = vector.broadcast %54 : vector<32x1xf32> to vector<32x128xf32>
    %56 = arith.mulf %51, %55 : vector<32x128xf32>
    %57 = vector.broadcast %36 : vector<1x128xf32> to vector<32x128xf32>
    %58 = arith.mulf %56, %57 : vector<32x128xf32>
    %59 = vector.broadcast %38 : vector<1x128xf32> to vector<32x128xf32>
    %60 = arith.addf %58, %59 : vector<32x128xf32>
    %c0_41 = arith.constant 0 : index
    %c0_42 = arith.constant 0 : index
    %61 = vector.load %arg30[%c0_41, %c0_42] : memref<32x128xf32, #tpu.memory_space<vmem>>, vector<32x128xf32>
    tpu.vector_store %arg30[%c0_41, %c0_42], %60 {strides = array<i32>} : memref<32x128xf32, #tpu.memory_space<vmem>>, vector<32x128xf32>,
    %62 = arith.truncf %60 : vector<32x128xf32> to vector<32x128xbf16>
    %cst_43 = arith.constant dense<0.000000e+00> : vector<16x128xf32>
    %63 = tpu.matmul %7, %62, %cst_43 {dimension_numbers = #tpu.dot_dimension_numbers<[0], [0], [1], [1], [0, 1, 1, 1], [], []>} : vector<32x16xbf16>, vector<32x128xbf16>, vector<16x128xf32> -> vector<16x128xf32>
    %c0_44 = arith.constant 0 : index
    %c0_45 = arith.constant 0 : index
    %64 = vector.load %arg34[%c0_44, %c0_45] : memref<16x256xbf16, #tpu.memory_space<vmem>>, vector<16x128xbf16>
    tpu.vector_store %arg34[%c0_44, %c0_45], %5 {strides = array<i32>} : memref<16x256xbf16, #tpu.memory_space<vmem>>, vector<16x128xbf16>,
    %65 = arith.truncf %63 : vector<16x128xf32> to vector<16x128xbf16>
    %c0_46 = arith.constant 0 : index
    %c128_47 = arith.constant 128 : index
    %66 = vector.load %arg34[%c0_46, %c128_47] : memref<16x256xbf16, #tpu.memory_space<vmem>>, vector<16x128xbf16>
    tpu.vector_store %arg34[%c0_46, %c128_47], %65 {strides = array<i32>} : memref<16x256xbf16, #tpu.memory_space<vmem>>, vector<16x128xbf16>,
    %c0_48 = arith.constant 0 : index
    %c0_49 = arith.constant 0 : index
    %67 = vector.load %arg34[%c0_48, %c0_49] : memref<16x256xbf16, #tpu.memory_space<vmem>>, vector<16x256xbf16>
    %c0_50 = arith.constant 0 : index
    %c0_51 = arith.constant 0 : index
    %c0_52 = arith.constant 0 : index
    %68 = vector.load %arg15[%c0_50, %c0_51, %c0_52] : memref<1x256x128xbf16, #tpu.memory_space<vmem>>, vector<1x256x128xbf16>
    %69 = vector.shape_cast %68 : vector<1x256x128xbf16> to vector<256x128xbf16>
    %cst_53 = arith.constant dense<0.000000e+00> : vector<16x128xf32>
    %70 = tpu.matmul %67, %69, %cst_53 {dimension_numbers = #tpu.dot_dimension_numbers<[1], [0], [0], [1], [0, 0, 1, 1], [], []>} : vector<16x256xbf16>, vector<256x128xbf16>, vector<16x128xf32> -> vector<16x128xf32>
    %c0_54 = arith.constant 0 : index
    %c0_55 = arith.constant 0 : index
    %c0_56 = arith.constant 0 : index
    %71 = vector.load %arg16[%c0_54, %c0_55, %c0_56] : memref<1x1x128xf32, #tpu.memory_space<vmem>>, vector<1x1x128xf32>
    %72 = vector.shape_cast %71 : vector<1x1x128xf32> to vector<1x128xf32>
    %73 = vector.broadcast %72 : vector<1x128xf32> to vector<16x128xf32>
    %74 = arith.addf %70, %73 : vector<16x128xf32>
    %cst_57 = arith.constant 0.000000e+00 : f32
    %75 = vector.broadcast %cst_57 : f32 to vector<16x128xf32>
    %76 = arith.maximumf %74, %75 : vector<16x128xf32>
    %c0_58 = arith.constant 0 : index
    %c0_59 = arith.constant 0 : index
    %c0_60 = arith.constant 0 : index
    %77 = vector.load %arg17[%c0_58, %c0_59, %c0_60] : memref<1x128x128xbf16, #tpu.memory_space<vmem>>, vector<1x128x128xbf16>
    %78 = vector.shape_cast %77 : vector<1x128x128xbf16> to vector<128x128xbf16>
    %79 = arith.truncf %76 : vector<16x128xf32> to vector<16x128xbf16>
    %cst_61 = arith.constant dense<0.000000e+00> : vector<16x128xf32>
    %80 = tpu.matmul %79, %78, %cst_61 {dimension_numbers = #tpu.dot_dimension_numbers<[1], [0], [0], [1], [0, 0, 1, 1], [], []>} : vector<16x128xbf16>, vector<128x128xbf16>, vector<16x128xf32> -> vector<16x128xf32>
    %81 = arith.addf %3, %80 : vector<16x128xf32>
    %c0_62 = arith.constant 0 : index
    %c0_63 = arith.constant 0 : index
    %c0_64 = arith.constant 0 : index
    %82 = vector.load %arg18[%c0_62, %c0_63, %c0_64] : memref<1x1x128xf32, #tpu.memory_space<vmem>>, vector<1x1x128xf32>
    %83 = vector.shape_cast %82 : vector<1x1x128xf32> to vector<1x128xf32>
    %84 = vector.broadcast %83 : vector<1x128xf32> to vector<16x128xf32>
    %85 = arith.addf %81, %84 : vector<16x128xf32>
    %c0_65 = arith.constant 0 : index
    %c0_66 = arith.constant 0 : index
    %c0_67 = arith.constant 0 : index
    %86 = vector.load %arg19[%c0_65, %c0_66, %c0_67] : memref<1x1x128xf32, #tpu.memory_space<vmem>>, vector<1x1x128xf32>
    %87 = vector.shape_cast %86 : vector<1x1x128xf32> to vector<1x128xf32>
    %c0_68 = arith.constant 0 : index
    %c0_69 = arith.constant 0 : index
    %c0_70 = arith.constant 0 : index
    %88 = vector.load %arg20[%c0_68, %c0_69, %c0_70] : memref<1x1x128xf32, #tpu.memory_space<vmem>>, vector<1x1x128xf32>
    %89 = vector.shape_cast %88 : vector<1x1x128xf32> to vector<1x128xf32>
    %cst_71 = arith.constant dense<0.000000e+00> : vector<16xf32>
    %90 = vector.multi_reduction <add>, %85, %cst_71 [1] : vector<16x128xf32> to vector<16xf32>
    %91 = vector.shape_cast %90 : vector<16xf32> to vector<16x1xf32>
    %cst_72 = arith.constant 1.280000e+02 : f32
    %92 = vector.broadcast %cst_72 : f32 to vector<16x1xf32>
    %93 = arith.divf %91, %92 : vector<16x1xf32>
    %94 = vector.broadcast %93 : vector<16x1xf32> to vector<16x128xf32>
    %95 = arith.subf %85, %94 : vector<16x128xf32>
    %96 = arith.mulf %95, %95 : vector<16x128xf32>
    %cst_73 = arith.constant dense<0.000000e+00> : vector<16xf32>
    %97 = vector.multi_reduction <add>, %96, %cst_73 [1] : vector<16x128xf32> to vector<16xf32>
    %98 = vector.shape_cast %97 : vector<16xf32> to vector<16x1xf32>
    %cst_74 = arith.constant 1.280000e+02 : f32
    %99 = vector.broadcast %cst_74 : f32 to vector<16x1xf32>
    %100 = arith.divf %98, %99 : vector<16x1xf32>
    %101 = vector.broadcast %93 : vector<16x1xf32> to vector<16x128xf32>
    %102 = arith.subf %85, %101 : vector<16x128xf32>
    %cst_75 = arith.constant 9.99999974E-6 : f32
    %103 = vector.broadcast %cst_75 : f32 to vector<16x1xf32>
    %104 = arith.addf %100, %103 : vector<16x1xf32>
    %105 = math.rsqrt %104 : vector<16x1xf32>
    %106 = vector.broadcast %105 : vector<16x1xf32> to vector<16x128xf32>
    %107 = arith.mulf %102, %106 : vector<16x128xf32>
    %108 = vector.broadcast %87 : vector<1x128xf32> to vector<16x128xf32>
    %109 = arith.mulf %107, %108 : vector<16x128xf32>
    %110 = vector.broadcast %89 : vector<1x128xf32> to vector<16x128xf32>
    %111 = arith.addf %109, %110 : vector<16x128xf32>
    %c0_76 = arith.constant 0 : index
    %c0_77 = arith.constant 0 : index
    %112 = vector.load %arg29[%c0_76, %c0_77] : memref<16x128xf32, #tpu.memory_space<vmem>>, vector<16x128xf32>
    tpu.vector_store %arg29[%c0_76, %c0_77], %111 {strides = array<i32>} : memref<16x128xf32, #tpu.memory_space<vmem>>, vector<16x128xf32>,
    %c1_i32 = arith.constant 1 : i32
    %113 = arith.cmpi eq, %arg0, %c1_i32 : i32
    %114 = arith.extui %113 : i1 to i32
    %c0_i32_78 = arith.constant 0 : i32
    %115 = arith.cmpi ne, %114, %c0_i32_78 : i32
    scf.if %115 {
      %c0_79 = arith.constant 0 : index
      %c0_80 = arith.constant 0 : index
      %116 = vector.load %arg29[%c0_79, %c0_80] : memref<16x128xf32, #tpu.memory_space<vmem>>, vector<16x128xf32>
      %c0_81 = arith.constant 0 : index
      %c0_82 = arith.constant 0 : index
      %117 = vector.load %arg21[%c0_81, %c0_82] : memref<128x128xbf16, #tpu.memory_space<vmem>>, vector<128x128xbf16>
      %118 = arith.truncf %116 : vector<16x128xf32> to vector<16x128xbf16>
      %cst_83 = arith.constant dense<0.000000e+00> : vector<16x128xf32>
      %119 = tpu.matmul %118, %117, %cst_83 {dimension_numbers = #tpu.dot_dimension_numbers<[1], [0], [0], [1], [0, 0, 1, 1], [], []>} : vector<16x128xbf16>, vector<128x128xbf16>, vector<16x128xf32> -> vector<16x128xf32>
      %c0_84 = arith.constant 0 : index
      %c0_85 = arith.constant 0 : index
      %120 = vector.load %arg22[%c0_84, %c0_85] : memref<1x128xf32, #tpu.memory_space<vmem>>, vector<1x128xf32>
      %121 = vector.broadcast %120 : vector<1x128xf32> to vector<16x128xf32>
      %122 = arith.addf %119, %121 : vector<16x128xf32>
      %cst_86 = arith.constant 0.000000e+00 : f32
      %123 = vector.broadcast %cst_86 : f32 to vector<16x128xf32>
      %124 = arith.maximumf %122, %123 : vector<16x128xf32>
      %c0_87 = arith.constant 0 : index
      %c0_88 = arith.constant 0 : index
      %125 = vector.load %arg23[%c0_87, %c0_88] : memref<1x128xf32, #tpu.memory_space<vmem>>, vector<1x128xf32>
      %c0_89 = arith.constant 0 : index
      %c0_90 = arith.constant 0 : index
      %126 = vector.load %arg24[%c0_89, %c0_90] : memref<1x128xf32, #tpu.memory_space<vmem>>, vector<1x128xf32>
      %cst_91 = arith.constant dense<0.000000e+00> : vector<16xf32>
      %127 = vector.multi_reduction <add>, %124, %cst_91 [1] : vector<16x128xf32> to vector<16xf32>
      %128 = vector.shape_cast %127 : vector<16xf32> to vector<16x1xf32>
      %cst_92 = arith.constant 1.280000e+02 : f32
      %129 = vector.broadcast %cst_92 : f32 to vector<16x1xf32>
      %130 = arith.divf %128, %129 : vector<16x1xf32>
      %131 = vector.broadcast %130 : vector<16x1xf32> to vector<16x128xf32>
      %132 = arith.subf %124, %131 : vector<16x128xf32>
      %133 = arith.mulf %132, %132 : vector<16x128xf32>
      %cst_93 = arith.constant dense<0.000000e+00> : vector<16xf32>
      %134 = vector.multi_reduction <add>, %133, %cst_93 [1] : vector<16x128xf32> to vector<16xf32>
      %135 = vector.shape_cast %134 : vector<16xf32> to vector<16x1xf32>
      %cst_94 = arith.constant 1.280000e+02 : f32
      %136 = vector.broadcast %cst_94 : f32 to vector<16x1xf32>
      %137 = arith.divf %135, %136 : vector<16x1xf32>
      %138 = vector.broadcast %130 : vector<16x1xf32> to vector<16x128xf32>
      %139 = arith.subf %124, %138 : vector<16x128xf32>
      %cst_95 = arith.constant 9.99999974E-6 : f32
      %140 = vector.broadcast %cst_95 : f32 to vector<16x1xf32>
      %141 = arith.addf %137, %140 : vector<16x1xf32>
      %142 = math.rsqrt %141 : vector<16x1xf32>
      %143 = vector.broadcast %142 : vector<16x1xf32> to vector<16x128xf32>
      %144 = arith.mulf %139, %143 : vector<16x128xf32>
      %145 = vector.broadcast %125 : vector<1x128xf32> to vector<16x128xf32>
      %146 = arith.mulf %144, %145 : vector<16x128xf32>
      %147 = vector.broadcast %126 : vector<1x128xf32> to vector<16x128xf32>
      %148 = arith.addf %146, %147 : vector<16x128xf32>
      %c0_96 = arith.constant 0 : index
      %c0_97 = arith.constant 0 : index
      %149 = vector.load %arg27[%c0_96, %c0_97] : memref<16x1xf32, #tpu.memory_space<vmem>>, vector<16x1xf32>
      %150 = arith.truncf %149 : vector<16x1xf32> to vector<16x1xbf16>
      %151 = arith.truncf %148 : vector<16x128xf32> to vector<16x128xbf16>
      %cst_98 = arith.constant dense<0.000000e+00> : vector<1x128xf32>
      %152 = tpu.matmul %150, %151, %cst_98 {dimension_numbers = #tpu.dot_dimension_numbers<[0], [0], [1], [1], [0, 1, 1, 1], [], []>} : vector<16x1xbf16>, vector<16x128xbf16>, vector<1x128xf32> -> vector<1x128xf32>
      %153 = vector.shape_cast %149 : vector<16x1xf32> to vector<1x16x1xf32>
      %cst_99 = arith.constant dense<0.000000e+00> : vector<1xf32>
      %154 = vector.multi_reduction <add>, %153, %cst_99 [1, 2] : vector<1x16x1xf32> to vector<1xf32>
      %155 = vector.shape_cast %154 : vector<1xf32> to vector<1x1x1xf32>
      %156 = vector.extract %155[0, 0, 0] : f32 from vector<1x1x1xf32>
      %157 = vector.broadcast %156 : f32 to vector<1x1xf32>
      %c0_100 = arith.constant 0 : index
      %c0_101 = arith.constant 0 : index
      %158 = vector.load %arg25[%c0_100, %c0_101] : memref<128x1xbf16, #tpu.memory_space<vmem>>, vector<128x1xbf16>
      %159 = arith.truncf %152 : vector<1x128xf32> to vector<1x128xbf16>
      %cst_102 = arith.constant dense<0.000000e+00> : vector<1x1xf32>
      %160 = tpu.matmul %159, %158, %cst_102 {dimension_numbers = #tpu.dot_dimension_numbers<[1], [0], [0], [1], [0, 0, 1, 1], [], []>} : vector<1x128xbf16>, vector<128x1xbf16>, vector<1x1xf32> -> vector<1x1xf32>
      %c0_103 = arith.constant 0 : index
      %c0_104 = arith.constant 0 : index
      %161 = vector.load %arg26[%c0_103, %c0_104] : memref<1x1xf32, #tpu.memory_space<vmem>>, vector<1x1xf32>
      %162 = arith.mulf %157, %161 : vector<1x1xf32>
      %163 = arith.addf %160, %162 : vector<1x1xf32>
      %c0_105 = arith.constant 0 : index
      %c0_106 = arith.constant 0 : index
      %164 = vector.load %arg28[%c0_105, %c0_106] : memref<1x1xf32, #tpu.memory_space<vmem>>, vector<1x1xf32>
      tpu.vector_store %arg28[%c0_105, %c0_106], %163 {strides = array<i32>} : memref<1x1xf32, #tpu.memory_space<vmem>>, vector<1x1xf32>,
    } else {
    }
    return
  }
  func.func @transform_0(%arg0: i32) -> (i32, i32) {
    %c0_i32 = arith.constant 0 : i32
    %c0_i32_0 = arith.constant 0 : i32
    %c0_i32_1 = arith.constant 0 : i32
    return %c0_i32, %c0_i32_0 : i32, i32
  }
  func.func @transform_1(%arg0: i32) -> (i32, i32) {
    %c0_i32 = arith.constant 0 : i32
    %c0_i32_0 = arith.constant 0 : i32
    %c0_i32_1 = arith.constant 0 : i32
    return %c0_i32, %c0_i32_0 : i32, i32
  }
  func.func @transform_2(%arg0: i32) -> (i32, i32) {
    %c0_i32 = arith.constant 0 : i32
    %c0_i32_0 = arith.constant 0 : i32
    %c0_i32_1 = arith.constant 0 : i32
    return %c0_i32, %c0_i32_0 : i32, i32
  }
  func.func @transform_3(%arg0: i32) -> (i32, i32) {
    %c0_i32 = arith.constant 0 : i32
    %c0_i32_0 = arith.constant 0 : i32
    %c0_i32_1 = arith.constant 0 : i32
    return %c0_i32, %c0_i32_0 : i32, i32
  }
  func.func @transform_4(%arg0: i32) -> (i32, i32) {
    %c0_i32 = arith.constant 0 : i32
    %c0_i32_0 = arith.constant 0 : i32
    %c0_i32_1 = arith.constant 0 : i32
    return %c0_i32, %c0_i32_0 : i32, i32
  }
  func.func @transform_5(%arg0: i32) -> (i32, i32) {
    %c0_i32 = arith.constant 0 : i32
    %c0_i32_0 = arith.constant 0 : i32
    %c0_i32_1 = arith.constant 0 : i32
    return %c0_i32, %c0_i32_0 : i32, i32
  }
  func.func @transform_6(%arg0: i32) -> (i32, i32) {
    %c0_i32 = arith.constant 0 : i32
    %c0_i32_0 = arith.constant 0 : i32
    %c0_i32_1 = arith.constant 0 : i32
    return %c0_i32, %c0_i32_0 : i32, i32
  }
  func.func @transform_7(%arg0: i32) -> (i32, i32) {
    %c0_i32 = arith.constant 0 : i32
    %c0_i32_0 = arith.constant 0 : i32
    %c0_i32_1 = arith.constant 0 : i32
    return %c0_i32, %c0_i32_0 : i32, i32
  }
  func.func @transform_8(%arg0: i32) -> (i32, i32, i32) {
    %c0_i32 = arith.constant 0 : i32
    %c0_i32_0 = arith.constant 0 : i32
    %c0_i32_1 = arith.constant 0 : i32
    return %arg0, %c0_i32, %c0_i32_0 : i32, i32, i32
  }
  func.func @transform_9(%arg0: i32) -> (i32, i32, i32) {
    %c0_i32 = arith.constant 0 : i32
    %c0_i32_0 = arith.constant 0 : i32
    %c0_i32_1 = arith.constant 0 : i32
    return %arg0, %c0_i32, %c0_i32_0 : i32, i32, i32
  }
  func.func @transform_10(%arg0: i32) -> (i32, i32, i32) {
    %c0_i32 = arith.constant 0 : i32
    %c0_i32_0 = arith.constant 0 : i32
    %c0_i32_1 = arith.constant 0 : i32
    return %arg0, %c0_i32, %c0_i32_0 : i32, i32, i32
  }
  func.func @transform_11(%arg0: i32) -> (i32, i32, i32) {
    %c0_i32 = arith.constant 0 : i32
    %c0_i32_0 = arith.constant 0 : i32
    %c0_i32_1 = arith.constant 0 : i32
    return %arg0, %c0_i32, %c0_i32_0 : i32, i32, i32
  }
  func.func @transform_12(%arg0: i32) -> (i32, i32, i32) {
    %c0_i32 = arith.constant 0 : i32
    %c0_i32_0 = arith.constant 0 : i32
    %c0_i32_1 = arith.constant 0 : i32
    return %arg0, %c0_i32, %c0_i32_0 : i32, i32, i32
  }
  func.func @transform_13(%arg0: i32) -> (i32, i32, i32) {
    %c0_i32 = arith.constant 0 : i32
    %c0_i32_0 = arith.constant 0 : i32
    %c0_i32_1 = arith.constant 0 : i32
    return %arg0, %c0_i32, %c0_i32_0 : i32, i32, i32
  }
  func.func @transform_14(%arg0: i32) -> (i32, i32, i32) {
    %c0_i32 = arith.constant 0 : i32
    %c0_i32_0 = arith.constant 0 : i32
    %c0_i32_1 = arith.constant 0 : i32
    return %arg0, %c0_i32, %c0_i32_0 : i32, i32, i32
  }
  func.func @transform_15(%arg0: i32) -> (i32, i32, i32) {
    %c0_i32 = arith.constant 0 : i32
    %c0_i32_0 = arith.constant 0 : i32
    %c0_i32_1 = arith.constant 0 : i32
    return %arg0, %c0_i32, %c0_i32_0 : i32, i32, i32
  }
  func.func @transform_16(%arg0: i32) -> (i32, i32, i32) {
    %c0_i32 = arith.constant 0 : i32
    %c0_i32_0 = arith.constant 0 : i32
    %c0_i32_1 = arith.constant 0 : i32
    return %arg0, %c0_i32, %c0_i32_0 : i32, i32, i32
  }
  func.func @transform_17(%arg0: i32) -> (i32, i32, i32) {
    %c0_i32 = arith.constant 0 : i32
    %c0_i32_0 = arith.constant 0 : i32
    %c0_i32_1 = arith.constant 0 : i32
    return %arg0, %c0_i32, %c0_i32_0 : i32, i32, i32
  }
  func.func @transform_18(%arg0: i32) -> (i32, i32, i32) {
    %c0_i32 = arith.constant 0 : i32
    %c0_i32_0 = arith.constant 0 : i32
    %c0_i32_1 = arith.constant 0 : i32
    return %arg0, %c0_i32, %c0_i32_0 : i32, i32, i32
  }
  func.func @transform_19(%arg0: i32) -> (i32, i32, i32) {
    %c0_i32 = arith.constant 0 : i32
    %c0_i32_0 = arith.constant 0 : i32
    %c0_i32_1 = arith.constant 0 : i32
    return %arg0, %c0_i32, %c0_i32_0 : i32, i32, i32
  }
  func.func @transform_20(%arg0: i32) -> (i32, i32) {
    %c0_i32 = arith.constant 0 : i32
    %c0_i32_0 = arith.constant 0 : i32
    %c0_i32_1 = arith.constant 0 : i32
    return %c0_i32, %c0_i32_0 : i32, i32
  }
  func.func @transform_21(%arg0: i32) -> (i32, i32) {
    %c0_i32 = arith.constant 0 : i32
    %c0_i32_0 = arith.constant 0 : i32
    %c0_i32_1 = arith.constant 0 : i32
    return %c0_i32, %c0_i32_0 : i32, i32
  }
  func.func @transform_22(%arg0: i32) -> (i32, i32) {
    %c0_i32 = arith.constant 0 : i32
    %c0_i32_0 = arith.constant 0 : i32
    %c0_i32_1 = arith.constant 0 : i32
    return %c0_i32, %c0_i32_0 : i32, i32
  }
  func.func @transform_23(%arg0: i32) -> (i32, i32) {
    %c0_i32 = arith.constant 0 : i32
    %c0_i32_0 = arith.constant 0 : i32
    %c0_i32_1 = arith.constant 0 : i32
    return %c0_i32, %c0_i32_0 : i32, i32
  }
  func.func @transform_24(%arg0: i32) -> (i32, i32) {
    %c0_i32 = arith.constant 0 : i32
    %c0_i32_0 = arith.constant 0 : i32
    %c0_i32_1 = arith.constant 0 : i32
    return %c0_i32, %c0_i32_0 : i32, i32
  }
  func.func @transform_25(%arg0: i32) -> (i32, i32) {
    %c0_i32 = arith.constant 0 : i32
    %c0_i32_0 = arith.constant 0 : i32
    %c0_i32_1 = arith.constant 0 : i32
    return %c0_i32, %c0_i32_0 : i32, i32
  }
  func.func @transform_26(%arg0: i32) -> (i32, i32) {
    %c0_i32 = arith.constant 0 : i32
    %c0_i32_0 = arith.constant 0 : i32
    %c0_i32_1 = arith.constant 0 : i32
    return %c0_i32, %c0_i32_0 : i32, i32
  }
  func.func @transform_27(%arg0: i32) -> (i32, i32) {
    %c0_i32 = arith.constant 0 : i32
    %c0_i32_0 = arith.constant 0 : i32
    %c0_i32_1 = arith.constant 0 : i32
    return %c0_i32, %c0_i32_0 : i32, i32
  }
}

</mosaic_0001>

<llo_original>
// kernel: tpu_custom_call.1
$region0: #{tpu_custom_call.1}
  #allocation0 [shape = 'u32[]', space=smem, size = 0x4, offset = 0x4, fixed_abs, tag = 'smem constant byte address 0x4 - core index']
  #allocation1 [shape = 'u32[72,128]{1,0:T(1,128)}', space=vmem, size = 0x9000, scoped, tag = 'internal scratch']
  #allocation2 [shape = 'f32[16,128]{1,0:T(8,128)}', space=vmem, size = 0x2000, scoped, tag = 'scratch operand']
  #allocation3 [shape = 'f32[32,128]{1,0:T(8,128)}', space=vmem, size = 0x4000, scoped, tag = 'scratch operand']
  #allocation4 [shape = 'bf16[32,16]{1,0:T(8,128)(2,1)}', space=vmem, size = 0x2000, scoped, tag = 'scratch operand']
  #allocation5 [shape = 'bf16[32,16]{1,0:T(8,128)(2,1)}', space=vmem, size = 0x2000, scoped, tag = 'scratch operand']
  #allocation6 [shape = 'bf16[32,384]{1,0:T(8,128)(2,1)}', space=vmem, size = 0x6000, scoped, tag = 'scratch operand']
  #allocation7 [shape = 'bf16[16,256]{1,0:T(8,128)(2,1)}', space=vmem, size = 0x2000, scoped, tag = 'scratch operand']
  #allocation8 [shape = 'f32[1,1]{1,0:T(1,128)S(1)}', space=vmem, size = 0x200, scoped, tag = 'scoped memory for tpu_custom_call.1']
  %s0 = inlined_call_operand.vmem [shape: f32[16,32], index: 0, kind: input, shape index: {}]
  %s1 = inlined_call_operand.vmem [shape: f32[32,16], index: 1, kind: input, shape index: {}]
  %s2 = inlined_call_operand.vmem [shape: s32[32,1], index: 2, kind: input, shape index: {}]
  %s3 = inlined_call_operand.vmem [shape: s32[32,1], index: 3, kind: input, shape index: {}]
  %s4 = inlined_call_operand.vmem [shape: bf16[32,128], index: 4, kind: input, shape index: {}]
  %s5 = inlined_call_operand.vmem [shape: f32[1,128], index: 5, kind: input, shape index: {}]
  %s6 = inlined_call_operand.vmem [shape: bf16[16,128], index: 6, kind: input, shape index: {}]
  %s7 = inlined_call_operand.vmem [shape: f32[1,128], index: 7, kind: input, shape index: {}]
  %s8 = inlined_call_operand.hbm [shape: bf16[2,384,128], index: 8, kind: input, shape index: {}]
  %s9 = inlined_call_operand.vmem [shape: f32[2,1,128], index: 9, kind: input, shape index: {}]
  %s10 = inlined_call_operand.hbm [shape: bf16[2,128,128], index: 10, kind: input, shape index: {}]
  %s11 = inlined_call_operand.vmem [shape: f32[2,1,128], index: 11, kind: input, shape index: {}]
  %s12 = inlined_call_operand.vmem [shape: f32[2,1,128], index: 12, kind: input, shape index: {}]
  %s13 = inlined_call_operand.vmem [shape: f32[2,1,128], index: 13, kind: input, shape index: {}]
  %s14 = inlined_call_operand.hbm [shape: bf16[2,256,128], index: 14, kind: input, shape index: {}]
  %s15 = inlined_call_operand.vmem [shape: f32[2,1,128], index: 15, kind: input, shape index: {}]
  %s16 = inlined_call_operand.hbm [shape: bf16[2,128,128], index: 16, kind: input, shape index: {}]
  %s17 = inlined_call_operand.vmem [shape: f32[2,1,128], index: 17, kind: input, shape index: {}]
  %s18 = inlined_call_operand.vmem [shape: f32[2,1,128], index: 18, kind: input, shape index: {}]
  %s19 = inlined_call_operand.vmem [shape: f32[2,1,128], index: 19, kind: input, shape index: {}]
  %s20 = inlined_call_operand.vmem [shape: bf16[128,128], index: 20, kind: input, shape index: {}]
  %s21 = inlined_call_operand.vmem [shape: f32[1,128], index: 21, kind: input, shape index: {}]
  %s22 = inlined_call_operand.vmem [shape: f32[1,128], index: 22, kind: input, shape index: {}]
  %s23 = inlined_call_operand.vmem [shape: f32[1,128], index: 23, kind: input, shape index: {}]
  %s24 = inlined_call_operand.vmem [shape: bf16[128,1], index: 24, kind: input, shape index: {}]
  %s25 = inlined_call_operand.<no memory space> [shape: f32[1,1], index: 25, kind: input, shape index: {}]
  %s26 = inlined_call_operand.vmem [shape: f32[16,1], index: 26, kind: input, shape index: {}]
  %s27 = inlined_call_operand.hbm [shape: f32[1,1], index: 27, kind: output, shape index: {}]
  %s28 = sld [smem:[#allocation0]]
  $region165: #{tpu_custom_call.1} parent=0
    _
  %s30 = ssub.s32 1, %s28
  %s31 = scalar_select 0, %s30, %s28
  %v32 = vstv %s25
  %33 = vst [vmem:[#allocation8] sm:$0x1] %v32
  $region1: #{tpu_custom_call.1} parent=0
    #allocation9 [shape = 'u8[196608]{0}', space=vmem, size = 0x30000, scoped, tag = 'input window, operand 8']
    #allocation10 [shape = 's32[2]{0}', space=sflag, size = 0x8, scoped, tag = 'scoped memory for tpu_custom_call.1']
    #allocation11 [shape = 's32[2]{0}', space=sflag, size = 0x8, scoped, tag = 'scoped memory for tpu_custom_call.1']
    #allocation12 [shape = 'u8[65536]{0}', space=vmem, size = 0x10000, scoped, tag = 'input window, operand 10']
    #allocation13 [shape = 's32[2]{0}', space=sflag, size = 0x8, scoped, tag = 'scoped memory for tpu_custom_call.1']
    #allocation14 [shape = 'u8[131072]{0}', space=vmem, size = 0x20000, scoped, tag = 'input window, operand 14']
    #allocation15 [shape = 'u8[65536]{0}', space=vmem, size = 0x10000, scoped, tag = 'input window, operand 16']
    #allocation16 [shape = 's32[2]{0}', space=sflag, size = 0x8, scoped, tag = 'scoped memory for tpu_custom_call.1']
    #allocation17 [shape = 'u8[512]{0}', space=vmem, size = 0x400, scoped, tag = 'output window, operand 0, single buffered']
    %34 = vsyncpa [#allocation10], 0
    %s35 = scalar_lea.sflag [#allocation10], 1
    %36 = vsyncpa %s35, 0
    %37 = vsyncpa [#allocation13], 0
    %s38 = scalar_lea.sflag [#allocation13], 1
    %39 = vsyncpa %s38, 0
    %40 = vsyncpa [#allocation16], 0
    %s41 = scalar_lea.sflag [#allocation16], 1
    %42 = vsyncpa %s41, 0
    %43 = vsyncpa [#allocation11], 0
    loop: start=0, step=1, limit=4
    $region2: #{tpu_custom_call.1} parent=1 // loop_pre_header
      _
    $region3: #{tpu_custom_call.1} parent=1 // loop_header
      %s45 = sphi 0, %s49
      %p46 = scmp.ge.s32.totalorder %s45, 4
      %s53 = sphi 0, %s53
      %s55 = sphi 0, %s53
      %s56 = sphi 0, %s55
      %s70 = sphi 0, %s56
      %s74 = sphi 0, %s74
      %s76 = sphi 0, %s74
      %s77 = sphi 0, %s76
      %s91 = sphi 0, %s77
      %s95 = sphi 0, %s95
      %s97 = sphi 0, %s95
      %s98 = sphi 0, %s97
      %s112 = sphi 0, %s98
      %s116 = sphi 0, %s116
      %s118 = sphi 0, %s116
      %s119 = sphi 0, %s118
      %s133 = sphi 0, %s119
      %s137 = sphi 0, %s137
      %s139 = sphi 0, %s137
      %s140 = sphi 0, %s139
      %s154 = sphi 0, %s140
      %s158 = sphi 0, %s158
      %s160 = sphi 0, %s158
      %s161 = sphi 0, %s160
      %s175 = sphi 0, %s161
      %s179 = sphi 0, %s179
      %s181 = sphi 0, %s179
      %s182 = sphi 0, %s181
      %s196 = sphi 0, %s182
      %s200 = sphi 0, %s200
      %s202 = sphi 0, %s200
      %s203 = sphi 0, %s202
      %s217 = sphi 0, %s203
      %s223 = sphi 0, %s225
      %s226 = sphi 0, %s223
      %s227 = sphi 0, %s226
      %s243 = sphi 0, %s227
      %s249 = sphi 0, %s251
      %s252 = sphi 0, %s249
      %s253 = sphi 0, %s252
      %s269 = sphi 0, %s253
      %s275 = sphi 0, %s277
      %s278 = sphi 0, %s275
      %s279 = sphi 0, %s278
      %s295 = sphi 0, %s279
      %s301 = sphi 0, %s303
      %s304 = sphi 0, %s301
      %s305 = sphi 0, %s304
      %s321 = sphi 0, %s305
      %s327 = sphi 0, %s329
      %s330 = sphi 0, %s327
      %s331 = sphi 0, %s330
      %s347 = sphi 0, %s331
      %s353 = sphi 0, %s355
      %s356 = sphi 0, %s353
      %s357 = sphi 0, %s356
      %s373 = sphi 0, %s357
      %s379 = sphi 0, %s381
      %s382 = sphi 0, %s379
      %s383 = sphi 0, %s382
      %s399 = sphi 0, %s383
      %s405 = sphi 0, %s407
      %s408 = sphi 0, %s405
      %s409 = sphi 0, %s408
      %s425 = sphi 0, %s409
      %s431 = sphi 0, %s433
      %s434 = sphi 0, %s431
      %s435 = sphi 0, %s434
      %s451 = sphi 0, %s435
      %s457 = sphi 0, %s459
      %s460 = sphi 0, %s457
      %s461 = sphi 0, %s460
      %s477 = sphi 0, %s461
      %s483 = sphi 0, %s485
      %s486 = sphi 0, %s483
      %s487 = sphi 0, %s486
      %s503 = sphi 0, %s487
      %s509 = sphi 0, %s511
      %s512 = sphi 0, %s509
      %s513 = sphi 0, %s512
      %s529 = sphi 0, %s513
      %s533 = sphi 0, %s533
      %s535 = sphi 0, %s533
      %s536 = sphi 0, %s535
      %s550 = sphi 0, %s536
      %s554 = sphi 0, %s554
      %s556 = sphi 0, %s554
      %s557 = sphi 0, %s556
      %s571 = sphi 0, %s557
      %s575 = sphi 0, %s575
      %s577 = sphi 0, %s575
      %s578 = sphi 0, %s577
      %s592 = sphi 0, %s578
      %s596 = sphi 0, %s596
      %s598 = sphi 0, %s596
      %s599 = sphi 0, %s598
      %s613 = sphi 0, %s599
      %s617 = sphi 0, %s617
      %s619 = sphi 0, %s617
      %s620 = sphi 0, %s619
      %s634 = sphi 0, %s620
      %s638 = sphi 0, %s638
      %s640 = sphi 0, %s638
      %s641 = sphi 0, %s640
      %s655 = sphi 0, %s641
      %s659 = sphi 0, %s659
      %s661 = sphi 0, %s659
      %s662 = sphi 0, %s661
      %s676 = sphi 0, %s662
      %s680 = sphi 0, %s680
      %s682 = sphi 0, %s680
      %s683 = sphi 0, %s682
      %s697 = sphi 0, %s683
    $region4: #{tpu_custom_call.1} parent=1 // loop_header_branch
      %48 = sbr.rel (%p46) target = $region8
    $region5: #{tpu_custom_call.1} parent=1 // loop_body
      %s50 = ssub.s32 %s45, 1
      %s51 = ssub.s32 %s45, 2
      %s52 = sadd.s32 %s45, 1
      %s54 = sadd.s32 %s53, 1
      %p57 = scmp.eq.s32.totalorder %s45, 1
      %p58 = scmp.ne.s32.totalorder %s53, %s55
      %p59 = scmp.eq.s32.totalorder %s45, 0
      %p60 = por %p58, %p59
      %p61 = scmp.ne.s32.totalorder %s53, %s55
      %p62 = scmp.eq.s32.totalorder %s50, 1
      %p63 = por %p61, %p62
      %p64 = scmp.ne.s32.totalorder %s55, %s56
      %p65 = scmp.eq.s32.totalorder %s50, 0
      %p66 = por %p64, %p65
      %p67 = scmp.ne.s32.totalorder %s55, %s56
      %p68 = scmp.eq.s32.totalorder %s51, 1
      %p69 = por %p67, %p68
      %p71 = scmp.ne.s32.totalorder %s56, %s70
      %p72 = scmp.eq.s32.totalorder %s51, 0
      %p73 = por %p71, %p72
      %s75 = sadd.s32 %s74, 1
      %p78 = scmp.eq.s32.totalorder %s45, 1
      %p79 = scmp.ne.s32.totalorder %s74, %s76
      %p80 = scmp.eq.s32.totalorder %s45, 0
      %p81 = por %p79, %p80
      %p82 = scmp.ne.s32.totalorder %s74, %s76
      %p83 = scmp.eq.s32.totalorder %s50, 1
      %p84 = por %p82, %p83
      %p85 = scmp.ne.s32.totalorder %s76, %s77
      %p86 = scmp.eq.s32.totalorder %s50, 0
      %p87 = por %p85, %p86
      %p88 = scmp.ne.s32.totalorder %s76, %s77
      %p89 = scmp.eq.s32.totalorder %s51, 1
      %p90 = por %p88, %p89
      %p92 = scmp.ne.s32.totalorder %s77, %s91
      %p93 = scmp.eq.s32.totalorder %s51, 0
      %p94 = por %p92, %p93
      %s96 = sadd.s32 %s95, 1
      %p99 = scmp.eq.s32.totalorder %s45, 1
      %p100 = scmp.ne.s32.totalorder %s95, %s97
      %p101 = scmp.eq.s32.totalorder %s45, 0
      %p102 = por %p100, %p101
      %p103 = scmp.ne.s32.totalorder %s95, %s97
      %p104 = scmp.eq.s32.totalorder %s50, 1
      %p105 = por %p103, %p104
      %p106 = scmp.ne.s32.totalorder %s97, %s98
      %p107 = scmp.eq.s32.totalorder %s50, 0
      %p108 = por %p106, %p107
      %p109 = scmp.ne.s32.totalorder %s97, %s98
      %p110 = scmp.eq.s32.totalorder %s51, 1
      %p111 = por %p109, %p110
      %p113 = scmp.ne.s32.totalorder %s98, %s112
      %p114 = scmp.eq.s32.totalorder %s51, 0
      %p115 = por %p113, %p114
      %s117 = sadd.s32 %s116, 1
      %p120 = scmp.eq.s32.totalorder %s45, 1
      %p121 = scmp.ne.s32.totalorder %s116, %s118
      %p122 = scmp.eq.s32.totalorder %s45, 0
      %p123 = por %p121, %p122
      %p124 = scmp.ne.s32.totalorder %s116, %s118
      %p125 = scmp.eq.s32.totalorder %s50, 1
      %p126 = por %p124, %p125
      %p127 = scmp.ne.s32.totalorder %s118, %s119
      %p128 = scmp.eq.s32.totalorder %s50, 0
      %p129 = por %p127, %p128
      %p130 = scmp.ne.s32.totalorder %s118, %s119
      %p131 = scmp.eq.s32.totalorder %s51, 1
      %p132 = por %p130, %p131
      %p134 = scmp.ne.s32.totalorder %s119, %s133
      %p135 = scmp.eq.s32.totalorder %s51, 0
      %p136 = por %p134, %p135
      %s138 = sadd.s32 %s137, 1
      %p141 = scmp.eq.s32.totalorder %s45, 1
      %p142 = scmp.ne.s32.totalorder %s137, %s139
      %p143 = scmp.eq.s32.totalorder %s45, 0
      %p144 = por %p142, %p143
      %p145 = scmp.ne.s32.totalorder %s137, %s139
      %p146 = scmp.eq.s32.totalorder %s50, 1
      %p147 = por %p145, %p146
      %p148 = scmp.ne.s32.totalorder %s139, %s140
      %p149 = scmp.eq.s32.totalorder %s50, 0
      %p150 = por %p148, %p149
      %p151 = scmp.ne.s32.totalorder %s139, %s140
      %p152 = scmp.eq.s32.totalorder %s51, 1
      %p153 = por %p151, %p152
      %p155 = scmp.ne.s32.totalorder %s140, %s154
      %p156 = scmp.eq.s32.totalorder %s51, 0
      %p157 = por %p155, %p156
      %s159 = sadd.s32 %s158, 1
      %p162 = scmp.eq.s32.totalorder %s45, 1
      %p163 = scmp.ne.s32.totalorder %s158, %s160
      %p164 = scmp.eq.s32.totalorder %s45, 0
      %p165 = por %p163, %p164
      %p166 = scmp.ne.s32.totalorder %s158, %s160
      %p167 = scmp.eq.s32.totalorder %s50, 1
      %p168 = por %p166, %p167
      %p169 = scmp.ne.s32.totalorder %s160, %s161
      %p170 = scmp.eq.s32.totalorder %s50, 0
      %p171 = por %p169, %p170
      %p172 = scmp.ne.s32.totalorder %s160, %s161
      %p173 = scmp.eq.s32.totalorder %s51, 1
      %p174 = por %p172, %p173
      %p176 = scmp.ne.s32.totalorder %s161, %s175
      %p177 = scmp.eq.s32.totalorder %s51, 0
      %p178 = por %p176, %p177
      %s180 = sadd.s32 %s179, 1
      %p183 = scmp.eq.s32.totalorder %s45, 1
      %p184 = scmp.ne.s32.totalorder %s179, %s181
      %p185 = scmp.eq.s32.totalorder %s45, 0
      %p186 = por %p184, %p185
      %p187 = scmp.ne.s32.totalorder %s179, %s181
      %p188 = scmp.eq.s32.totalorder %s50, 1
      %p189 = por %p187, %p188
      %p190 = scmp.ne.s32.totalorder %s181, %s182
      %p191 = scmp.eq.s32.totalorder %s50, 0
      %p192 = por %p190, %p191
      %p193 = scmp.ne.s32.totalorder %s181, %s182
      %p194 = scmp.eq.s32.totalorder %s51, 1
      %p195 = por %p193, %p194
      %p197 = scmp.ne.s32.totalorder %s182, %s196
      %p198 = scmp.eq.s32.totalorder %s51, 0
      %p199 = por %p197, %p198
      %s201 = sadd.s32 %s200, 1
      %p204 = scmp.eq.s32.totalorder %s45, 1
      %p205 = scmp.ne.s32.totalorder %s200, %s202
      %p206 = scmp.eq.s32.totalorder %s45, 0
      %p207 = por %p205, %p206
      %p208 = scmp.ne.s32.totalorder %s200, %s202
      %p209 = scmp.eq.s32.totalorder %s50, 1
      %p210 = por %p208, %p209
      %p211 = scmp.ne.s32.totalorder %s202, %s203
      %p212 = scmp.eq.s32.totalorder %s50, 0
      %p213 = por %p211, %p212
      %p214 = scmp.ne.s32.totalorder %s202, %s203
      %p215 = scmp.eq.s32.totalorder %s51, 1
      %p216 = por %p214, %p215
      %p218 = scmp.ne.s32.totalorder %s203, %s217
      %p219 = scmp.eq.s32.totalorder %s51, 0
      %p220 = por %p218, %p219
      %s221 = ssub.s32 %s45, %s52
      %p222 = scmp.eq.s32.totalorder %s221, 0
      %s224 = sadd.s32 %s223, 1
      %s225 = scalar_select %p222, %s223, %s224
      %p228 = pneg %p222
      %p229 = scmp.eq.s32.totalorder %s45, 1
      %p230 = por %p228, %p229
      %p231 = scmp.ne.s32.totalorder %s223, %s226
      %p232 = scmp.eq.s32.totalorder %s45, 0
      %p233 = por %p231, %p232
      %p234 = scmp.ne.s32.totalorder %s223, %s226
      %p235 = scmp.eq.s32.totalorder %s50, 1
      %p236 = por %p234, %p235
      %p237 = scmp.ne.s32.totalorder %s226, %s227
      %p238 = scmp.eq.s32.totalorder %s50, 0
      %p239 = por %p237, %p238
      %p240 = scmp.ne.s32.totalorder %s226, %s227
      %p241 = scmp.eq.s32.totalorder %s51, 1
      %p242 = por %p240, %p241
      %p244 = scmp.ne.s32.totalorder %s227, %s243
      %p245 = scmp.eq.s32.totalorder %s51, 0
      %p246 = por %p244, %p245
      %s247 = ssub.s32 %s45, %s52
      %p248 = scmp.eq.s32.totalorder %s247, 0
      %s250 = sadd.s32 %s249, 1
      %s251 = scalar_select %p248, %s249, %s250
      %p254 = pneg %p248
      %p255 = scmp.eq.s32.totalorder %s45, 1
      %p256 = por %p254, %p255
      %p257 = scmp.ne.s32.totalorder %s249, %s252
      %p258 = scmp.eq.s32.totalorder %s45, 0
      %p259 = por %p257, %p258
      %p260 = scmp.ne.s32.totalorder %s249, %s252
      %p261 = scmp.eq.s32.totalorder %s50, 1
      %p262 = por %p260, %p261
      %p263 = scmp.ne.s32.totalorder %s252, %s253
      %p264 = scmp.eq.s32.totalorder %s50, 0
      %p265 = por %p263, %p264
      %p266 = scmp.ne.s32.totalorder %s252, %s253
      %p267 = scmp.eq.s32.totalorder %s51, 1
      %p268 = por %p266, %p267
      %p270 = scmp.ne.s32.totalorder %s253, %s269
      %p271 = scmp.eq.s32.totalorder %s51, 0
      %p272 = por %p270, %p271
      %s273 = ssub.s32 %s45, %s52
      %p274 = scmp.eq.s32.totalorder %s273, 0
      %s276 = sadd.s32 %s275, 1
      %s277 = scalar_select %p274, %s275, %s276
      %p280 = pneg %p274
      %p281 = scmp.eq.s32.totalorder %s45, 1
      %p282 = por %p280, %p281
      %p283 = scmp.ne.s32.totalorder %s275, %s278
      %p284 = scmp.eq.s32.totalorder %s45, 0
      %p285 = por %p283, %p284
      %p286 = scmp.ne.s32.totalorder %s275, %s278
      %p287 = scmp.eq.s32.totalorder %s50, 1
      %p288 = por %p286, %p287
      %p289 = scmp.ne.s32.totalorder %s278, %s279
      %p290 = scmp.eq.s32.totalorder %s50, 0
      %p291 = por %p289, %p290
      %p292 = scmp.ne.s32.totalorder %s278, %s279
      %p293 = scmp.eq.s32.totalorder %s51, 1
      %p294 = por %p292, %p293
      %p296 = scmp.ne.s32.totalorder %s279, %s295
      %p297 = scmp.eq.s32.totalorder %s51, 0
      %p298 = por %p296, %p297
      %s299 = ssub.s32 %s45, %s52
      %p300 = scmp.eq.s32.totalorder %s299, 0
      %s302 = sadd.s32 %s301, 1
      %s303 = scalar_select %p300, %s301, %s302
      %p306 = pneg %p300
      %p307 = scmp.eq.s32.totalorder %s45, 1
      %p308 = por %p306, %p307
      %p309 = scmp.ne.s32.totalorder %s301, %s304
      %p310 = scmp.eq.s32.totalorder %s45, 0
      %p311 = por %p309, %p310
      %p312 = scmp.ne.s32.totalorder %s301, %s304
      %p313 = scmp.eq.s32.totalorder %s50, 1
      %p314 = por %p312, %p313
      %p315 = scmp.ne.s32.totalorder %s304, %s305
      %p316 = scmp.eq.s32.totalorder %s50, 0
      %p317 = por %p315, %p316
      %p318 = scmp.ne.s32.totalorder %s304, %s305
      %p319 = scmp.eq.s32.totalorder %s51, 1
      %p320 = por %p318, %p319
      %p322 = scmp.ne.s32.totalorder %s305, %s321
      %p323 = scmp.eq.s32.totalorder %s51, 0
      %p324 = por %p322, %p323
      %s325 = ssub.s32 %s45, %s52
      %p326 = scmp.eq.s32.totalorder %s325, 0
      %s328 = sadd.s32 %s327, 1
      %s329 = scalar_select %p326, %s327, %s328
      %p332 = pneg %p326
      %p333 = scmp.eq.s32.totalorder %s45, 1
      %p334 = por %p332, %p333
      %p335 = scmp.ne.s32.totalorder %s327, %s330
      %p336 = scmp.eq.s32.totalorder %s45, 0
      %p337 = por %p335, %p336
      %p338 = scmp.ne.s32.totalorder %s327, %s330
      %p339 = scmp.eq.s32.totalorder %s50, 1
      %p340 = por %p338, %p339
      %p341 = scmp.ne.s32.totalorder %s330, %s331
      %p342 = scmp.eq.s32.totalorder %s50, 0
      %p343 = por %p341, %p342
      %p344 = scmp.ne.s32.totalorder %s330, %s331
      %p345 = scmp.eq.s32.totalorder %s51, 1
      %p346 = por %p344, %p345
      %p348 = scmp.ne.s32.totalorder %s331, %s347
      %p349 = scmp.eq.s32.totalorder %s51, 0
      %p350 = por %p348, %p349
      %s351 = ssub.s32 %s45, %s52
      %p352 = scmp.eq.s32.totalorder %s351, 0
      %s354 = sadd.s32 %s353, 1
      %s355 = scalar_select %p352, %s353, %s354
      %p358 = pneg %p352
      %p359 = scmp.eq.s32.totalorder %s45, 1
      %p360 = por %p358, %p359
      %p361 = scmp.ne.s32.totalorder %s353, %s356
      %p362 = scmp.eq.s32.totalorder %s45, 0
      %p363 = por %p361, %p362
      %p364 = scmp.ne.s32.totalorder %s353, %s356
      %p365 = scmp.eq.s32.totalorder %s50, 1
      %p366 = por %p364, %p365
      %p367 = scmp.ne.s32.totalorder %s356, %s357
      %p368 = scmp.eq.s32.totalorder %s50, 0
      %p369 = por %p367, %p368
      %p370 = scmp.ne.s32.totalorder %s356, %s357
      %p371 = scmp.eq.s32.totalorder %s51, 1
      %p372 = por %p370, %p371
      %p374 = scmp.ne.s32.totalorder %s357, %s373
      %p375 = scmp.eq.s32.totalorder %s51, 0
      %p376 = por %p374, %p375
      %s377 = ssub.s32 %s45, %s52
      %p378 = scmp.eq.s32.totalorder %s377, 0
      %s380 = sadd.s32 %s379, 1
      %s381 = scalar_select %p378, %s379, %s380
      %p384 = pneg %p378
      %p385 = scmp.eq.s32.totalorder %s45, 1
      %p386 = por %p384, %p385
      %p387 = scmp.ne.s32.totalorder %s379, %s382
      %p388 = scmp.eq.s32.totalorder %s45, 0
      %p389 = por %p387, %p388
      %p390 = scmp.ne.s32.totalorder %s379, %s382
      %p391 = scmp.eq.s32.totalorder %s50, 1
      %p392 = por %p390, %p391
      %p393 = scmp.ne.s32.totalorder %s382, %s383
      %p394 = scmp.eq.s32.totalorder %s50, 0
      %p395 = por %p393, %p394
      %p396 = scmp.ne.s32.totalorder %s382, %s383
      %p397 = scmp.eq.s32.totalorder %s51, 1
      %p398 = por %p396, %p397
      %p400 = scmp.ne.s32.totalorder %s383, %s399
      %p401 = scmp.eq.s32.totalorder %s51, 0
      %p402 = por %p400, %p401
      %s403 = ssub.s32 %s45, %s52
      %p404 = scmp.eq.s32.totalorder %s403, 0
      %s406 = sadd.s32 %s405, 1
      %s407 = scalar_select %p404, %s405, %s406
      %p410 = pneg %p404
      %p411 = scmp.eq.s32.totalorder %s45, 1
      %p412 = por %p410, %p411
      %p413 = scmp.ne.s32.totalorder %s405, %s408
      %p414 = scmp.eq.s32.totalorder %s45, 0
      %p415 = por %p413, %p414
      %p416 = scmp.ne.s32.totalorder %s405, %s408
      %p417 = scmp.eq.s32.totalorder %s50, 1
      %p418 = por %p416, %p417
      %p419 = scmp.ne.s32.totalorder %s408, %s409
      %p420 = scmp.eq.s32.totalorder %s50, 0
      %p421 = por %p419, %p420
      %p422 = scmp.ne.s32.totalorder %s408, %s409
      %p423 = scmp.eq.s32.totalorder %s51, 1
      %p424 = por %p422, %p423
      %p426 = scmp.ne.s32.totalorder %s409, %s425
      %p427 = scmp.eq.s32.totalorder %s51, 0
      %p428 = por %p426, %p427
      %s429 = ssub.s32 %s45, %s52
      %p430 = scmp.eq.s32.totalorder %s429, 0
      %s432 = sadd.s32 %s431, 1
      %s433 = scalar_select %p430, %s431, %s432
      %p436 = pneg %p430
      %p437 = scmp.eq.s32.totalorder %s45, 1
      %p438 = por %p436, %p437
      %p439 = scmp.ne.s32.totalorder %s431, %s434
      %p440 = scmp.eq.s32.totalorder %s45, 0
      %p441 = por %p439, %p440
      %p442 = scmp.ne.s32.totalorder %s431, %s434
      %p443 = scmp.eq.s32.totalorder %s50, 1
      %p444 = por %p442, %p443
      %p445 = scmp.ne.s32.totalorder %s434, %s435
      %p446 = scmp.eq.s32.totalorder %s50, 0
      %p447 = por %p445, %p446
      %p448 = scmp.ne.s32.totalorder %s434, %s435
      %p449 = scmp.eq.s32.totalorder %s51, 1
      %p450 = por %p448, %p449
      %p452 = scmp.ne.s32.totalorder %s435, %s451
      %p453 = scmp.eq.s32.totalorder %s51, 0
      %p454 = por %p452, %p453
      %s455 = ssub.s32 %s45, %s52
      %p456 = scmp.eq.s32.totalorder %s455, 0
      %s458 = sadd.s32 %s457, 1
      %s459 = scalar_select %p456, %s457, %s458
      %p462 = pneg %p456
      %p463 = scmp.eq.s32.totalorder %s45, 1
      %p464 = por %p462, %p463
      %p465 = scmp.ne.s32.totalorder %s457, %s460
      %p466 = scmp.eq.s32.totalorder %s45, 0
      %p467 = por %p465, %p466
      %p468 = scmp.ne.s32.totalorder %s457, %s460
      %p469 = scmp.eq.s32.totalorder %s50, 1
      %p470 = por %p468, %p469
      %p471 = scmp.ne.s32.totalorder %s460, %s461
      %p472 = scmp.eq.s32.totalorder %s50, 0
      %p473 = por %p471, %p472
      %p474 = scmp.ne.s32.totalorder %s460, %s461
      %p475 = scmp.eq.s32.totalorder %s51, 1
      %p476 = por %p474, %p475
      %p478 = scmp.ne.s32.totalorder %s461, %s477
      %p479 = scmp.eq.s32.totalorder %s51, 0
      %p480 = por %p478, %p479
      %s481 = ssub.s32 %s45, %s52
      %p482 = scmp.eq.s32.totalorder %s481, 0
      %s484 = sadd.s32 %s483, 1
      %s485 = scalar_select %p482, %s483, %s484
      %p488 = pneg %p482
      %p489 = scmp.eq.s32.totalorder %s45, 1
      %p490 = por %p488, %p489
      %p491 = scmp.ne.s32.totalorder %s483, %s486
      %p492 = scmp.eq.s32.totalorder %s45, 0
      %p493 = por %p491, %p492
      %p494 = scmp.ne.s32.totalorder %s483, %s486
      %p495 = scmp.eq.s32.totalorder %s50, 1
      %p496 = por %p494, %p495
      %p497 = scmp.ne.s32.totalorder %s486, %s487
      %p498 = scmp.eq.s32.totalorder %s50, 0
      %p499 = por %p497, %p498
      %p500 = scmp.ne.s32.totalorder %s486, %s487
      %p501 = scmp.eq.s32.totalorder %s51, 1
      %p502 = por %p500, %p501
      %p504 = scmp.ne.s32.totalorder %s487, %s503
      %p505 = scmp.eq.s32.totalorder %s51, 0
      %p506 = por %p504, %p505
      %s507 = ssub.s32 %s45, %s52
      %p508 = scmp.eq.s32.totalorder %s507, 0
      %s510 = sadd.s32 %s509, 1
      %s511 = scalar_select %p508, %s509, %s510
      %p514 = pneg %p508
      %p515 = scmp.eq.s32.totalorder %s45, 1
      %p516 = por %p514, %p515
      %p517 = scmp.ne.s32.totalorder %s509, %s512
      %p518 = scmp.eq.s32.totalorder %s45, 0
      %p519 = por %p517, %p518
      %p520 = scmp.ne.s32.totalorder %s509, %s512
      %p521 = scmp.eq.s32.totalorder %s50, 1
      %p522 = por %p520, %p521
      %p523 = scmp.ne.s32.totalorder %s512, %s513
      %p524 = scmp.eq.s32.totalorder %s50, 0
      %p525 = por %p523, %p524
      %p526 = scmp.ne.s32.totalorder %s512, %s513
      %p527 = scmp.eq.s32.totalorder %s51, 1
      %p528 = por %p526, %p527
      %p530 = scmp.ne.s32.totalorder %s513, %s529
      %p531 = scmp.eq.s32.totalorder %s51, 0
      %p532 = por %p530, %p531
      %s534 = sadd.s32 %s533, 1
      %p537 = scmp.eq.s32.totalorder %s45, 1
      %p538 = scmp.ne.s32.totalorder %s533, %s535
      %p539 = scmp.eq.s32.totalorder %s45, 0
      %p540 = por %p538, %p539
      %p541 = scmp.ne.s32.totalorder %s533, %s535
      %p542 = scmp.eq.s32.totalorder %s50, 1
      %p543 = por %p541, %p542
      %p544 = scmp.ne.s32.totalorder %s535, %s536
      %p545 = scmp.eq.s32.totalorder %s50, 0
      %p546 = por %p544, %p545
      %p547 = scmp.ne.s32.totalorder %s535, %s536
      %p548 = scmp.eq.s32.totalorder %s51, 1
      %p549 = por %p547, %p548
      %p551 = scmp.ne.s32.totalorder %s536, %s550
      %p552 = scmp.eq.s32.totalorder %s51, 0
      %p553 = por %p551, %p552
      %s555 = sadd.s32 %s554, 1
      %p558 = scmp.eq.s32.totalorder %s45, 1
      %p559 = scmp.ne.s32.totalorder %s554, %s556
      %p560 = scmp.eq.s32.totalorder %s45, 0
      %p561 = por %p559, %p560
      %p562 = scmp.ne.s32.totalorder %s554, %s556
      %p563 = scmp.eq.s32.totalorder %s50, 1
      %p564 = por %p562, %p563
      %p565 = scmp.ne.s32.totalorder %s556, %s557
      %p566 = scmp.eq.s32.totalorder %s50, 0
      %p567 = por %p565, %p566
      %p568 = scmp.ne.s32.totalorder %s556, %s557
      %p569 = scmp.eq.s32.totalorder %s51, 1
      %p570 = por %p568, %p569
      %p572 = scmp.ne.s32.totalorder %s557, %s571
      %p573 = scmp.eq.s32.totalorder %s51, 0
      %p574 = por %p572, %p573
      %s576 = sadd.s32 %s575, 1
      %p579 = scmp.eq.s32.totalorder %s45, 1
      %p580 = scmp.ne.s32.totalorder %s575, %s577
      %p581 = scmp.eq.s32.totalorder %s45, 0
      %p582 = por %p580, %p581
      %p583 = scmp.ne.s32.totalorder %s575, %s577
      %p584 = scmp.eq.s32.totalorder %s50, 1
      %p585 = por %p583, %p584
      %p586 = scmp.ne.s32.totalorder %s577, %s578
      %p587 = scmp.eq.s32.totalorder %s50, 0
      %p588 = por %p586, %p587
      %p589 = scmp.ne.s32.totalorder %s577, %s578
      %p590 = scmp.eq.s32.totalorder %s51, 1
      %p591 = por %p589, %p590
      %p593 = scmp.ne.s32.totalorder %s578, %s592
      %p594 = scmp.eq.s32.totalorder %s51, 0
      %p595 = por %p593, %p594
      %s597 = sadd.s32 %s596, 1
      %p600 = scmp.eq.s32.totalorder %s45, 1
      %p601 = scmp.ne.s32.totalorder %s596, %s598
      %p602 = scmp.eq.s32.totalorder %s45, 0
      %p603 = por %p601, %p602
      %p604 = scmp.ne.s32.totalorder %s596, %s598
      %p605 = scmp.eq.s32.totalorder %s50, 1
      %p606 = por %p604, %p605
      %p607 = scmp.ne.s32.totalorder %s598, %s599
      %p608 = scmp.eq.s32.totalorder %s50, 0
      %p609 = por %p607, %p608
      %p610 = scmp.ne.s32.totalorder %s598, %s599
      %p611 = scmp.eq.s32.totalorder %s51, 1
      %p612 = por %p610, %p611
      %p614 = scmp.ne.s32.totalorder %s599, %s613
      %p615 = scmp.eq.s32.totalorder %s51, 0
      %p616 = por %p614, %p615
      %s618 = sadd.s32 %s617, 1
      %p621 = scmp.eq.s32.totalorder %s45, 1
      %p622 = scmp.ne.s32.totalorder %s617, %s619
      %p623 = scmp.eq.s32.totalorder %s45, 0
      %p624 = por %p622, %p623
      %p625 = scmp.ne.s32.totalorder %s617, %s619
      %p626 = scmp.eq.s32.totalorder %s50, 1
      %p627 = por %p625, %p626
      %p628 = scmp.ne.s32.totalorder %s619, %s620
      %p629 = scmp.eq.s32.totalorder %s50, 0
      %p630 = por %p628, %p629
      %p631 = scmp.ne.s32.totalorder %s619, %s620
      %p632 = scmp.eq.s32.totalorder %s51, 1
      %p633 = por %p631, %p632
      %p635 = scmp.ne.s32.totalorder %s620, %s634
      %p636 = scmp.eq.s32.totalorder %s51, 0
      %p637 = por %p635, %p636
      %s639 = sadd.s32 %s638, 1
      %p642 = scmp.eq.s32.totalorder %s45, 1
      %p643 = scmp.ne.s32.totalorder %s638, %s640
      %p644 = scmp.eq.s32.totalorder %s45, 0
      %p645 = por %p643, %p644
      %p646 = scmp.ne.s32.totalorder %s638, %s640
      %p647 = scmp.eq.s32.totalorder %s50, 1
      %p648 = por %p646, %p647
      %p649 = scmp.ne.s32.totalorder %s640, %s641
      %p650 = scmp.eq.s32.totalorder %s50, 0
      %p651 = por %p649, %p650
      %p652 = scmp.ne.s32.totalorder %s640, %s641
      %p653 = scmp.eq.s32.totalorder %s51, 1
      %p654 = por %p652, %p653
      %p656 = scmp.ne.s32.totalorder %s641, %s655
      %p657 = scmp.eq.s32.totalorder %s51, 0
      %p658 = por %p656, %p657
      %s660 = sadd.s32 %s659, 1
      %p663 = scmp.eq.s32.totalorder %s45, 1
      %p664 = scmp.ne.s32.totalorder %s659, %s661
      %p665 = scmp.eq.s32.totalorder %s45, 0
      %p666 = por %p664, %p665
      %p667 = scmp.ne.s32.totalorder %s659, %s661
      %p668 = scmp.eq.s32.totalorder %s50, 1
      %p669 = por %p667, %p668
      %p670 = scmp.ne.s32.totalorder %s661, %s662
      %p671 = scmp.eq.s32.totalorder %s50, 0
      %p672 = por %p670, %p671
      %p673 = scmp.ne.s32.totalorder %s661, %s662
      %p674 = scmp.eq.s32.totalorder %s51, 1
      %p675 = por %p673, %p674
      %p677 = scmp.ne.s32.totalorder %s662, %s676
      %p678 = scmp.eq.s32.totalorder %s51, 0
      %p679 = por %p677, %p678
      %s681 = sadd.s32 %s680, 1
      %p684 = scmp.eq.s32.totalorder %s45, 1
      %p685 = scmp.ne.s32.totalorder %s680, %s682
      %p686 = scmp.eq.s32.totalorder %s45, 0
      %p687 = por %p685, %p686
      %p688 = scmp.ne.s32.totalorder %s680, %s682
      %p689 = scmp.eq.s32.totalorder %s50, 1
      %p690 = por %p688, %p689
      %p691 = scmp.ne.s32.totalorder %s682, %s683
      %p692 = scmp.eq.s32.totalorder %s50, 0
      %p693 = por %p691, %p692
      %p694 = scmp.ne.s32.totalorder %s682, %s683
      %p695 = scmp.eq.s32.totalorder %s51, 1
      %p696 = por %p694, %p695
      %p698 = scmp.ne.s32.totalorder %s683, %s697
      %p699 = scmp.eq.s32.totalorder %s51, 0
      %p700 = por %p698, %p699
      %p701 = scmp.le.s32.totalorder 1, %s45
      %p702 = scmp.lt.s32.totalorder %s45, 3
      %p703 = pnand %p701, %p702
      %p704 = pneg %p703
      // Predicated region
      $region9: #{tpu_custom_call.1} parent=5 // pred_check
        _
      $region10: #{tpu_custom_call.1} parent=5 // pred_check_branch
        %706 = sbr.rel (%p703) target = $region12
      $region11: #{tpu_custom_call.1} parent=5 // pred_region
        %s707 = ssub.s32 %s45, 1
        // Predicated region
        $region13: #{tpu_custom_call.1} parent=11 // pred_check
          %p708 = pneg %p66
        $region14: #{tpu_custom_call.1} parent=11 // pred_check_branch
          %710 = sbr.rel (%p708) target = $region16
        $region15: #{tpu_custom_call.1} parent=11 // pred_region
          _
        $region16: #{tpu_custom_call.1} parent=11 // pred_fallthru
          _
        // Predicated region
        $region17: #{tpu_custom_call.1} parent=11 // pred_check
          %p711 = pneg %p87
        $region18: #{tpu_custom_call.1} parent=11 // pred_check_branch
          %713 = sbr.rel (%p711) target = $region20
        $region19: #{tpu_custom_call.1} parent=11 // pred_region
          _
        $region20: #{tpu_custom_call.1} parent=11 // pred_fallthru
          _
        // Predicated region
        $region21: #{tpu_custom_call.1} parent=11 // pred_check
          %p714 = pneg %p108
        $region22: #{tpu_custom_call.1} parent=11 // pred_check_branch
          %716 = sbr.rel (%p714) target = $region24
        $region23: #{tpu_custom_call.1} parent=11 // pred_region
          _
        $region24: #{tpu_custom_call.1} parent=11 // pred_fallthru
          _
        // Predicated region
        $region25: #{tpu_custom_call.1} parent=11 // pred_check
          %p717 = pneg %p129
        $region26: #{tpu_custom_call.1} parent=11 // pred_check_branch
          %719 = sbr.rel (%p717) target = $region28
        $region27: #{tpu_custom_call.1} parent=11 // pred_region
          _
        $region28: #{tpu_custom_call.1} parent=11 // pred_fallthru
          _
        // Predicated region
        $region29: #{tpu_custom_call.1} parent=11 // pred_check
          %p720 = pneg %p150
        $region30: #{tpu_custom_call.1} parent=11 // pred_check_branch
          %722 = sbr.rel (%p720) target = $region32
        $region31: #{tpu_custom_call.1} parent=11 // pred_region
          _
        $region32: #{tpu_custom_call.1} parent=11 // pred_fallthru
          _
        // Predicated region
        $region33: #{tpu_custom_call.1} parent=11 // pred_check
          %p723 = pneg %p171
        $region34: #{tpu_custom_call.1} parent=11 // pred_check_branch
          %725 = sbr.rel (%p723) target = $region36
        $region35: #{tpu_custom_call.1} parent=11 // pred_region
          _
        $region36: #{tpu_custom_call.1} parent=11 // pred_fallthru
          _
        // Predicated region
        $region37: #{tpu_custom_call.1} parent=11 // pred_check
          %p726 = pneg %p192
        $region38: #{tpu_custom_call.1} parent=11 // pred_check_branch
          %728 = sbr.rel (%p726) target = $region40
        $region39: #{tpu_custom_call.1} parent=11 // pred_region
          _
        $region40: #{tpu_custom_call.1} parent=11 // pred_fallthru
          _
        // Predicated region
        $region41: #{tpu_custom_call.1} parent=11 // pred_check
          %p729 = pneg %p213
        $region42: #{tpu_custom_call.1} parent=11 // pred_check_branch
          %731 = sbr.rel (%p729) target = $region44
        $region43: #{tpu_custom_call.1} parent=11 // pred_region
          _
        $region44: #{tpu_custom_call.1} parent=11 // pred_fallthru
          _
        // Predicated region
        $region45: #{tpu_custom_call.1} parent=11 // pred_check
          %p732 = pneg %p546
        $region46: #{tpu_custom_call.1} parent=11 // pred_check_branch
          %734 = sbr.rel (%p732) target = $region48
        $region47: #{tpu_custom_call.1} parent=11 // pred_region
          _
        $region48: #{tpu_custom_call.1} parent=11 // pred_fallthru
          _
        // Predicated region
        $region49: #{tpu_custom_call.1} parent=11 // pred_check
          %p735 = pneg %p567
        $region50: #{tpu_custom_call.1} parent=11 // pred_check_branch
          %737 = sbr.rel (%p735) target = $region52
        $region51: #{tpu_custom_call.1} parent=11 // pred_region
          _
        $region52: #{tpu_custom_call.1} parent=11 // pred_fallthru
          _
        // Predicated region
        $region53: #{tpu_custom_call.1} parent=11 // pred_check
          %p738 = pneg %p588
        $region54: #{tpu_custom_call.1} parent=11 // pred_check_branch
          %740 = sbr.rel (%p738) target = $region56
        $region55: #{tpu_custom_call.1} parent=11 // pred_region
          _
        $region56: #{tpu_custom_call.1} parent=11 // pred_fallthru
          _
        // Predicated region
        $region57: #{tpu_custom_call.1} parent=11 // pred_check
          %p741 = pneg %p609
        $region58: #{tpu_custom_call.1} parent=11 // pred_check_branch
          %743 = sbr.rel (%p741) target = $region60
        $region59: #{tpu_custom_call.1} parent=11 // pred_region
          _
        $region60: #{tpu_custom_call.1} parent=11 // pred_fallthru
          _
        // Predicated region
        $region61: #{tpu_custom_call.1} parent=11 // pred_check
          %p744 = pneg %p630
        $region62: #{tpu_custom_call.1} parent=11 // pred_check_branch
          %746 = sbr.rel (%p744) target = $region64
        $region63: #{tpu_custom_call.1} parent=11 // pred_region
          _
        $region64: #{tpu_custom_call.1} parent=11 // pred_fallthru
          _
        // Predicated region
        $region65: #{tpu_custom_call.1} parent=11 // pred_check
          %p747 = pneg %p651
        $region66: #{tpu_custom_call.1} parent=11 // pred_check_branch
          %749 = sbr.rel (%p747) target = $region68
        $region67: #{tpu_custom_call.1} parent=11 // pred_region
          _
        $region68: #{tpu_custom_call.1} parent=11 // pred_fallthru
          _
        // Predicated region
        $region69: #{tpu_custom_call.1} parent=11 // pred_check
          %p750 = pneg %p672
        $region70: #{tpu_custom_call.1} parent=11 // pred_check_branch
          %752 = sbr.rel (%p750) target = $region72
        $region71: #{tpu_custom_call.1} parent=11 // pred_region
          _
        $region72: #{tpu_custom_call.1} parent=11 // pred_fallthru
          _
      $region12: #{tpu_custom_call.1} parent=5 // pred_fallthru
        _
      %p753 = scmp.lt.s32.totalorder %s45, 2
      // Predicated region
      $region73: #{tpu_custom_call.1} parent=5 // pred_check
        %p754 = pneg %p753
      $region74: #{tpu_custom_call.1} parent=5 // pred_check_branch
        %756 = sbr.rel (%p754) target = $region76
      $region75: #{tpu_custom_call.1} parent=5 // pred_region
        // Predicated region
        $region77: #{tpu_custom_call.1} parent=75 // pred_check
          %p757 = pneg %p233
        $region78: #{tpu_custom_call.1} parent=75 // pred_check_branch
          %759 = sbr.rel (%p757) target = $region80
        $region79: #{tpu_custom_call.1} parent=75 // pred_region
          %s760 = sand.u32 %s223, 1
          %s761 = scalar_lea.sflag [#allocation10], %s760
          %s762 = sand.u32 %s223, 1
          %s763 = smul.addr %s762, 192
          %s764 = scalar_lea.vmem [#allocation9], %s763
          %766 = vsyncadd %s761, 0
          %s767 = smul.addr %s45, 48
          %s768 = smul.addr %s767, 4
          %s769 = scalar_lea.hbm %s8, %s768
          %s770 = sshll.u32 %s769, 4
          %s771 = int_to_ptr.hbm [resolvable:$true] %s770
          %s772 = sshll.u32 %s764, 4
          %s773 = int_to_ptr.vmem [resolvable:$true] %s772
          %778 = dma.hbm_to_vmem [thread:$0]  %s771, 3072, %s773, %s761, 64, 64, 4
        $region80: #{tpu_custom_call.1} parent=75 // pred_fallthru
          _
        // Predicated region
        $region81: #{tpu_custom_call.1} parent=75 // pred_check
          %p779 = pneg %p259
        $region82: #{tpu_custom_call.1} parent=75 // pred_check_branch
          %781 = sbr.rel (%p779) target = $region84
        $region83: #{tpu_custom_call.1} parent=75 // pred_region
          %p782 = scmp.lt.s32.totalorder %s45, 1
          %s783 = scalar_select %p782, %s45, 1
          %s784 = scalar_lea.vmem %s9, %s783
        $region84: #{tpu_custom_call.1} parent=75 // pred_fallthru
          _
        // Predicated region
        $region85: #{tpu_custom_call.1} parent=75 // pred_check
          %p785 = pneg %p285
        $region86: #{tpu_custom_call.1} parent=75 // pred_check_branch
          %787 = sbr.rel (%p785) target = $region88
        $region87: #{tpu_custom_call.1} parent=75 // pred_region
          %s788 = sand.u32 %s45, 1
          %s789 = scalar_lea.sflag [#allocation13], %s788
          %s790 = sand.u32 %s275, 1
          %s791 = smul.addr %s790, 64
          %s792 = scalar_lea.vmem [#allocation12], %s791
          %794 = vsyncadd %s789, 0
          %s795 = smul.addr %s45, 16
          %s796 = smul.addr %s795, 4
          %s797 = scalar_lea.hbm %s10, %s796
          %s798 = sshll.u32 %s797, 4
          %s799 = int_to_ptr.hbm [resolvable:$true] %s798
          %s800 = sshll.u32 %s792, 4
          %s801 = int_to_ptr.vmem [resolvable:$true] %s800
          %806 = dma.hbm_to_vmem [thread:$0]  %s799, 1024, %s801, %s789, 64, 64, 4
        $region88: #{tpu_custom_call.1} parent=75 // pred_fallthru
          _
        // Predicated region
        $region89: #{tpu_custom_call.1} parent=75 // pred_check
          %p807 = pneg %p311
        $region90: #{tpu_custom_call.1} parent=75 // pred_check_branch
          %809 = sbr.rel (%p807) target = $region92
        $region91: #{tpu_custom_call.1} parent=75 // pred_region
          %p810 = scmp.lt.s32.totalorder %s45, 1
          %s811 = scalar_select %p810, %s45, 1
          %s812 = scalar_lea.vmem %s11, %s811
        $region92: #{tpu_custom_call.1} parent=75 // pred_fallthru
          _
        // Predicated region
        $region93: #{tpu_custom_call.1} parent=75 // pred_check
          %p813 = pneg %p337
        $region94: #{tpu_custom_call.1} parent=75 // pred_check_branch
          %815 = sbr.rel (%p813) target = $region96
        $region95: #{tpu_custom_call.1} parent=75 // pred_region
          %p816 = scmp.lt.s32.totalorder %s45, 1
          %s817 = scalar_select %p816, %s45, 1
          %s818 = scalar_lea.vmem %s12, %s817
        $region96: #{tpu_custom_call.1} parent=75 // pred_fallthru
          _
        // Predicated region
        $region97: #{tpu_custom_call.1} parent=75 // pred_check
          %p819 = pneg %p363
        $region98: #{tpu_custom_call.1} parent=75 // pred_check_branch
          %821 = sbr.rel (%p819) target = $region100
        $region99: #{tpu_custom_call.1} parent=75 // pred_region
          %p822 = scmp.lt.s32.totalorder %s45, 1
          %s823 = scalar_select %p822, %s45, 1
          %s824 = scalar_lea.vmem %s13, %s823
        $region100: #{tpu_custom_call.1} parent=75 // pred_fallthru
          _
        // Predicated region
        $region101: #{tpu_custom_call.1} parent=75 // pred_check
          %p825 = pneg %p389
        $region102: #{tpu_custom_call.1} parent=75 // pred_check_branch
          %827 = sbr.rel (%p825) target = $region104
        $region103: #{tpu_custom_call.1} parent=75 // pred_region
          %s828 = sand.u32 %s45, 1
          %s829 = scalar_lea.sflag [#allocation13], %s828
          %s830 = sand.u32 %s379, 1
          %s831 = smul.addr %s830, 128
          %s832 = scalar_lea.vmem [#allocation14], %s831
          %834 = vsyncadd %s829, 0
          %s835 = smul.addr %s45, 32
          %s836 = smul.addr %s835, 4
          %s837 = scalar_lea.hbm %s14, %s836
          %s838 = sshll.u32 %s837, 4
          %s839 = int_to_ptr.hbm [resolvable:$true] %s838
          %s840 = sshll.u32 %s832, 4
          %s841 = int_to_ptr.vmem [resolvable:$true] %s840
          %846 = dma.hbm_to_vmem [thread:$0]  %s839, 2048, %s841, %s829, 64, 64, 4
        $region104: #{tpu_custom_call.1} parent=75 // pred_fallthru
          _
        // Predicated region
        $region105: #{tpu_custom_call.1} parent=75 // pred_check
          %p847 = pneg %p415
        $region106: #{tpu_custom_call.1} parent=75 // pred_check_branch
          %849 = sbr.rel (%p847) target = $region108
        $region107: #{tpu_custom_call.1} parent=75 // pred_region
          %p850 = scmp.lt.s32.totalorder %s45, 1
          %s851 = scalar_select %p850, %s45, 1
          %s852 = scalar_lea.vmem %s15, %s851
        $region108: #{tpu_custom_call.1} parent=75 // pred_fallthru
          _
        // Predicated region
        $region109: #{tpu_custom_call.1} parent=75 // pred_check
          %p853 = pneg %p441
        $region110: #{tpu_custom_call.1} parent=75 // pred_check_branch
          %855 = sbr.rel (%p853) target = $region112
        $region111: #{tpu_custom_call.1} parent=75 // pred_region
          %s856 = sand.u32 %s431, 1
          %s857 = scalar_lea.sflag [#allocation16], %s856
          %s858 = sand.u32 %s431, 1
          %s859 = smul.addr %s858, 64
          %s860 = scalar_lea.vmem [#allocation15], %s859
          %862 = vsyncadd %s857, 0
          %s863 = smul.addr %s45, 16
          %s864 = smul.addr %s863, 4
          %s865 = scalar_lea.hbm %s16, %s864
          %s866 = sshll.u32 %s865, 4
          %s867 = int_to_ptr.hbm [resolvable:$true] %s866
          %s868 = sshll.u32 %s860, 4
          %s869 = int_to_ptr.vmem [resolvable:$true] %s868
          %874 = dma.hbm_to_vmem [thread:$0]  %s867, 1024, %s869, %s857, 64, 64, 4
        $region112: #{tpu_custom_call.1} parent=75 // pred_fallthru
          _
        // Predicated region
        $region113: #{tpu_custom_call.1} parent=75 // pred_check
          %p875 = pneg %p467
        $region114: #{tpu_custom_call.1} parent=75 // pred_check_branch
          %877 = sbr.rel (%p875) target = $region116
        $region115: #{tpu_custom_call.1} parent=75 // pred_region
          %p878 = scmp.lt.s32.totalorder %s45, 1
          %s879 = scalar_select %p878, %s45, 1
          %s880 = scalar_lea.vmem %s17, %s879
        $region116: #{tpu_custom_call.1} parent=75 // pred_fallthru
          _
        // Predicated region
        $region117: #{tpu_custom_call.1} parent=75 // pred_check
          %p881 = pneg %p493
        $region118: #{tpu_custom_call.1} parent=75 // pred_check_branch
          %883 = sbr.rel (%p881) target = $region120
        $region119: #{tpu_custom_call.1} parent=75 // pred_region
          %p884 = scmp.lt.s32.totalorder %s45, 1
          %s885 = scalar_select %p884, %s45, 1
          %s886 = scalar_lea.vmem %s18, %s885
        $region120: #{tpu_custom_call.1} parent=75 // pred_fallthru
          _
        // Predicated region
        $region121: #{tpu_custom_call.1} parent=75 // pred_check
          %p887 = pneg %p519
        $region122: #{tpu_custom_call.1} parent=75 // pred_check_branch
          %889 = sbr.rel (%p887) target = $region124
        $region123: #{tpu_custom_call.1} parent=75 // pred_region
          %p890 = scmp.lt.s32.totalorder %s45, 1
          %s891 = scalar_select %p890, %s45, 1
          %s892 = scalar_lea.vmem %s19, %s891
        $region124: #{tpu_custom_call.1} parent=75 // pred_fallthru
          _
      $region76: #{tpu_custom_call.1} parent=5 // pred_fallthru
        _
      %p893 = scmp.le.s32.totalorder 1, %s45
      %p894 = scmp.lt.s32.totalorder %s45, 3
      %p895 = pnand %p893, %p894
      %p896 = pneg %p895
      // Predicated region
      $region125: #{tpu_custom_call.1} parent=5 // pred_check
        _
      $region126: #{tpu_custom_call.1} parent=5 // pred_check_branch
        %898 = sbr.rel (%p895) target = $region128
      $region127: #{tpu_custom_call.1} parent=5 // pred_region
        %s899 = ssub.s32 %s45, 1
        %s900 = sand.u32 %s226, 1
        %s901 = scalar_lea.sflag [#allocation10], %s900
        %s902 = sand.u32 %s226, 1
        %s903 = smul.addr %s902, 192
        %s904 = scalar_lea.vmem [#allocation9], %s903
        // Predicated region
        $region129: #{tpu_custom_call.1} parent=127 // pred_check
          %p905 = pneg %p239
        $region130: #{tpu_custom_call.1} parent=127 // pred_check_branch
          %907 = sbr.rel (%p905) target = $region132
        $region131: #{tpu_custom_call.1} parent=127 // pred_region
          %909 = dma.done %s901, 3072
        $region132: #{tpu_custom_call.1} parent=127 // pred_fallthru
          _
        %s910 = sand.u32 %s50, 1
        %s911 = scalar_lea.sflag [#allocation13], %s910
        %s912 = sand.u32 %s278, 1
        %s913 = smul.addr %s912, 64
        %s914 = scalar_lea.vmem [#allocation12], %s913
        // Predicated region
        $region133: #{tpu_custom_call.1} parent=127 // pred_check
          %p915 = pneg %p291
        $region134: #{tpu_custom_call.1} parent=127 // pred_check_branch
          %917 = sbr.rel (%p915) target = $region136
        $region135: #{tpu_custom_call.1} parent=127 // pred_region
          %919 = dma.done %s911, 1024
        $region136: #{tpu_custom_call.1} parent=127 // pred_fallthru
          _
        %s920 = sand.u32 %s50, 1
        %s921 = scalar_lea.sflag [#allocation13], %s920
        %s922 = sand.u32 %s382, 1
        %s923 = smul.addr %s922, 128
        %s924 = scalar_lea.vmem [#allocation14], %s923
        // Predicated region
        $region137: #{tpu_custom_call.1} parent=127 // pred_check
          %p925 = pneg %p395
        $region138: #{tpu_custom_call.1} parent=127 // pred_check_branch
          %927 = sbr.rel (%p925) target = $region140
        $region139: #{tpu_custom_call.1} parent=127 // pred_region
          %929 = dma.done %s921, 2048
        $region140: #{tpu_custom_call.1} parent=127 // pred_fallthru
          _
        %s930 = sand.u32 %s434, 1
        %s931 = scalar_lea.sflag [#allocation16], %s930
        %s932 = sand.u32 %s434, 1
        %s933 = smul.addr %s932, 64
        %s934 = scalar_lea.vmem [#allocation15], %s933
        // Predicated region
        $region141: #{tpu_custom_call.1} parent=127 // pred_check
          %p935 = pneg %p447
        $region142: #{tpu_custom_call.1} parent=127 // pred_check_branch
          %937 = sbr.rel (%p935) target = $region144
        $region143: #{tpu_custom_call.1} parent=127 // pred_region
          %939 = dma.done %s931, 1024
        $region144: #{tpu_custom_call.1} parent=127 // pred_fallthru
          _
        %p940 = pneg %p66
        %p941 = pneg %p63
        %p942 = pneg %p87
        %p943 = pneg %p84
        %p944 = pneg %p108
        %p945 = pneg %p105
        %p946 = pneg %p129
        %p947 = pneg %p126
        %p948 = pneg %p150
        %p949 = pneg %p147
        %p950 = pneg %p171
        %p951 = pneg %p168
        %p952 = pneg %p192
        %p953 = pneg %p189
        %p954 = pneg %p213
        %p955 = pneg %p210
        %s956 = sand.u32 %s226, 1
        %s957 = scalar_lea.sflag [#allocation10], %s956
        %s958 = sand.u32 %s226, 1
        %s959 = smul.addr %s958, 192
        %s960 = scalar_lea.vmem [#allocation9], %s959
        %p961 = pneg %p239
        %p962 = pneg %p236
        %p963 = scmp.lt.s32.totalorder %s50, 1
        %s964 = scalar_select %p963, %s50, 1
        %s965 = scalar_lea.vmem %s9, %s964
        %p966 = pneg %p265
        %p967 = pneg %p262
        %s968 = sand.u32 %s50, 1
        %s969 = scalar_lea.sflag [#allocation13], %s968
        %s970 = sand.u32 %s278, 1
        %s971 = smul.addr %s970, 64
        %s972 = scalar_lea.vmem [#allocation12], %s971
        %p973 = pneg %p291
        %p974 = pneg %p288
        %p975 = scmp.lt.s32.totalorder %s50, 1
        %s976 = scalar_select %p975, %s50, 1
        %s977 = scalar_lea.vmem %s11, %s976
        %p978 = pneg %p317
        %p979 = pneg %p314
        %p980 = scmp.lt.s32.totalorder %s50, 1
        %s981 = scalar_select %p980, %s50, 1
        %s982 = scalar_lea.vmem %s12, %s981
        %p983 = pneg %p343
        %p984 = pneg %p340
        %p985 = scmp.lt.s32.totalorder %s50, 1
        %s986 = scalar_select %p985, %s50, 1
        %s987 = scalar_lea.vmem %s13, %s986
        %p988 = pneg %p369
        %p989 = pneg %p366
        %s990 = sand.u32 %s50, 1
        %s991 = scalar_lea.sflag [#allocation13], %s990
        %s992 = sand.u32 %s382, 1
        %s993 = smul.addr %s992, 128
        %s994 = scalar_lea.vmem [#allocation14], %s993
        %p995 = pneg %p395
        %p996 = pneg %p392
        %p997 = scmp.lt.s32.totalorder %s50, 1
        %s998 = scalar_select %p997, %s50, 1
        %s999 = scalar_lea.vmem %s15, %s998
        %p1000 = pneg %p421
        %p1001 = pneg %p418
        %s1002 = sand.u32 %s434, 1
        %s1003 = scalar_lea.sflag [#allocation16], %s1002
        %s1004 = sand.u32 %s434, 1
        %s1005 = smul.addr %s1004, 64
        %s1006 = scalar_lea.vmem [#allocation15], %s1005
        %p1007 = pneg %p447
        %p1008 = pneg %p444
        %p1009 = scmp.lt.s32.totalorder %s50, 1
        %s1010 = scalar_select %p1009, %s50, 1
        %s1011 = scalar_lea.vmem %s17, %s1010
        %p1012 = pneg %p473
        %p1013 = pneg %p470
        %p1014 = scmp.lt.s32.totalorder %s50, 1
        %s1015 = scalar_select %p1014, %s50, 1
        %s1016 = scalar_lea.vmem %s18, %s1015
        %p1017 = pneg %p499
        %p1018 = pneg %p496
        %p1019 = scmp.lt.s32.totalorder %s50, 1
        %s1020 = scalar_select %p1019, %s50, 1
        %s1021 = scalar_lea.vmem %s19, %s1020
        %p1022 = pneg %p525
        %p1023 = pneg %p522
        %p1024 = pneg %p546
        %p1025 = pneg %p543
        %p1026 = pneg %p567
        %p1027 = pneg %p564
        %p1028 = pneg %p588
        %p1029 = pneg %p585
        %p1030 = pneg %p609
        %p1031 = pneg %p606
        %p1032 = pneg %p630
        %p1033 = pneg %p627
        %p1034 = pneg %p651
        %p1035 = pneg %p648
        %p1036 = pneg %p672
        %p1037 = pneg %p669
        %p1038 = pneg %p693
        %p1039 = pneg %p690
        %p1040 = scmp.lt.s32.totalorder %s50, 1
        %s1041 = scalar_select %p1040, %s50, 1
        %s1042 = scalar_lea.vmem %s9, %s1041
        %p1043 = scmp.lt.s32.totalorder %s50, 1
        %s1044 = scalar_select %p1043, %s50, 1
        %s1045 = scalar_lea.vmem %s11, %s1044
        %p1046 = scmp.lt.s32.totalorder %s50, 1
        %s1047 = scalar_select %p1046, %s50, 1
        %s1048 = scalar_lea.vmem %s12, %s1047
        %p1049 = scmp.lt.s32.totalorder %s50, 1
        %s1050 = scalar_select %p1049, %s50, 1
        %s1051 = scalar_lea.vmem %s13, %s1050
        %p1052 = scmp.lt.s32.totalorder %s50, 1
        %s1053 = scalar_select %p1052, %s50, 1
        %s1054 = scalar_lea.vmem %s15, %s1053
        %p1055 = scmp.lt.s32.totalorder %s50, 1
        %s1056 = scalar_select %p1055, %s50, 1
        %s1057 = scalar_lea.vmem %s17, %s1056
        %p1058 = scmp.lt.s32.totalorder %s50, 1
        %s1059 = scalar_select %p1058, %s50, 1
        %s1060 = scalar_lea.vmem %s18, %s1059
        %p1061 = scmp.lt.s32.totalorder %s50, 1
        %s1062 = scalar_select %p1061, %s50, 1
        %s1063 = scalar_lea.vmem %s19, %s1062
        %p1065 = scmp.eq.s32.totalorder %s50, 0
        // Predicated region
        $region145: #{tpu_custom_call.1} parent=127 // pred_check
          %p1066 = pneg %p1065
        $region146: #{tpu_custom_call.1} parent=127 // pred_check_branch
          %1068 = sbr.rel (%p1066) target = $region148
        $region147: #{tpu_custom_call.1} parent=127 // pred_region
          %v1069 = vld [vmem:[%s0] sm:$0xff]
          %v1070 = vld [vmem:[%s0 + $0x8] sm:$0xff]
          %v1071 = vld [vmem:[%s4] sm:$0xf]
          %v1072 = vld [vmem:[%s4 + $0x4] sm:$0xf]
          %v1073 = vld [vmem:[%s4 + $0x8] sm:$0xf]
          %v1074 = vld [vmem:[%s4 + $0xc] sm:$0xf]
          %v1075 = vpack.c.bf16 %v1070, %v1069
          %v1076 = vld [vmem:[%s5] sm:$0x1]
          %v1078 = vperm.slane %v1076, 0
          %v1084 = vunpack.c.l.b16 %v1071
          %v1085 = vunpack.c.l.b16 %v1072
          %v1086 = vunpack.c.l.b16 %v1073
          %v1087 = vunpack.c.l.b16 %v1074
          %v1088 = vpack.c.b16 %v1085, %v1084
          %v1089 = vpack.c.b16 %v1087, %v1086
          %vm1092 = vcmask 261120
          %v1094 = vsel %vm1092, %v1075, 0
          %1096 = vmatpush.bf16.msra.mxu0 0
          %1097 = vmatpush.bf16.msra.mxu0 0
          %1098 = vmatpush.bf16.msra.mxu0 0
          %1099 = vmatpush.bf16.msra.mxu0 0
          %1100 = vmatpush.bf16.msra.mxu0 0
          %1101 = vmatpush.bf16.msra.mxu0 0
          %1102 = vmatpush.bf16.msra.mxu0 %v1089
          %1103 = vmatpush.bf16.msra.mxu0 %v1088
          %1104 = vmatmul.bf16.gmra.mxu0 %v1094
          %v1105 = vpop.f32.mrf.mxu0
          %v1106 = vadd.f32 %v1078, %v1105
          %v1107 = vpop.f32.mrf.mxu0
          %v1108 = vadd.f32 %v1078, %v1107
          %1109 = vdwg.mxu0
          %v1110 = vmax.f32 %v1106, 0.0
          %v1111 = vmax.f32 %v1108, 0.0
          %1112 = vst [vmem:[#allocation2] sm:$0xff] %v1110
          %1113 = vst [vmem:[#allocation2 + $0x8] sm:$0xff] %v1111
          %v1114 = vld [vmem:[%s1] sm:$0xff]
          %v1115 = vld [vmem:[%s1 + $0x8] sm:$0xff]
          %v1116 = vld [vmem:[%s1 + $0x10] sm:$0xff]
          %v1117 = vld [vmem:[%s1 + $0x18] sm:$0xff]
          %v1118 = vld [vmem:[%s6] sm:$0xf]
          %v1119 = vld [vmem:[%s6 + $0x4] sm:$0xf]
          %v1120 = vpack.c.bf16 %v1115, %v1114
          %v1121 = vpack.c.bf16 %v1117, %v1116
          %v1122 = vld [vmem:[%s7] sm:$0x1]
          %v1124 = vperm.slane %v1122, 0
          %v1128 = vunpack.c.l.b16 %v1118
          %v1129 = vunpack.c.l.b16 %v1119
          %v1130 = vpack.c.b16 %v1129, %v1128
          %vm1132 = vcmask 130048
          %v1134 = vsel %vm1132, %v1120, 0
          %v1137 = vsel %vm1132, %v1121, 0
          %1139 = vmatpush.bf16.msra.mxu0 0
          %1140 = vmatpush.bf16.msra.mxu0 0
          %1141 = vmatpush.bf16.msra.mxu0 0
          %1142 = vmatpush.bf16.msra.mxu0 0
          %1143 = vmatpush.bf16.msra.mxu0 0
          %1144 = vmatpush.bf16.msra.mxu0 0
          %1145 = vmatpush.bf16.msra.mxu0 0
          %1146 = vmatpush.bf16.msra.mxu0 %v1130
          %1147 = vmatmul.bf16.gmra.mxu0 %v1134
          %v1148 = vpop.f32.mrf.mxu0
          %v1149 = vadd.f32 %v1124, %v1148
          %v1150 = vpop.f32.mrf.mxu0
          %v1151 = vadd.f32 %v1124, %v1150
          %1152 = vmatmul.bf16.gmra.mxu0 %v1137
          %v1153 = vpop.f32.mrf.mxu0
          %v1154 = vadd.f32 %v1124, %v1153
          %v1155 = vpop.f32.mrf.mxu0
          %v1156 = vadd.f32 %v1124, %v1155
          %1157 = vdwg.mxu0
          %v1158 = vmax.f32 %v1149, 0.0
          %v1159 = vmax.f32 %v1151, 0.0
          %v1160 = vmax.f32 %v1154, 0.0
          %v1161 = vmax.f32 %v1156, 0.0
          %1162 = vst [vmem:[#allocation3] sm:$0xff] %v1158
          %1163 = vst [vmem:[#allocation3 + $0x8] sm:$0xff] %v1159
          %1164 = vst [vmem:[#allocation3 + $0x10] sm:$0xff] %v1160
          %1165 = vst [vmem:[#allocation3 + $0x18] sm:$0xff] %v1161
          %v1166 = vlaneseq
          %v1167 = vand.u32 %v1166, 127
          %v1168 = vld [vmem:[%s2] sm:$0xff]
          %v1169 = vld [vmem:[%s2 + $0x8] sm:$0xff]
          %v1170 = vld [vmem:[%s2 + $0x10] sm:$0xff]
          %v1171 = vld [vmem:[%s2 + $0x18] sm:$0xff]
          %1172 = vset.pattern.permute.xlu0 0
          %1173 = vperm.xlu0 %1172, %v1168
          %v1174 = vpop.permute.xlu0 %1173
          %1175 = vset.pattern.permute.xlu0 0
          %1176 = vperm.xlu0 %1175, %v1169
          %v1177 = vpop.permute.xlu0 %1176
          %1178 = vset.pattern.permute.xlu0 0
          %1179 = vperm.xlu0 %1178, %v1170
          %v1180 = vpop.permute.xlu0 %1179
          %1181 = vset.pattern.permute.xlu0 0
          %1182 = vperm.xlu0 %1181, %v1171
          %v1183 = vpop.permute.xlu0 %1182
          %vm1184 = vcmp.eq.s32.totalorder %v1167, %v1174
          %vm1185 = vcmp.eq.s32.totalorder %v1167, %v1177
          %vm1186 = vcmp.eq.s32.totalorder %v1167, %v1180
          %vm1187 = vcmp.eq.s32.totalorder %v1167, %v1183
          %v1188 = vsel %vm1184, 1, 0
          %v1189 = vsel %vm1185, 1, 0
          %v1190 = vsel %vm1186, 1, 0
          %v1191 = vsel %vm1187, 1, 0
          %v1192 = vcvt.s32.f32 %v1188
          %v1193 = vcvt.s32.f32 %v1189
          %v1194 = vcvt.s32.f32 %v1190
          %v1195 = vcvt.s32.f32 %v1191
          %v1196 = vpack.c.bf16 %v1192, %v1192
          %v1197 = vpack.c.bf16 %v1193, %v1193
          %v1198 = vpack.c.bf16 %v1194, %v1194
          %v1199 = vpack.c.bf16 %v1195, %v1195
          %vm1200 = vcmask 125952
          %1201 = vst.msk [vmem:[#allocation4] sm:$0xf] %vm1200, %v1196
          %1202 = vst.msk [vmem:[#allocation4 + $0x4] sm:$0xf] %vm1200, %v1197
          %1203 = vst.msk [vmem:[#allocation4 + $0x8] sm:$0xf] %vm1200, %v1198
          %1204 = vst.msk [vmem:[#allocation4 + $0xc] sm:$0xf] %vm1200, %v1199
          %v1205 = vld [vmem:[%s3] sm:$0xff]
          %v1206 = vld [vmem:[%s3 + $0x8] sm:$0xff]
          %v1207 = vld [vmem:[%s3 + $0x10] sm:$0xff]
          %v1208 = vld [vmem:[%s3 + $0x18] sm:$0xff]
          %1209 = vset.pattern.permute.xlu0 0
          %1210 = vperm.xlu0 %1209, %v1205
          %v1211 = vpop.permute.xlu0 %1210
          %1212 = vset.pattern.permute.xlu0 0
          %1213 = vperm.xlu0 %1212, %v1206
          %v1214 = vpop.permute.xlu0 %1213
          %1215 = vset.pattern.permute.xlu0 0
          %1216 = vperm.xlu0 %1215, %v1207
          %v1217 = vpop.permute.xlu0 %1216
          %1218 = vset.pattern.permute.xlu0 0
          %1219 = vperm.xlu0 %1218, %v1208
          %v1220 = vpop.permute.xlu0 %1219
          %vm1221 = vcmp.eq.s32.totalorder %v1167, %v1211
          %vm1222 = vcmp.eq.s32.totalorder %v1167, %v1214
          %vm1223 = vcmp.eq.s32.totalorder %v1167, %v1217
          %vm1224 = vcmp.eq.s32.totalorder %v1167, %v1220
          %v1225 = vsel %vm1221, 1, 0
          %v1226 = vsel %vm1222, 1, 0
          %v1227 = vsel %vm1223, 1, 0
          %v1228 = vsel %vm1224, 1, 0
          %v1229 = vcvt.s32.f32 %v1225
          %v1230 = vcvt.s32.f32 %v1226
          %v1231 = vcvt.s32.f32 %v1227
          %v1232 = vcvt.s32.f32 %v1228
          %v1233 = vpack.c.bf16 %v1229, %v1229
          %v1234 = vpack.c.bf16 %v1230, %v1230
          %v1235 = vpack.c.bf16 %v1231, %v1231
          %v1236 = vpack.c.bf16 %v1232, %v1232
          %1237 = vst.msk [vmem:[#allocation5] sm:$0xf] %vm1200, %v1233
          %1238 = vst.msk [vmem:[#allocation5 + $0x4] sm:$0xf] %vm1200, %v1234
          %1239 = vst.msk [vmem:[#allocation5 + $0x8] sm:$0xf] %vm1200, %v1235
          %1240 = vst.msk [vmem:[#allocation5 + $0xc] sm:$0xf] %vm1200, %v1236
        $region148: #{tpu_custom_call.1} parent=127 // pred_fallthru
          _
        %v1241 = vld [vmem:[#allocation2] sm:$0xff]
        %v1242 = vld [vmem:[#allocation2 + $0x8] sm:$0xff]
        %v1243 = vld [vmem:[#allocation3] sm:$0xff]
        %v1244 = vld [vmem:[#allocation3 + $0x8] sm:$0xff]
        %v1245 = vld [vmem:[#allocation3 + $0x10] sm:$0xff]
        %v1246 = vld [vmem:[#allocation3 + $0x18] sm:$0xff]
        %v1247 = vpack.c.bf16 %v1241, %v1241
        %v1248 = vpack.c.bf16 %v1242, %v1242
        %v1249 = vld [vmem:[#allocation4] sm:$0xf]
        %v1250 = vld [vmem:[#allocation4 + $0x4] sm:$0xf]
        %v1251 = vld [vmem:[#allocation4 + $0x8] sm:$0xf]
        %v1252 = vld [vmem:[#allocation4 + $0xc] sm:$0xf]
        %v1253 = vld [vmem:[#allocation5] sm:$0xf]
        %v1254 = vld [vmem:[#allocation5 + $0x4] sm:$0xf]
        %v1255 = vld [vmem:[#allocation5 + $0x8] sm:$0xf]
        %v1256 = vld [vmem:[#allocation5 + $0xc] sm:$0xf]
        %v1257 = vpack.c.bf16 %v1243, %v1243
        %v1258 = vpack.c.bf16 %v1244, %v1244
        %v1259 = vpack.c.bf16 %v1245, %v1245
        %v1260 = vpack.c.bf16 %v1246, %v1246
        %1261 = vst [vmem:[#allocation6] sm:$0xf] %v1257
        %1262 = vst [vmem:[#allocation6 + $0xc] sm:$0xf] %v1258
        %1263 = vst [vmem:[#allocation6 + $0x18] sm:$0xf] %v1259
        %1264 = vst [vmem:[#allocation6 + $0x24] sm:$0xf] %v1260
        %v1269 = vunpack.c.l.b16 %v1249
        %v1270 = vunpack.c.l.b16 %v1250
        %v1271 = vunpack.c.l.b16 %v1251
        %v1272 = vunpack.c.l.b16 %v1252
        %v1273 = vpack.c.b16 %v1270, %v1269
        %v1274 = vpack.c.b16 %v1272, %v1271
        %v1277 = vunpack.c.l.b16 %v1247
        %v1278 = vunpack.c.l.b16 %v1248
        %v1279 = vpack.c.b16 %v1278, %v1277
        %vm1281 = vcmask 130048
        %v1283 = vsel %vm1281, %v1273, 0
        %v1286 = vsel %vm1281, %v1274, 0
        %1288 = vmatpush.bf16.msra.mxu0 0
        %1289 = vmatpush.bf16.msra.mxu0 0
        %1290 = vmatpush.bf16.msra.mxu0 0
        %1291 = vmatpush.bf16.msra.mxu0 0
        %1292 = vmatpush.bf16.msra.mxu0 0
        %1293 = vmatpush.bf16.msra.mxu0 0
        %1294 = vmatpush.bf16.msra.mxu0 0
        %1295 = vmatpush.bf16.msra.mxu0 %v1279
        %1296 = vmatmul.bf16.gmra.mxu0 %v1283
        %v1297 = vpop.f32.mrf.mxu0
        %v1298 = vadd.f32 0.0, %v1297
        %v1299 = vpop.f32.mrf.mxu0
        %v1300 = vadd.f32 0.0, %v1299
        %1301 = vmatmul.bf16.gmra.mxu0 %v1286
        %v1302 = vpop.f32.mrf.mxu0
        %v1303 = vadd.f32 0.0, %v1302
        %v1304 = vpop.f32.mrf.mxu0
        %v1305 = vadd.f32 0.0, %v1304
        %1306 = vdwg.mxu0
        %v1307 = vpack.c.bf16 %v1298, %v1298
        %v1308 = vpack.c.bf16 %v1300, %v1300
        %v1309 = vpack.c.bf16 %v1303, %v1303
        %v1310 = vpack.c.bf16 %v1305, %v1305
        %1311 = vst [vmem:[#allocation6 + $0x4] sm:$0xf] %v1307
        %1312 = vst [vmem:[#allocation6 + $0x10] sm:$0xf] %v1308
        %1313 = vst [vmem:[#allocation6 + $0x1c] sm:$0xf] %v1309
        %1314 = vst [vmem:[#allocation6 + $0x28] sm:$0xf] %v1310
        %v1319 = vunpack.c.l.b16 %v1253
        %v1320 = vunpack.c.l.b16 %v1254
        %v1321 = vunpack.c.l.b16 %v1255
        %v1322 = vunpack.c.l.b16 %v1256
        %v1323 = vpack.c.b16 %v1320, %v1319
        %v1324 = vpack.c.b16 %v1322, %v1321
        %v1326 = vsel %vm1281, %v1323, 0
        %v1329 = vsel %vm1281, %v1324, 0
        %1331 = vmatpush.bf16.msra.mxu0 0
        %1332 = vmatpush.bf16.msra.mxu0 0
        %1333 = vmatpush.bf16.msra.mxu0 0
        %1334 = vmatpush.bf16.msra.mxu0 0
        %1335 = vmatpush.bf16.msra.mxu0 0
        %1336 = vmatpush.bf16.msra.mxu0 0
        %1337 = vmatpush.bf16.msra.mxu0 0
        %1338 = vmatpush.bf16.msra.mxu0 %v1279
        %1339 = vmatmul.bf16.gmra.mxu0 %v1326
        %v1340 = vpop.f32.mrf.mxu0
        %v1341 = vadd.f32 0.0, %v1340
        %v1342 = vpop.f32.mrf.mxu0
        %v1343 = vadd.f32 0.0, %v1342
        %1344 = vmatmul.bf16.gmra.mxu0 %v1329
        %v1345 = vpop.f32.mrf.mxu0
        %v1346 = vadd.f32 0.0, %v1345
        %v1347 = vpop.f32.mrf.mxu0
        %v1348 = vadd.f32 0.0, %v1347
        %1349 = vdwg.mxu0
        %v1350 = vpack.c.bf16 %v1341, %v1341
        %v1351 = vpack.c.bf16 %v1343, %v1343
        %v1352 = vpack.c.bf16 %v1346, %v1346
        %v1353 = vpack.c.bf16 %v1348, %v1348
        %1354 = vst [vmem:[#allocation6 + $0x8] sm:$0xf] %v1350
        %1355 = vst [vmem:[#allocation6 + $0x14] sm:$0xf] %v1351
        %1356 = vst [vmem:[#allocation6 + $0x20] sm:$0xf] %v1352
        %1357 = vst [vmem:[#allocation6 + $0x2c] sm:$0xf] %v1353
        %v1358 = vld [vmem:[#allocation6] sm:$0xff]
        %v1359 = vld [vmem:[#allocation6 + $0x8] sm:$0xf]
        %v1360 = vld [vmem:[#allocation6 + $0xc] sm:$0xff]
        %v1361 = vld [vmem:[#allocation6 + $0x14] sm:$0xf]
        %v1362 = vld [vmem:[#allocation6 + $0x18] sm:$0xff]
        %v1363 = vld [vmem:[#allocation6 + $0x20] sm:$0xf]
        %v1364 = vld [vmem:[#allocation6 + $0x24] sm:$0xff]
        %v1365 = vld [vmem:[#allocation6 + $0x2c] sm:$0xf]
        %v1366 = vld [vmem:[%s904] sm:$0xf]
        %v1367 = vld [vmem:[%s904 + $0x4] sm:$0xf]
        %v1368 = vld [vmem:[%s904 + $0x8] sm:$0xf]
        %v1369 = vld [vmem:[%s904 + $0xc] sm:$0xf]
        %v1370 = vld [vmem:[%s904 + $0x10] sm:$0xf]
        %v1371 = vld [vmem:[%s904 + $0x14] sm:$0xf]
        %v1372 = vld [vmem:[%s904 + $0x18] sm:$0xf]
        %v1373 = vld [vmem:[%s904 + $0x1c] sm:$0xf]
        %v1374 = vld [vmem:[%s904 + $0x20] sm:$0xf]
        %v1375 = vld [vmem:[%s904 + $0x24] sm:$0xf]
        %v1376 = vld [vmem:[%s904 + $0x28] sm:$0xf]
        %v1377 = vld [vmem:[%s904 + $0x2c] sm:$0xf]
        %v1378 = vld [vmem:[%s904 + $0x30] sm:$0xf]
        %v1379 = vld [vmem:[%s904 + $0x34] sm:$0xf]
        %v1380 = vld [vmem:[%s904 + $0x38] sm:$0xf]
        %v1381 = vld [vmem:[%s904 + $0x3c] sm:$0xf]
        %v1382 = vld [vmem:[%s904 + $0x40] sm:$0xf]
        %v1383 = vld [vmem:[%s904 + $0x44] sm:$0xf]
        %v1384 = vld [vmem:[%s904 + $0x48] sm:$0xf]
        %v1385 = vld [vmem:[%s904 + $0x4c] sm:$0xf]
        %v1386 = vld [vmem:[%s904 + $0x50] sm:$0xf]
        %v1387 = vld [vmem:[%s904 + $0x54] sm:$0xf]
        %v1388 = vld [vmem:[%s904 + $0x58] sm:$0xf]
        %v1389 = vld [vmem:[%s904 + $0x5c] sm:$0xf]
        %v1390 = vld [vmem:[%s904 + $0x60] sm:$0xf]
        %v1391 = vld [vmem:[%s904 + $0x64] sm:$0xf]
        %v1392 = vld [vmem:[%s904 + $0x68] sm:$0xf]
        %v1393 = vld [vmem:[%s904 + $0x6c] sm:$0xf]
        %v1394 = vld [vmem:[%s904 + $0x70] sm:$0xf]
        %v1395 = vld [vmem:[%s904 + $0x74] sm:$0xf]
        %v1396 = vld [vmem:[%s904 + $0x78] sm:$0xf]
        %v1397 = vld [vmem:[%s904 + $0x7c] sm:$0xf]
        %v1398 = vld [vmem:[%s904 + $0x80] sm:$0xf]
        %v1399 = vld [vmem:[%s904 + $0x84] sm:$0xf]
        %v1400 = vld [vmem:[%s904 + $0x88] sm:$0xf]
        %v1401 = vld [vmem:[%s904 + $0x8c] sm:$0xf]
        %v1402 = vld [vmem:[%s904 + $0x90] sm:$0xf]
        %v1403 = vld [vmem:[%s904 + $0x94] sm:$0xf]
        %v1404 = vld [vmem:[%s904 + $0x98] sm:$0xf]
        %v1405 = vld [vmem:[%s904 + $0x9c] sm:$0xf]
        %v1406 = vld [vmem:[%s904 + $0xa0] sm:$0xf]
        %v1407 = vld [vmem:[%s904 + $0xa4] sm:$0xf]
        %v1408 = vld [vmem:[%s904 + $0xa8] sm:$0xf]
        %v1409 = vld [vmem:[%s904 + $0xac] sm:$0xf]
        %v1410 = vld [vmem:[%s904 + $0xb0] sm:$0xf]
        %v1411 = vld [vmem:[%s904 + $0xb4] sm:$0xf]
        %v1412 = vld [vmem:[%s904 + $0xb8] sm:$0xf]
        %v1413 = vld [vmem:[%s904 + $0xbc] sm:$0xf]
        %v1414 = vld [vmem:[%s1042] sm:$0x1]
        %v1416 = vperm.slane %v1414, 0
        %v1426 = vunpack.c.l.b16 %v1358
        %v1427 = vunpack.c.h.b16 %v1358
        %v1428 = vunpack.c.l.b16 %v1359
        %v1429 = vunpack.c.l.b16 %v1360
        %v1430 = vunpack.c.h.b16 %v1360
        %v1431 = vunpack.c.l.b16 %v1361
        %v1432 = vunpack.c.l.b16 %v1362
        %v1433 = vunpack.c.h.b16 %v1362
        %v1434 = vunpack.c.l.b16 %v1363
        %v1435 = vunpack.c.l.b16 %v1364
        %v1436 = vunpack.c.h.b16 %v1364
        %v1437 = vunpack.c.l.b16 %v1365
        %v1438 = vpack.c.b16 %v1429, %v1426
        %v1439 = vpack.c.b16 %v1430, %v1427
        %v1440 = vpack.c.b16 %v1431, %v1428
        %v1441 = vpack.c.b16 %v1435, %v1432
        %v1442 = vpack.c.b16 %v1436, %v1433
        %v1443 = vpack.c.b16 %v1437, %v1434
        %v1498 = vunpack.c.l.b16 %v1366
        %v1499 = vunpack.c.l.b16 %v1367
        %v1500 = vunpack.c.l.b16 %v1368
        %v1501 = vunpack.c.l.b16 %v1369
        %v1502 = vunpack.c.l.b16 %v1370
        %v1503 = vunpack.c.l.b16 %v1371
        %v1504 = vunpack.c.l.b16 %v1372
        %v1505 = vunpack.c.l.b16 %v1373
        %v1506 = vunpack.c.l.b16 %v1374
        %v1507 = vunpack.c.l.b16 %v1375
        %v1508 = vunpack.c.l.b16 %v1376
        %v1509 = vunpack.c.l.b16 %v1377
        %v1510 = vunpack.c.l.b16 %v1378
        %v1511 = vunpack.c.l.b16 %v1379
        %v1512 = vunpack.c.l.b16 %v1380
        %v1513 = vunpack.c.l.b16 %v1381
        %v1514 = vunpack.c.l.b16 %v1382
        %v1515 = vunpack.c.l.b16 %v1383
        %v1516 = vunpack.c.l.b16 %v1384
        %v1517 = vunpack.c.l.b16 %v1385
        %v1518 = vunpack.c.l.b16 %v1386
        %v1519 = vunpack.c.l.b16 %v1387
        %v1520 = vunpack.c.l.b16 %v1388
        %v1521 = vunpack.c.l.b16 %v1389
        %v1522 = vunpack.c.l.b16 %v1390
        %v1523 = vunpack.c.l.b16 %v1391
        %v1524 = vunpack.c.l.b16 %v1392
        %v1525 = vunpack.c.l.b16 %v1393
        %v1526 = vunpack.c.l.b16 %v1394
        %v1527 = vunpack.c.l.b16 %v1395
        %v1528 = vunpack.c.l.b16 %v1396
        %v1529 = vunpack.c.l.b16 %v1397
        %v1530 = vunpack.c.l.b16 %v1398
        %v1531 = vunpack.c.l.b16 %v1399
        %v1532 = vunpack.c.l.b16 %v1400
        %v1533 = vunpack.c.l.b16 %v1401
        %v1534 = vunpack.c.l.b16 %v1402
        %v1535 = vunpack.c.l.b16 %v1403
        %v1536 = vunpack.c.l.b16 %v1404
        %v1537 = vunpack.c.l.b16 %v1405
        %v1538 = vunpack.c.l.b16 %v1406
        %v1539 = vunpack.c.l.b16 %v1407
        %v1540 = vunpack.c.l.b16 %v1408
        %v1541 = vunpack.c.l.b16 %v1409
        %v1542 = vunpack.c.l.b16 %v1410
        %v1543 = vunpack.c.l.b16 %v1411
        %v1544 = vunpack.c.l.b16 %v1412
        %v1545 = vunpack.c.l.b16 %v1413
        %v1546 = vpack.c.b16 %v1499, %v1498
        %v1547 = vpack.c.b16 %v1501, %v1500
        %v1548 = vpack.c.b16 %v1503, %v1502
        %v1549 = vpack.c.b16 %v1505, %v1504
        %v1550 = vpack.c.b16 %v1507, %v1506
        %v1551 = vpack.c.b16 %v1509, %v1508
        %v1552 = vpack.c.b16 %v1511, %v1510
        %v1553 = vpack.c.b16 %v1513, %v1512
        %v1554 = vpack.c.b16 %v1515, %v1514
        %v1555 = vpack.c.b16 %v1517, %v1516
        %v1556 = vpack.c.b16 %v1519, %v1518
        %v1557 = vpack.c.b16 %v1521, %v1520
        %v1558 = vpack.c.b16 %v1523, %v1522
        %v1559 = vpack.c.b16 %v1525, %v1524
        %v1560 = vpack.c.b16 %v1527, %v1526
        %v1561 = vpack.c.b16 %v1529, %v1528
        %v1562 = vpack.c.b16 %v1531, %v1530
        %v1563 = vpack.c.b16 %v1533, %v1532
        %v1564 = vpack.c.b16 %v1535, %v1534
        %v1565 = vpack.c.b16 %v1537, %v1536
        %v1566 = vpack.c.b16 %v1539, %v1538
        %v1567 = vpack.c.b16 %v1541, %v1540
        %v1568 = vpack.c.b16 %v1543, %v1542
        %v1569 = vpack.c.b16 %v1545, %v1544
        %1594 = vmatpush.bf16.msra.mxu0 %v1553
        %1595 = vmatpush.bf16.msra.mxu0 %v1552
        %1596 = vmatpush.bf16.msra.mxu0 %v1551
        %1597 = vmatpush.bf16.msra.mxu0 %v1550
        %1598 = vmatpush.bf16.msra.mxu0 %v1549
        %1599 = vmatpush.bf16.msra.mxu0 %v1548
        %1600 = vmatpush.bf16.msra.mxu0 %v1547
        %1601 = vmatpush.bf16.msra.mxu0 %v1546
        %1602 = vmatmul.bf16.gmra.mxu0 %v1438
        %v1603 = vpop.f32.mrf.mxu0
        %v1604 = vadd.f32 %v1416, %v1603
        %v1605 = vpop.f32.mrf.mxu0
        %v1606 = vadd.f32 %v1416, %v1605
        %1607 = vmatmul.bf16.gmra.mxu0 %v1441
        %v1608 = vpop.f32.mrf.mxu0
        %v1609 = vadd.f32 %v1416, %v1608
        %v1610 = vpop.f32.mrf.mxu0
        %v1611 = vadd.f32 %v1416, %v1610
        %1612 = vdwg.mxu0
        %1613 = vmatpush.bf16.msra.mxu0 %v1561
        %1614 = vmatpush.bf16.msra.mxu0 %v1560
        %1615 = vmatpush.bf16.msra.mxu0 %v1559
        %1616 = vmatpush.bf16.msra.mxu0 %v1558
        %1617 = vmatpush.bf16.msra.mxu0 %v1557
        %1618 = vmatpush.bf16.msra.mxu0 %v1556
        %1619 = vmatpush.bf16.msra.mxu0 %v1555
        %1620 = vmatpush.bf16.msra.mxu0 %v1554
        %1621 = vmatmul.bf16.gmra.mxu0 %v1439
        %v1622 = vpop.f32.mrf.mxu0
        %v1623 = vadd.f32 %v1604, %v1622
        %v1624 = vpop.f32.mrf.mxu0
        %v1625 = vadd.f32 %v1606, %v1624
        %1626 = vmatmul.bf16.gmra.mxu0 %v1442
        %v1627 = vpop.f32.mrf.mxu0
        %v1628 = vadd.f32 %v1609, %v1627
        %v1629 = vpop.f32.mrf.mxu0
        %v1630 = vadd.f32 %v1611, %v1629
        %1631 = vdwg.mxu0
        %1632 = vmatpush.bf16.msra.mxu0 %v1569
        %1633 = vmatpush.bf16.msra.mxu0 %v1568
        %1634 = vmatpush.bf16.msra.mxu0 %v1567
        %1635 = vmatpush.bf16.msra.mxu0 %v1566
        %1636 = vmatpush.bf16.msra.mxu0 %v1565
        %1637 = vmatpush.bf16.msra.mxu0 %v1564
        %1638 = vmatpush.bf16.msra.mxu0 %v1563
        %1639 = vmatpush.bf16.msra.mxu0 %v1562
        %1640 = vmatmul.bf16.gmra.mxu0 %v1440
        %v1641 = vpop.f32.mrf.mxu0
        %v1642 = vadd.f32 %v1623, %v1641
        %v1643 = vpop.f32.mrf.mxu0
        %v1644 = vadd.f32 %v1625, %v1643
        %1645 = vmatmul.bf16.gmra.mxu0 %v1443
        %v1646 = vpop.f32.mrf.mxu0
        %v1647 = vadd.f32 %v1628, %v1646
        %v1648 = vpop.f32.mrf.mxu0
        %v1649 = vadd.f32 %v1630, %v1648
        %1650 = vdwg.mxu0
        %v1651 = vmax.f32 %v1642, 0.0
        %v1652 = vmax.f32 %v1644, 0.0
        %v1653 = vmax.f32 %v1647, 0.0
        %v1654 = vmax.f32 %v1649, 0.0
        %v1655 = vld [vmem:[%s914] sm:$0xf]
        %v1656 = vld [vmem:[%s914 + $0x4] sm:$0xf]
        %v1657 = vld [vmem:[%s914 + $0x8] sm:$0xf]
        %v1658 = vld [vmem:[%s914 + $0xc] sm:$0xf]
        %v1659 = vld [vmem:[%s914 + $0x10] sm:$0xf]
        %v1660 = vld [vmem:[%s914 + $0x14] sm:$0xf]
        %v1661 = vld [vmem:[%s914 + $0x18] sm:$0xf]
        %v1662 = vld [vmem:[%s914 + $0x1c] sm:$0xf]
        %v1663 = vld [vmem:[%s914 + $0x20] sm:$0xf]
        %v1664 = vld [vmem:[%s914 + $0x24] sm:$0xf]
        %v1665 = vld [vmem:[%s914 + $0x28] sm:$0xf]
        %v1666 = vld [vmem:[%s914 + $0x2c] sm:$0xf]
        %v1667 = vld [vmem:[%s914 + $0x30] sm:$0xf]
        %v1668 = vld [vmem:[%s914 + $0x34] sm:$0xf]
        %v1669 = vld [vmem:[%s914 + $0x38] sm:$0xf]
        %v1670 = vld [vmem:[%s914 + $0x3c] sm:$0xf]
        %v1671 = vpack.c.bf16 %v1652, %v1651
        %v1672 = vpack.c.bf16 %v1654, %v1653
        %v1689 = vunpack.c.l.b16 %v1655
        %v1690 = vunpack.c.l.b16 %v1656
        %v1691 = vunpack.c.l.b16 %v1657
        %v1692 = vunpack.c.l.b16 %v1658
        %v1693 = vunpack.c.l.b16 %v1659
        %v1694 = vunpack.c.l.b16 %v1660
        %v1695 = vunpack.c.l.b16 %v1661
        %v1696 = vunpack.c.l.b16 %v1662
        %v1697 = vunpack.c.l.b16 %v1663
        %v1698 = vunpack.c.l.b16 %v1664
        %v1699 = vunpack.c.l.b16 %v1665
        %v1700 = vunpack.c.l.b16 %v1666
        %v1701 = vunpack.c.l.b16 %v1667
        %v1702 = vunpack.c.l.b16 %v1668
        %v1703 = vunpack.c.l.b16 %v1669
        %v1704 = vunpack.c.l.b16 %v1670
        %v1705 = vpack.c.b16 %v1690, %v1689
        %v1706 = vpack.c.b16 %v1692, %v1691
        %v1707 = vpack.c.b16 %v1694, %v1693
        %v1708 = vpack.c.b16 %v1696, %v1695
        %v1709 = vpack.c.b16 %v1698, %v1697
        %v1710 = vpack.c.b16 %v1700, %v1699
        %v1711 = vpack.c.b16 %v1702, %v1701
        %v1712 = vpack.c.b16 %v1704, %v1703
        %1721 = vmatpush.bf16.msra.mxu0 %v1712
        %1722 = vmatpush.bf16.msra.mxu0 %v1711
        %1723 = vmatpush.bf16.msra.mxu0 %v1710
        %1724 = vmatpush.bf16.msra.mxu0 %v1709
        %1725 = vmatpush.bf16.msra.mxu0 %v1708
        %1726 = vmatpush.bf16.msra.mxu0 %v1707
        %1727 = vmatpush.bf16.msra.mxu0 %v1706
        %1728 = vmatpush.bf16.msra.mxu0 %v1705
        %1729 = vmatmul.bf16.gmra.mxu0 %v1671
        %v1730 = vpop.f32.mrf.mxu0
        %v1731 = vadd.f32 0.0, %v1730
        %v1732 = vpop.f32.mrf.mxu0
        %v1733 = vadd.f32 0.0, %v1732
        %1734 = vmatmul.bf16.gmra.mxu0 %v1672
        %v1735 = vpop.f32.mrf.mxu0
        %v1736 = vadd.f32 0.0, %v1735
        %v1737 = vpop.f32.mrf.mxu0
        %v1738 = vadd.f32 0.0, %v1737
        %1739 = vdwg.mxu0
        %v1740 = vadd.f32 %v1243, %v1731
        %v1741 = vadd.f32 %v1244, %v1733
        %v1742 = vadd.f32 %v1245, %v1736
        %v1743 = vadd.f32 %v1246, %v1738
        %v1744 = vld [vmem:[%s1045] sm:$0x1]
        %v1746 = vperm.slane %v1744, 0
        %v1748 = vadd.f32 %v1740, %v1746
        %v1749 = vadd.f32 %v1741, %v1746
        %v1750 = vadd.f32 %v1742, %v1746
        %v1751 = vadd.f32 %v1743, %v1746
        %v1752 = vld [vmem:[%s1048] sm:$0x1]
        %v1753 = vld [vmem:[%s1051] sm:$0x1]
        %1754 = vadd.xlane.f32.xlu0 %v1748
        %v1755 = vpop.xlane.xlu0 %1754
        %1756 = vadd.xlane.f32.xlu0 %v1749
        %v1757 = vpop.xlane.xlu0 %1756
        %1758 = vadd.xlane.f32.xlu0 %v1750
        %v1759 = vpop.xlane.xlu0 %1758
        %1760 = vadd.xlane.f32.xlu0 %v1751
        %v1761 = vpop.xlane.xlu0 %1760
        %v1762 = vrcp.pop 128.0
        %v1763 = vmul.f32 128.0, %v1762
        %v1764 = vsub.f32 1.0, %v1763
        %v1765 = vmul.f32 %v1762, %v1764
        %v1766 = vadd.f32 %v1762, %v1765
        %vm1767 = vweird.f32 %v1762
        %v1768 = vsel %vm1767, %v1762, %v1766
        %v1769 = vmul.f32 %v1755, %v1768
        %v1770 = vmul.f32 %v1757, %v1768
        %v1771 = vmul.f32 %v1759, %v1768
        %v1772 = vmul.f32 %v1761, %v1768
        %v1773 = vsub.f32 %v1748, %v1769
        %v1774 = vsub.f32 %v1749, %v1770
        %v1775 = vsub.f32 %v1750, %v1771
        %v1776 = vsub.f32 %v1751, %v1772
        %v1777 = vmul.f32 %v1773, %v1773
        %v1778 = vmul.f32 %v1774, %v1774
        %v1779 = vmul.f32 %v1775, %v1775
        %v1780 = vmul.f32 %v1776, %v1776
        %1781 = vadd.xlane.f32.xlu0 %v1777
        %v1782 = vpop.xlane.xlu0 %1781
        %1783 = vadd.xlane.f32.xlu0 %v1778
        %v1784 = vpop.xlane.xlu0 %1783
        %1785 = vadd.xlane.f32.xlu0 %v1779
        %v1786 = vpop.xlane.xlu0 %1785
        %1787 = vadd.xlane.f32.xlu0 %v1780
        %v1788 = vpop.xlane.xlu0 %1787
        %v1789 = vmul.f32 %v1782, %v1768
        %v1790 = vmul.f32 %v1784, %v1768
        %v1791 = vmul.f32 %v1786, %v1768
        %v1792 = vmul.f32 %v1788, %v1768
        %v1793 = vadd.f32 %v1789, 1e-05
        %v1794 = vadd.f32 %v1790, 1e-05
        %v1795 = vadd.f32 %v1791, 1e-05
        %v1796 = vadd.f32 %v1792, 1e-05
        %v1797 = vrsqrt.pop %v1793
        %v1798 = vmul.f32 %v1797, %v1793
        %v1799 = vmul.f32 %v1798, %v1797
        %v1800 = vmul.f32 0.5, %v1799
        %v1801 = vsub.f32 1.5, %v1800
        %v1802 = vmul.f32 %v1797, %v1801
        %vm1803 = vweird.f32 %v1793
        %vm1804 = vweird.f32 %v1797
        %vm1805 = vmor %vm1803, %vm1804
        %v1806 = vsel %vm1805, %v1797, %v1802
        %v1807 = vrsqrt.pop %v1794
        %v1808 = vmul.f32 %v1807, %v1794
        %v1809 = vmul.f32 %v1808, %v1807
        %v1810 = vmul.f32 0.5, %v1809
        %v1811 = vsub.f32 1.5, %v1810
        %v1812 = vmul.f32 %v1807, %v1811
        %vm1813 = vweird.f32 %v1794
        %vm1814 = vweird.f32 %v1807
        %vm1815 = vmor %vm1813, %vm1814
        %v1816 = vsel %vm1815, %v1807, %v1812
        %v1817 = vrsqrt.pop %v1795
        %v1818 = vmul.f32 %v1817, %v1795
        %v1819 = vmul.f32 %v1818, %v1817
        %v1820 = vmul.f32 0.5, %v1819
        %v1821 = vsub.f32 1.5, %v1820
        %v1822 = vmul.f32 %v1817, %v1821
        %vm1823 = vweird.f32 %v1795
        %vm1824 = vweird.f32 %v1817
        %vm1825 = vmor %vm1823, %vm1824
        %v1826 = vsel %vm1825, %v1817, %v1822
        %v1827 = vrsqrt.pop %v1796
        %v1828 = vmul.f32 %v1827, %v1796
        %v1829 = vmul.f32 %v1828, %v1827
        %v1830 = vmul.f32 0.5, %v1829
        %v1831 = vsub.f32 1.5, %v1830
        %v1832 = vmul.f32 %v1827, %v1831
        %vm1833 = vweird.f32 %v1796
        %vm1834 = vweird.f32 %v1827
        %vm1835 = vmor %vm1833, %vm1834
        %v1836 = vsel %vm1835, %v1827, %v1832
        %v1837 = vmul.f32 %v1773, %v1806
        %v1838 = vmul.f32 %v1774, %v1816
        %v1839 = vmul.f32 %v1775, %v1826
        %v1840 = vmul.f32 %v1776, %v1836
        %v1842 = vperm.slane %v1752, 0
        %v1844 = vmul.f32 %v1837, %v1842
        %v1845 = vmul.f32 %v1838, %v1842
        %v1846 = vmul.f32 %v1839, %v1842
        %v1847 = vmul.f32 %v1840, %v1842
        %v1849 = vperm.slane %v1753, 0
        %v1851 = vadd.f32 %v1844, %v1849
        %v1852 = vadd.f32 %v1845, %v1849
        %v1853 = vadd.f32 %v1846, %v1849
        %v1854 = vadd.f32 %v1847, %v1849
        %1855 = vst [vmem:[#allocation3] sm:$0xff] %v1851
        %1856 = vst [vmem:[#allocation3 + $0x8] sm:$0xff] %v1852
        %1857 = vst [vmem:[#allocation3 + $0x10] sm:$0xff] %v1853
        %1858 = vst [vmem:[#allocation3 + $0x18] sm:$0xff] %v1854
        %v1859 = vpack.c.bf16 %v1852, %v1851
        %v1860 = vpack.c.bf16 %v1854, %v1853
        %1863 = vxpose.xlu0.c.b16.start [1/8] %v1323, 128
        %1864 = vxpose.xlu0.c.b16.cont [2/8] %v1324, 128
        %1865 = vxpose.xlu0.c.b16.cont [3/8] 0, 128
        %1866 = vxpose.xlu0.c.b16.cont [4/8] 0, 128
        %1867 = vxpose.xlu0.c.b16.cont [5/8] 0, 128
        %1868 = vxpose.xlu0.c.b16.cont [6/8] 0, 128
        %1869 = vxpose.xlu0.c.b16.cont [7/8] 0, 128
        %1870 = vxpose.xlu0.c.b16.end [8/8] 0, 128
        %v1871 = vpop.trf.xlu0
        %v1872 = vpop.trf.xlu0
        %v1873 = vpop.trf.xlu0
        %v1874 = vpop.trf.xlu0
        %v1875 = vpop.trf.xlu0
        %v1876 = vpop.trf.xlu0
        %v1877 = vpop.trf.xlu0
        %v1878 = vpop.trf.xlu0
        %vm1879 = vcmask 261120
        %v1881 = vsel %vm1879, %v1871, 0
        %1883 = vmatpush.bf16.msra.mxu0 0
        %1884 = vmatpush.bf16.msra.mxu0 0
        %1885 = vmatpush.bf16.msra.mxu0 0
        %1886 = vmatpush.bf16.msra.mxu0 0
        %1887 = vmatpush.bf16.msra.mxu0 0
        %1888 = vmatpush.bf16.msra.mxu0 0
        %1889 = vmatpush.bf16.msra.mxu0 %v1860
        %1890 = vmatpush.bf16.msra.mxu0 %v1859
        %1891 = vmatmul.bf16.gmra.mxu0 %v1881
        %v1892 = vpop.f32.mrf.mxu0
        %v1893 = vadd.f32 0.0, %v1892
        %v1894 = vpop.f32.mrf.mxu0
        %v1895 = vadd.f32 0.0, %v1894
        %1896 = vdwg.mxu0
        %1897 = vst [vmem:[#allocation7] sm:$0xf] %v1247
        %1898 = vst [vmem:[#allocation7 + $0x8] sm:$0xf] %v1248
        %v1899 = vpack.c.bf16 %v1893, %v1893
        %v1900 = vpack.c.bf16 %v1895, %v1895
        %1901 = vst [vmem:[#allocation7 + $0x4] sm:$0xf] %v1899
        %1902 = vst [vmem:[#allocation7 + $0xc] sm:$0xf] %v1900
        %v1903 = vld [vmem:[#allocation7] sm:$0xff]
        %v1904 = vld [vmem:[#allocation7 + $0x8] sm:$0xff]
        %v1905 = vld [vmem:[%s924] sm:$0xf]
        %v1906 = vld [vmem:[%s924 + $0x4] sm:$0xf]
        %v1907 = vld [vmem:[%s924 + $0x8] sm:$0xf]
        %v1908 = vld [vmem:[%s924 + $0xc] sm:$0xf]
        %v1909 = vld [vmem:[%s924 + $0x10] sm:$0xf]
        %v1910 = vld [vmem:[%s924 + $0x14] sm:$0xf]
        %v1911 = vld [vmem:[%s924 + $0x18] sm:$0xf]
        %v1912 = vld [vmem:[%s924 + $0x1c] sm:$0xf]
        %v1913 = vld [vmem:[%s924 + $0x20] sm:$0xf]
        %v1914 = vld [vmem:[%s924 + $0x24] sm:$0xf]
        %v1915 = vld [vmem:[%s924 + $0x28] sm:$0xf]
        %v1916 = vld [vmem:[%s924 + $0x2c] sm:$0xf]
        %v1917 = vld [vmem:[%s924 + $0x30] sm:$0xf]
        %v1918 = vld [vmem:[%s924 + $0x34] sm:$0xf]
        %v1919 = vld [vmem:[%s924 + $0x38] sm:$0xf]
        %v1920 = vld [vmem:[%s924 + $0x3c] sm:$0xf]
        %v1921 = vld [vmem:[%s924 + $0x40] sm:$0xf]
        %v1922 = vld [vmem:[%s924 + $0x44] sm:$0xf]
        %v1923 = vld [vmem:[%s924 + $0x48] sm:$0xf]
        %v1924 = vld [vmem:[%s924 + $0x4c] sm:$0xf]
        %v1925 = vld [vmem:[%s924 + $0x50] sm:$0xf]
        %v1926 = vld [vmem:[%s924 + $0x54] sm:$0xf]
        %v1927 = vld [vmem:[%s924 + $0x58] sm:$0xf]
        %v1928 = vld [vmem:[%s924 + $0x5c] sm:$0xf]
        %v1929 = vld [vmem:[%s924 + $0x60] sm:$0xf]
        %v1930 = vld [vmem:[%s924 + $0x64] sm:$0xf]
        %v1931 = vld [vmem:[%s924 + $0x68] sm:$0xf]
        %v1932 = vld [vmem:[%s924 + $0x6c] sm:$0xf]
        %v1933 = vld [vmem:[%s924 + $0x70] sm:$0xf]
        %v1934 = vld [vmem:[%s924 + $0x74] sm:$0xf]
        %v1935 = vld [vmem:[%s924 + $0x78] sm:$0xf]
        %v1936 = vld [vmem:[%s924 + $0x7c] sm:$0xf]
        %v1937 = vld [vmem:[%s1054] sm:$0x1]
        %v1939 = vperm.slane %v1937, 0
        %v1943 = vunpack.c.l.b16 %v1903
        %v1944 = vunpack.c.h.b16 %v1903
        %v1945 = vunpack.c.l.b16 %v1904
        %v1946 = vunpack.c.h.b16 %v1904
        %v1947 = vpack.c.b16 %v1945, %v1943
        %v1948 = vpack.c.b16 %v1946, %v1944
        %v1983 = vunpack.c.l.b16 %v1905
        %v1984 = vunpack.c.l.b16 %v1906
        %v1985 = vunpack.c.l.b16 %v1907
        %v1986 = vunpack.c.l.b16 %v1908
        %v1987 = vunpack.c.l.b16 %v1909
        %v1988 = vunpack.c.l.b16 %v1910
        %v1989 = vunpack.c.l.b16 %v1911
        %v1990 = vunpack.c.l.b16 %v1912
        %v1991 = vunpack.c.l.b16 %v1913
        %v1992 = vunpack.c.l.b16 %v1914
        %v1993 = vunpack.c.l.b16 %v1915
        %v1994 = vunpack.c.l.b16 %v1916
        %v1995 = vunpack.c.l.b16 %v1917
        %v1996 = vunpack.c.l.b16 %v1918
        %v1997 = vunpack.c.l.b16 %v1919
        %v1998 = vunpack.c.l.b16 %v1920
        %v1999 = vunpack.c.l.b16 %v1921
        %v2000 = vunpack.c.l.b16 %v1922
        %v2001 = vunpack.c.l.b16 %v1923
        %v2002 = vunpack.c.l.b16 %v1924
        %v2003 = vunpack.c.l.b16 %v1925
        %v2004 = vunpack.c.l.b16 %v1926
        %v2005 = vunpack.c.l.b16 %v1927
        %v2006 = vunpack.c.l.b16 %v1928
        %v2007 = vunpack.c.l.b16 %v1929
        %v2008 = vunpack.c.l.b16 %v1930
        %v2009 = vunpack.c.l.b16 %v1931
        %v2010 = vunpack.c.l.b16 %v1932
        %v2011 = vunpack.c.l.b16 %v1933
        %v2012 = vunpack.c.l.b16 %v1934
        %v2013 = vunpack.c.l.b16 %v1935
        %v2014 = vunpack.c.l.b16 %v1936
        %v2015 = vpack.c.b16 %v1984, %v1983
        %v2016 = vpack.c.b16 %v1986, %v1985
        %v2017 = vpack.c.b16 %v1988, %v1987
        %v2018 = vpack.c.b16 %v1990, %v1989
        %v2019 = vpack.c.b16 %v1992, %v1991
        %v2020 = vpack.c.b16 %v1994, %v1993
        %v2021 = vpack.c.b16 %v1996, %v1995
        %v2022 = vpack.c.b16 %v1998, %v1997
        %v2023 = vpack.c.b16 %v2000, %v1999
        %v2024 = vpack.c.b16 %v2002, %v2001
        %v2025 = vpack.c.b16 %v2004, %v2003
        %v2026 = vpack.c.b16 %v2006, %v2005
        %v2027 = vpack.c.b16 %v2008, %v2007
        %v2028 = vpack.c.b16 %v2010, %v2009
        %v2029 = vpack.c.b16 %v2012, %v2011
        %v2030 = vpack.c.b16 %v2014, %v2013
        %2047 = vmatpush.bf16.msra.mxu0 %v2022
        %2048 = vmatpush.bf16.msra.mxu0 %v2021
        %2049 = vmatpush.bf16.msra.mxu0 %v2020
        %2050 = vmatpush.bf16.msra.mxu0 %v2019
        %2051 = vmatpush.bf16.msra.mxu0 %v2018
        %2052 = vmatpush.bf16.msra.mxu0 %v2017
        %2053 = vmatpush.bf16.msra.mxu0 %v2016
        %2054 = vmatpush.bf16.msra.mxu0 %v2015
        %2055 = vmatmul.bf16.gmra.mxu0 %v1947
        %v2056 = vpop.f32.mrf.mxu0
        %v2057 = vadd.f32 %v1939, %v2056
        %v2058 = vpop.f32.mrf.mxu0
        %v2059 = vadd.f32 %v1939, %v2058
        %2060 = vdwg.mxu0
        %2061 = vmatpush.bf16.msra.mxu0 %v2030
        %2062 = vmatpush.bf16.msra.mxu0 %v2029
        %2063 = vmatpush.bf16.msra.mxu0 %v2028
        %2064 = vmatpush.bf16.msra.mxu0 %v2027
        %2065 = vmatpush.bf16.msra.mxu0 %v2026
        %2066 = vmatpush.bf16.msra.mxu0 %v2025
        %2067 = vmatpush.bf16.msra.mxu0 %v2024
        %2068 = vmatpush.bf16.msra.mxu0 %v2023
        %2069 = vmatmul.bf16.gmra.mxu0 %v1948
        %v2070 = vpop.f32.mrf.mxu0
        %v2071 = vadd.f32 %v2057, %v2070
        %v2072 = vpop.f32.mrf.mxu0
        %v2073 = vadd.f32 %v2059, %v2072
        %2074 = vdwg.mxu0
        %v2075 = vmax.f32 %v2071, 0.0
        %v2076 = vmax.f32 %v2073, 0.0
        %v2077 = vld [vmem:[%s934] sm:$0xf]
        %v2078 = vld [vmem:[%s934 + $0x4] sm:$0xf]
        %v2079 = vld [vmem:[%s934 + $0x8] sm:$0xf]
        %v2080 = vld [vmem:[%s934 + $0xc] sm:$0xf]
        %v2081 = vld [vmem:[%s934 + $0x10] sm:$0xf]
        %v2082 = vld [vmem:[%s934 + $0x14] sm:$0xf]
        %v2083 = vld [vmem:[%s934 + $0x18] sm:$0xf]
        %v2084 = vld [vmem:[%s934 + $0x1c] sm:$0xf]
        %v2085 = vld [vmem:[%s934 + $0x20] sm:$0xf]
        %v2086 = vld [vmem:[%s934 + $0x24] sm:$0xf]
        %v2087 = vld [vmem:[%s934 + $0x28] sm:$0xf]
        %v2088 = vld [vmem:[%s934 + $0x2c] sm:$0xf]
        %v2089 = vld [vmem:[%s934 + $0x30] sm:$0xf]
        %v2090 = vld [vmem:[%s934 + $0x34] sm:$0xf]
        %v2091 = vld [vmem:[%s934 + $0x38] sm:$0xf]
        %v2092 = vld [vmem:[%s934 + $0x3c] sm:$0xf]
        %v2093 = vpack.c.bf16 %v2076, %v2075
        %v2110 = vunpack.c.l.b16 %v2077
        %v2111 = vunpack.c.l.b16 %v2078
        %v2112 = vunpack.c.l.b16 %v2079
        %v2113 = vunpack.c.l.b16 %v2080
        %v2114 = vunpack.c.l.b16 %v2081
        %v2115 = vunpack.c.l.b16 %v2082
        %v2116 = vunpack.c.l.b16 %v2083
        %v2117 = vunpack.c.l.b16 %v2084
        %v2118 = vunpack.c.l.b16 %v2085
        %v2119 = vunpack.c.l.b16 %v2086
        %v2120 = vunpack.c.l.b16 %v2087
        %v2121 = vunpack.c.l.b16 %v2088
        %v2122 = vunpack.c.l.b16 %v2089
        %v2123 = vunpack.c.l.b16 %v2090
        %v2124 = vunpack.c.l.b16 %v2091
        %v2125 = vunpack.c.l.b16 %v2092
        %v2126 = vpack.c.b16 %v2111, %v2110
        %v2127 = vpack.c.b16 %v2113, %v2112
        %v2128 = vpack.c.b16 %v2115, %v2114
        %v2129 = vpack.c.b16 %v2117, %v2116
        %v2130 = vpack.c.b16 %v2119, %v2118
        %v2131 = vpack.c.b16 %v2121, %v2120
        %v2132 = vpack.c.b16 %v2123, %v2122
        %v2133 = vpack.c.b16 %v2125, %v2124
        %2142 = vmatpush.bf16.msra.mxu0 %v2133
        %2143 = vmatpush.bf16.msra.mxu0 %v2132
        %2144 = vmatpush.bf16.msra.mxu0 %v2131
        %2145 = vmatpush.bf16.msra.mxu0 %v2130
        %2146 = vmatpush.bf16.msra.mxu0 %v2129
        %2147 = vmatpush.bf16.msra.mxu0 %v2128
        %2148 = vmatpush.bf16.msra.mxu0 %v2127
        %2149 = vmatpush.bf16.msra.mxu0 %v2126
        %2150 = vmatmul.bf16.gmra.mxu0 %v2093
        %v2151 = vpop.f32.mrf.mxu0
        %v2152 = vadd.f32 0.0, %v2151
        %v2153 = vpop.f32.mrf.mxu0
        %v2154 = vadd.f32 0.0, %v2153
        %2155 = vdwg.mxu0
        %v2156 = vadd.f32 %v1241, %v2152
        %v2157 = vadd.f32 %v1242, %v2154
        %v2158 = vld [vmem:[%s1057] sm:$0x1]
        %v2160 = vperm.slane %v2158, 0
        %v2162 = vadd.f32 %v2156, %v2160
        %v2163 = vadd.f32 %v2157, %v2160
        %v2164 = vld [vmem:[%s1060] sm:$0x1]
        %v2165 = vld [vmem:[%s1063] sm:$0x1]
        %2166 = vadd.xlane.f32.xlu0 %v2162
        %v2167 = vpop.xlane.xlu0 %2166
        %2168 = vadd.xlane.f32.xlu0 %v2163
        %v2169 = vpop.xlane.xlu0 %2168
        %v2170 = vmul.f32 %v2167, %v1768
        %v2171 = vmul.f32 %v2169, %v1768
        %v2172 = vsub.f32 %v2162, %v2170
        %v2173 = vsub.f32 %v2163, %v2171
        %v2174 = vmul.f32 %v2172, %v2172
        %v2175 = vmul.f32 %v2173, %v2173
        %2176 = vadd.xlane.f32.xlu0 %v2174
        %v2177 = vpop.xlane.xlu0 %2176
        %2178 = vadd.xlane.f32.xlu0 %v2175
        %v2179 = vpop.xlane.xlu0 %2178
        %v2180 = vmul.f32 %v2177, %v1768
        %v2181 = vmul.f32 %v2179, %v1768
        %v2182 = vadd.f32 %v2180, 1e-05
        %v2183 = vadd.f32 %v2181, 1e-05
        %v2184 = vrsqrt.pop %v2182
        %v2185 = vmul.f32 %v2184, %v2182
        %v2186 = vmul.f32 %v2185, %v2184
        %v2187 = vmul.f32 0.5, %v2186
        %v2188 = vsub.f32 1.5, %v2187
        %v2189 = vmul.f32 %v2184, %v2188
        %vm2190 = vweird.f32 %v2182
        %vm2191 = vweird.f32 %v2184
        %vm2192 = vmor %vm2190, %vm2191
        %v2193 = vsel %vm2192, %v2184, %v2189
        %v2194 = vrsqrt.pop %v2183
        %v2195 = vmul.f32 %v2194, %v2183
        %v2196 = vmul.f32 %v2195, %v2194
        %v2197 = vmul.f32 0.5, %v2196
        %v2198 = vsub.f32 1.5, %v2197
        %v2199 = vmul.f32 %v2194, %v2198
        %vm2200 = vweird.f32 %v2183
        %vm2201 = vweird.f32 %v2194
        %vm2202 = vmor %vm2200, %vm2201
        %v2203 = vsel %vm2202, %v2194, %v2199
        %v2204 = vmul.f32 %v2172, %v2193
        %v2205 = vmul.f32 %v2173, %v2203
        %v2207 = vperm.slane %v2164, 0
        %v2209 = vmul.f32 %v2204, %v2207
        %v2210 = vmul.f32 %v2205, %v2207
        %v2212 = vperm.slane %v2165, 0
        %v2214 = vadd.f32 %v2209, %v2212
        %v2215 = vadd.f32 %v2210, %v2212
        %2216 = vst [vmem:[#allocation2] sm:$0xff] %v2214
        %2217 = vst [vmem:[#allocation2 + $0x8] sm:$0xff] %v2215
        %p2218 = scmp.eq.s32.totalorder %s50, 1
        // Predicated region
        $region149: #{tpu_custom_call.1} parent=127 // pred_check
          %p2219 = pneg %p2218
        $region150: #{tpu_custom_call.1} parent=127 // pred_check_branch
          %2221 = sbr.rel (%p2219) target = $region152
        $region151: #{tpu_custom_call.1} parent=127 // pred_region
          %v2222 = vld [vmem:[#allocation2] sm:$0xff]
          %v2223 = vld [vmem:[#allocation2 + $0x8] sm:$0xff]
          %v2224 = vld [vmem:[%s20] sm:$0xf]
          %v2225 = vld [vmem:[%s20 + $0x4] sm:$0xf]
          %v2226 = vld [vmem:[%s20 + $0x8] sm:$0xf]
          %v2227 = vld [vmem:[%s20 + $0xc] sm:$0xf]
          %v2228 = vld [vmem:[%s20 + $0x10] sm:$0xf]
          %v2229 = vld [vmem:[%s20 + $0x14] sm:$0xf]
          %v2230 = vld [vmem:[%s20 + $0x18] sm:$0xf]
          %v2231 = vld [vmem:[%s20 + $0x1c] sm:$0xf]
          %v2232 = vld [vmem:[%s20 + $0x20] sm:$0xf]
          %v2233 = vld [vmem:[%s20 + $0x24] sm:$0xf]
          %v2234 = vld [vmem:[%s20 + $0x28] sm:$0xf]
          %v2235 = vld [vmem:[%s20 + $0x2c] sm:$0xf]
          %v2236 = vld [vmem:[%s20 + $0x30] sm:$0xf]
          %v2237 = vld [vmem:[%s20 + $0x34] sm:$0xf]
          %v2238 = vld [vmem:[%s20 + $0x38] sm:$0xf]
          %v2239 = vld [vmem:[%s20 + $0x3c] sm:$0xf]
          %v2240 = vpack.c.bf16 %v2223, %v2222
          %v2241 = vld [vmem:[%s21] sm:$0x1]
          %v2243 = vperm.slane %v2241, 0
          %v2261 = vunpack.c.l.b16 %v2224
          %v2262 = vunpack.c.l.b16 %v2225
          %v2263 = vunpack.c.l.b16 %v2226
          %v2264 = vunpack.c.l.b16 %v2227
          %v2265 = vunpack.c.l.b16 %v2228
          %v2266 = vunpack.c.l.b16 %v2229
          %v2267 = vunpack.c.l.b16 %v2230
          %v2268 = vunpack.c.l.b16 %v2231
          %v2269 = vunpack.c.l.b16 %v2232
          %v2270 = vunpack.c.l.b16 %v2233
          %v2271 = vunpack.c.l.b16 %v2234
          %v2272 = vunpack.c.l.b16 %v2235
          %v2273 = vunpack.c.l.b16 %v2236
          %v2274 = vunpack.c.l.b16 %v2237
          %v2275 = vunpack.c.l.b16 %v2238
          %v2276 = vunpack.c.l.b16 %v2239
          %v2277 = vpack.c.b16 %v2262, %v2261
          %v2278 = vpack.c.b16 %v2264, %v2263
          %v2279 = vpack.c.b16 %v2266, %v2265
          %v2280 = vpack.c.b16 %v2268, %v2267
          %v2281 = vpack.c.b16 %v2270, %v2269
          %v2282 = vpack.c.b16 %v2272, %v2271
          %v2283 = vpack.c.b16 %v2274, %v2273
          %v2284 = vpack.c.b16 %v2276, %v2275
          %2293 = vmatpush.bf16.msra.mxu0 %v2284
          %2294 = vmatpush.bf16.msra.mxu0 %v2283
          %2295 = vmatpush.bf16.msra.mxu0 %v2282
          %2296 = vmatpush.bf16.msra.mxu0 %v2281
          %2297 = vmatpush.bf16.msra.mxu0 %v2280
          %2298 = vmatpush.bf16.msra.mxu0 %v2279
          %2299 = vmatpush.bf16.msra.mxu0 %v2278
          %2300 = vmatpush.bf16.msra.mxu0 %v2277
          %2301 = vmatmul.bf16.gmra.mxu0 %v2240
          %v2302 = vpop.f32.mrf.mxu0
          %v2303 = vadd.f32 %v2243, %v2302
          %v2304 = vpop.f32.mrf.mxu0
          %v2305 = vadd.f32 %v2243, %v2304
          %2306 = vdwg.mxu0
          %v2307 = vmax.f32 %v2303, 0.0
          %v2308 = vmax.f32 %v2305, 0.0
          %v2309 = vld [vmem:[%s22] sm:$0x1]
          %v2310 = vld [vmem:[%s23] sm:$0x1]
          %2311 = vadd.xlane.f32.xlu0 %v2307
          %v2312 = vpop.xlane.xlu0 %2311
          %2313 = vadd.xlane.f32.xlu0 %v2308
          %v2314 = vpop.xlane.xlu0 %2313
          %v2315 = vmul.f32 %v2312, %v1768
          %v2316 = vmul.f32 %v2314, %v1768
          %v2317 = vsub.f32 %v2307, %v2315
          %v2318 = vsub.f32 %v2308, %v2316
          %v2319 = vmul.f32 %v2317, %v2317
          %v2320 = vmul.f32 %v2318, %v2318
          %2321 = vadd.xlane.f32.xlu0 %v2319
          %v2322 = vpop.xlane.xlu0 %2321
          %2323 = vadd.xlane.f32.xlu0 %v2320
          %v2324 = vpop.xlane.xlu0 %2323
          %v2325 = vmul.f32 %v2322, %v1768
          %v2326 = vmul.f32 %v2324, %v1768
          %v2327 = vadd.f32 %v2325, 1e-05
          %v2328 = vadd.f32 %v2326, 1e-05
          %v2329 = vrsqrt.pop %v2327
          %v2330 = vmul.f32 %v2329, %v2327
          %v2331 = vmul.f32 %v2330, %v2329
          %v2332 = vmul.f32 0.5, %v2331
          %v2333 = vsub.f32 1.5, %v2332
          %v2334 = vmul.f32 %v2329, %v2333
          %vm2335 = vweird.f32 %v2327
          %vm2336 = vweird.f32 %v2329
          %vm2337 = vmor %vm2335, %vm2336
          %v2338 = vsel %vm2337, %v2329, %v2334
          %v2339 = vrsqrt.pop %v2328
          %v2340 = vmul.f32 %v2339, %v2328
          %v2341 = vmul.f32 %v2340, %v2339
          %v2342 = vmul.f32 0.5, %v2341
          %v2343 = vsub.f32 1.5, %v2342
          %v2344 = vmul.f32 %v2339, %v2343
          %vm2345 = vweird.f32 %v2328
          %vm2346 = vweird.f32 %v2339
          %vm2347 = vmor %vm2345, %vm2346
          %v2348 = vsel %vm2347, %v2339, %v2344
          %v2349 = vmul.f32 %v2317, %v2338
          %v2350 = vmul.f32 %v2318, %v2348
          %v2352 = vperm.slane %v2309, 0
          %v2354 = vmul.f32 %v2349, %v2352
          %v2355 = vmul.f32 %v2350, %v2352
          %v2357 = vperm.slane %v2310, 0
          %v2359 = vadd.f32 %v2354, %v2357
          %v2360 = vadd.f32 %v2355, %v2357
          %v2361 = vld [vmem:[%s26] sm:$0xff]
          %v2362 = vld [vmem:[%s26 + $0x8] sm:$0xff]
          %v2363 = vpack.c.bf16 %v2362, %v2361
          %v2364 = vpack.c.bf16 %v2360, %v2359
          %2365 = vxpose.xlu0.c.b16.start [1/8] %v2363, 128
          %2366 = vxpose.xlu0.c.b16.cont [2/8] 0, 128
          %2367 = vxpose.xlu0.c.b16.cont [3/8] 0, 128
          %2368 = vxpose.xlu0.c.b16.cont [4/8] 0, 128
          %2369 = vxpose.xlu0.c.b16.cont [5/8] 0, 128
          %2370 = vxpose.xlu0.c.b16.cont [6/8] 0, 128
          %2371 = vxpose.xlu0.c.b16.cont [7/8] 0, 128
          %2372 = vxpose.xlu0.c.b16.end [8/8] 0, 128
          %v2373 = vpop.trf.xlu0
          %v2374 = vpop.trf.xlu0
          %v2375 = vpop.trf.xlu0
          %v2376 = vpop.trf.xlu0
          %v2377 = vpop.trf.xlu0
          %v2378 = vpop.trf.xlu0
          %v2379 = vpop.trf.xlu0
          %v2380 = vpop.trf.xlu0
          %v2382 = vsel %vm1281, %v2373, 0
          %2384 = vmatpush.bf16.msra.mxu0 0
          %2385 = vmatpush.bf16.msra.mxu0 0
          %2386 = vmatpush.bf16.msra.mxu0 0
          %2387 = vmatpush.bf16.msra.mxu0 0
          %2388 = vmatpush.bf16.msra.mxu0 0
          %2389 = vmatpush.bf16.msra.mxu0 0
          %2390 = vmatpush.bf16.msra.mxu0 0
          %2391 = vmatpush.bf16.msra.mxu0 %v2364
          %2392 = vmatmul.bf16.gmra.mxu0 %v2382
          %v2393 = vpop.f32.mrf.mxu0
          %v2394 = vadd.f32 0.0, %v2393
          %v2395 = vpop.f32.mrf.mxu0
          %2396 = vdwg.mxu0
          %vm2397 = vcmask 7168
          %v2398 = vsel %vm2397, %v2361, 0.0
          %v2399 = vsel %vm2397, %v2362, 0.0
          %v2400 = vadd.f32 %v2398, %v2399
          %2401 = vadd.xlane.f32.xlu0 %v2400
          %v2402 = vpop.xlane.xlu0 %2401
          %v2403 = vrot.slane %v2402, 4
          %v2404 = vadd.f32 %v2402, %v2403
          %v2405 = vrot.slane %v2404, 2
          %v2406 = vadd.f32 %v2404, %v2405
          %v2407 = vrot.slane %v2406, 1
          %v2408 = vadd.f32 %v2406, %v2407
          %s2409 = vtos %v2408
          %v2410 = vstv %s2409
          %v2411 = vld [vmem:[%s24] sm:$0xf]
          %v2412 = vld [vmem:[%s24 + $0x4] sm:$0xf]
          %v2413 = vld [vmem:[%s24 + $0x8] sm:$0xf]
          %v2414 = vld [vmem:[%s24 + $0xc] sm:$0xf]
          %v2415 = vld [vmem:[%s24 + $0x10] sm:$0xf]
          %v2416 = vld [vmem:[%s24 + $0x14] sm:$0xf]
          %v2417 = vld [vmem:[%s24 + $0x18] sm:$0xf]
          %v2418 = vld [vmem:[%s24 + $0x1c] sm:$0xf]
          %v2419 = vld [vmem:[%s24 + $0x20] sm:$0xf]
          %v2420 = vld [vmem:[%s24 + $0x24] sm:$0xf]
          %v2421 = vld [vmem:[%s24 + $0x28] sm:$0xf]
          %v2422 = vld [vmem:[%s24 + $0x2c] sm:$0xf]
          %v2423 = vld [vmem:[%s24 + $0x30] sm:$0xf]
          %v2424 = vld [vmem:[%s24 + $0x34] sm:$0xf]
          %v2425 = vld [vmem:[%s24 + $0x38] sm:$0xf]
          %v2426 = vld [vmem:[%s24 + $0x3c] sm:$0xf]
          %v2427 = vpack.c.bf16 %v2394, %v2394
          %v2428 = vld [vmem:[#allocation8] sm:$0x1]
          %v2429 = vmul.f32 %v2410, %v2428
          %v2446 = vunpack.c.l.b16 %v2411
          %v2447 = vunpack.c.l.b16 %v2412
          %v2448 = vunpack.c.l.b16 %v2413
          %v2449 = vunpack.c.l.b16 %v2414
          %v2450 = vunpack.c.l.b16 %v2415
          %v2451 = vunpack.c.l.b16 %v2416
          %v2452 = vunpack.c.l.b16 %v2417
          %v2453 = vunpack.c.l.b16 %v2418
          %v2454 = vunpack.c.l.b16 %v2419
          %v2455 = vunpack.c.l.b16 %v2420
          %v2456 = vunpack.c.l.b16 %v2421
          %v2457 = vunpack.c.l.b16 %v2422
          %v2458 = vunpack.c.l.b16 %v2423
          %v2459 = vunpack.c.l.b16 %v2424
          %v2460 = vunpack.c.l.b16 %v2425
          %v2461 = vunpack.c.l.b16 %v2426
          %v2462 = vpack.c.b16 %v2447, %v2446
          %v2463 = vpack.c.b16 %v2449, %v2448
          %v2464 = vpack.c.b16 %v2451, %v2450
          %v2465 = vpack.c.b16 %v2453, %v2452
          %v2466 = vpack.c.b16 %v2455, %v2454
          %v2467 = vpack.c.b16 %v2457, %v2456
          %v2468 = vpack.c.b16 %v2459, %v2458
          %v2469 = vpack.c.b16 %v2461, %v2460
          %2478 = vmatpush.bf16.msra.mxu0 %v2469
          %2479 = vmatpush.bf16.msra.mxu0 %v2468
          %2480 = vmatpush.bf16.msra.mxu0 %v2467
          %2481 = vmatpush.bf16.msra.mxu0 %v2466
          %2482 = vmatpush.bf16.msra.mxu0 %v2465
          %2483 = vmatpush.bf16.msra.mxu0 %v2464
          %2484 = vmatpush.bf16.msra.mxu0 %v2463
          %2485 = vmatpush.bf16.msra.mxu0 %v2462
          %2486 = vmatmul.bf16.gmra.mxu0 %v2427
          %v2487 = vpop.f32.mrf.mxu0
          %v2488 = vadd.f32 %v2429, %v2487
          %v2489 = vpop.f32.mrf.mxu0
          %2490 = vdwg.mxu0
          %vm2491 = vcmask 0
          %2492 = vst.msk [vmem:[#allocation17] sm:$0x1] %vm2491, %v2488
        $region152: #{tpu_custom_call.1} parent=127 // pred_fallthru
          _
        // Predicated region
        $region153: #{tpu_custom_call.1} parent=127 // pred_check
          %p2493 = pneg %p690
        $region154: #{tpu_custom_call.1} parent=127 // pred_check_branch
          %2495 = sbr.rel (%p2493) target = $region156
        $region155: #{tpu_custom_call.1} parent=127 // pred_region
          %2497 = vsyncadd [#allocation11], 0
          %s2499 = sshll.u32 [#allocation17], 4
          %s2500 = int_to_ptr.vmem [resolvable:$true] %s2499
          %s2501 = sshll.u32 %s27, 4
          %s2502 = int_to_ptr.hbm [resolvable:$true] %s2501
          %2504 = dma.vmem_to_hbm [thread:$0]  %s2500, 16, %s2502, [#allocation11]
        $region156: #{tpu_custom_call.1} parent=127 // pred_fallthru
          _
        // Predicated region
        $region157: #{tpu_custom_call.1} parent=127 // pred_check
          %p2505 = pneg %p690
        $region158: #{tpu_custom_call.1} parent=127 // pred_check_branch
          %2507 = sbr.rel (%p2505) target = $region160
        $region159: #{tpu_custom_call.1} parent=127 // pred_region
          %2509 = dma.done [#allocation11], 16
        $region160: #{tpu_custom_call.1} parent=127 // pred_fallthru
          _
      $region128: #{tpu_custom_call.1} parent=5 // pred_fallthru
        _
      %p2510 = scmp.le.s32.totalorder 2, %s45
      // Predicated region
      $region161: #{tpu_custom_call.1} parent=5 // pred_check
        %p2511 = pneg %p2510
      $region162: #{tpu_custom_call.1} parent=5 // pred_check_branch
        %2513 = sbr.rel (%p2511) target = $region164
      $region163: #{tpu_custom_call.1} parent=5 // pred_region
        %s2514 = ssub.s32 %s45, 2
      $region164: #{tpu_custom_call.1} parent=5 // pred_fallthru
        _
    $region6: #{tpu_custom_call.1} parent=1 // loop_footer
      %s49 = sadd.s32 1, %s45
    $region7: #{tpu_custom_call.1} parent=1 // loop_footer_branch
      %44 = sbr.rel target = $region3
    $region8: #{tpu_custom_call.1} parent=1 // loop_exit
      _
    %2515 = vsyncpa [#allocation10], 1
    %s2516 = scalar_lea.sflag [#allocation10], 1
    %2517 = vsyncpa %s2516, 1
    %2518 = vsyncpa [#allocation13], 1
    %s2519 = scalar_lea.sflag [#allocation13], 1
    %2520 = vsyncpa %s2519, 1
    %2521 = vsyncpa [#allocation16], 1
    %s2522 = scalar_lea.sflag [#allocation16], 1
    %2523 = vsyncpa %s2522, 1
    %2524 = vsyncpa [#allocation11], 1
    %s2525 = scalar_lea.sflag [#allocation11], 1
    %2526 = vsyncpa %s2525, 1

</llo_original>
